<compile_context>
chip_gen: v6e
topology: v6e:2x2x1
jax: 0.10.0
libtpu: 0.0.40
codegen_flags: <defaults>
</compile_context>

<pallas_src>
import jax
import jax.numpy as jnp
from jax import lax
from jax.experimental import pallas as pl
from jax.experimental.pallas import tpu as pltpu

# ---- problem sizes (small, consistent with the module) ----
N, C, H, W = 2, 64, 16, 16
HW = H * W
NC = N * C       # packed channel axis (batch folded into lanes)
E = 32           # emb_channels
CD = 16          # condition_dim
T = 9            # tab_cond_dim
G = 32           # normalization() -> GroupNorm32(32, channels)
GS = C // G      # channels per group (= 2)
EPS = 1e-5
PAD = 32         # halo rows above/below the image (multiple of 8, >= W+1)


def resblock_kernel(x_ref, emb_ref, tab_ref, cond_ref, vecs_ref,
                    be_ref, bt1_ref, we_ref, wt1_ref, wt2_ref, w12_ref,
                    out_ref, halo_ref):
    x = x_ref[...]                                           # (HW, NC) f32

    # ---- hoisted constants (built once, shared by both convs / both GNs) ----
    col = lax.broadcasted_iota(jnp.int32, (HW, NC), 0) % W
    ok_left = col >= 1             # valid when dx = -1
    ok_right = col < (W - 1)       # valid when dx = +1
    lane = lax.broadcasted_iota(jnp.int32, (1, NC), 1)
    lane_even = (lane % 2) == 0

    # zero only the halo bands once; both convs overwrite the middle rows
    zeros_band = jnp.zeros((PAD, NC), jnp.float32)
    halo_ref[pl.ds(0, PAD), :] = zeros_band
    halo_ref[pl.ds(PAD + HW, PAD), :] = zeros_band

    def pair_swap(v):
        # swap adjacent lanes (group size GS=2) via XLU rolls + select (tiny)
        up = pltpu.roll(v, shift=NC - 1, axis=1)             # v[(l+1) % NC]
        dn = pltpu.roll(v, shift=1, axis=1)                  # v[(l-1) % NC]
        return jnp.where(lane_even, up, dn)

    def group_norm(h, gamma, beta):
        csum = jnp.sum(h, axis=0, keepdims=True)             # (1, NC)
        csq = jnp.sum(h * h, axis=0, keepdims=True)          # (1, NC)
        denom = float(HW * GS)
        mean = (csum + pair_swap(csum)) / denom              # per-channel bcast
        msq = (csq + pair_swap(csq)) / denom
        var = jnp.maximum(msq - mean * mean, 0.0)            # clamp rounding
        inv = lax.rsqrt(var + EPS)
        return (h - mean) * inv * gamma + beta

    def conv3x3(a, w_bf16, b):
        # Halo-padded scratch: row shifts (dy) are free via the zero bands,
        # column shifts (dx) only need a lane-invariant edge mask.  Tap
        # gathering rides the vld path (static slices) instead of XLU rolls.
        halo_ref[pl.ds(PAD, HW), :] = a
        slabs = []
        for dy in (-1, 0, 1):
            for dx in (-1, 0, 1):
                off = dy * W + dx
                if off == 0:
                    tap = a                                   # already in regs
                else:
                    tap = halo_ref[pl.ds(PAD + off, HW), :]   # static slice
                if dx == -1:
                    tap = jnp.where(ok_left, tap, 0.0)
                elif dx == 1:
                    tap = jnp.where(ok_right, tap, 0.0)
                slabs.append(tap.astype(jnp.bfloat16))
        slab = jnp.concatenate(slabs, axis=1)                 # (HW, 9*NC) bf16
        acc = jnp.dot(slab, w_bf16, preferred_element_type=jnp.float32)
        return acc + b

    # collapsed per-channel parameter vectors (sample-packed, (1, NC) rows)
    gn1_g = vecs_ref[0:1, :]
    gn1_b = vecs_ref[1:2, :]
    b1 = vecs_ref[2:3, :]
    bt2 = vecs_ref[3:4, :]
    gn2_g = vecs_ref[4:5, :]
    gn2_b = vecs_ref[5:6, :]
    b2 = vecs_ref[6:7, :]

    # ---- in_layers: GroupNorm -> SiLU -> Conv3x3 ----
    a = jax.nn.silu(group_norm(x, gn1_g, gn1_b))
    h = conv3x3(a, w12_ref[0], b1)

    # ---- emb_layers: SiLU -> Linear (whole batch at once via block weights) ----
    eo = jnp.dot(jax.nn.silu(emb_ref[...]), we_ref[...],
                 preferred_element_type=jnp.float32) + be_ref[...]   # (1, 2*NC)
    scale_e = eo[:, :NC]
    shift_e = eo[:, NC:]

    # ---- tab_embed: Linear -> SiLU -> Linear ----
    t1 = jnp.dot(tab_ref[...], wt1_ref[...],
                 preferred_element_type=jnp.float32) + bt1_ref[...]  # (1, N*CD)
    t2 = jnp.dot(jax.nn.silu(t1), wt2_ref[...],
                 preferred_element_type=jnp.float32) + bt2           # (1, NC)

    cnd = cond_ref[...]                                              # (1, NC)

    # ---- out_layers: GN -> scale/shift(emb) -> (cond) -> (tab) -> SiLU -> Conv ----
    hh = group_norm(h, gn2_g, gn2_b)
    hh = hh * (1.0 + scale_e) + shift_e
    hh = hh * (1.0 + cnd)
    hh = hh * (1.0 + t2)
    hh = jax.nn.silu(hh)                     # Dropout(p=0.0) is identity
    hh = conv3x3(hh, w12_ref[1], b2)

    # ---- skip connection (Identity, out_channels == channels) ----
    out_ref[...] = x + hh


def _full(a):
    nd = a.ndim
    return pl.BlockSpec(a.shape, lambda i, _nd=nd: (0,) * _nd)


# ---------------- one-time weight packing ("module init", not per-call) -------------
def pack_params(params):
    (gn1_g, gn1_b, w1, b1, we, be, wt1, bt1, wt2, bt2,
     gn2_g, gn2_b, w2, b2) = params
    eyeN = jnp.eye(N, dtype=jnp.float32)

    def tile_lane(v):                  # (1, k) -> (1, N*k) sample-packed
        return jnp.tile(v, (1, N))

    def pack_conv(w9):                 # (9, C, C) -> (9*N*C, N*C) block-diag/tap
        blk = jnp.einsum('tio,nm->tnimo', w9, eyeN)
        return blk.reshape(9 * NC, NC)

    def pack_linear(wkc):              # (k, c) -> (N*k, N*c) batch block-diag
        k, c = wkc.shape
        return jnp.einsum('kc,nm->nkmc', wkc, eyeN).reshape(N * k, N * c)

    # conv weights: stacked, bf16 (halves their DMA; MXU runs bf16 w/ f32 acc)
    w12 = jnp.stack([pack_conv(w1), pack_conv(w2)]).astype(jnp.bfloat16)

    we_comb = jnp.concatenate([pack_linear(we[:, :C]), pack_linear(we[:, C:])],
                              axis=1)                        # (N*E, 2*N*C)
    be_comb = jnp.concatenate([tile_lane(be[:, :C]), tile_lane(be[:, C:])],
                              axis=1)                        # (1, 2*N*C)
    wt1_comb = pack_linear(wt1)                              # (N*T, N*CD)
    bt1_comb = tile_lane(bt1)                                # (1, N*CD)
    wt2_comb = pack_linear(wt2)                              # (N*CD, N*C)

    vecs = jnp.concatenate([tile_lane(gn1_g), tile_lane(gn1_b), tile_lane(b1),
                            tile_lane(bt2), tile_lane(gn2_g), tile_lane(gn2_b),
                            tile_lane(b2)], axis=0)          # (7, NC)

    return (vecs, be_comb, bt1_comb, we_comb, wt1_comb, wt2_comb, w12)


# ---------------- per-call forward (packed activation layout in & out) --------------
@jax.jit
def resblock_forward_packed(x_p, emb_p, tab_p, cond_p, packed):
    vecs, be_comb, bt1_comb, we_comb, wt1_comb, wt2_comb, w12 = packed
    inputs = (x_p, emb_p, tab_p, cond_p, vecs, be_comb, bt1_comb,
              we_comb, wt1_comb, wt2_comb, w12)
    return pl.pallas_call(
        resblock_kernel,
        out_shape=jax.ShapeDtypeStruct((HW, NC), jnp.float32),
        grid=(1,),
        in_specs=[_full(a) for a in inputs],
        out_specs=pl.BlockSpec((HW, NC), lambda i: (0, 0)),
        scratch_shapes=[pltpu.VMEM((HW + 2 * PAD, NC), jnp.float32)],
        compiler_params=pltpu.CompilerParams(
            dimension_semantics=("arbitrary",)),
    )(*inputs)


# boundary layout converters (applied ONCE at network edges, not per layer)
def to_packed(x_nchw):                 # NCHW -> (HW, N*C)
    return jnp.transpose(x_nchw, (2, 3, 0, 1)).reshape(HW, NC)


def from_packed(x_p):                  # (HW, N*C) -> NCHW
    return jnp.transpose(x_p.reshape(H, W, N, C), (2, 3, 0, 1))


# ------------------------ pure-JAX reference (for checking) ------------------------
def ref_forward(x, emb, cond, tab, params):
    (gn1_g, gn1_b, w1, b1, we, be, wt1, bt1, wt2, bt2,
     gn2_g, gn2_b, w2, b2) = params

    def gn(y, gamma, beta):
        n_, c_, h_, w_ = y.shape
        yg = y.reshape(n_, G, c_ // G, h_, w_)
        m = yg.mean(axis=(2, 3, 4), keepdims=True)
        v = yg.var(axis=(2, 3, 4), keepdims=True)
        yn = ((yg - m) / jnp.sqrt(v + EPS)).reshape(n_, c_, h_, w_)
        return yn * gamma.reshape(1, c_, 1, 1) + beta.reshape(1, c_, 1, 1)

    def conv3(y, w9, b):
        w = jnp.transpose(w9.reshape(3, 3, C, C), (3, 2, 0, 1))   # OIHW
        o = lax.conv_general_dilated(y, w, (1, 1), 'SAME',
                                     dimension_numbers=('NCHW', 'OIHW', 'NCHW'),
                                     precision=lax.Precision.HIGHEST)
        return o + b.reshape(1, C, 1, 1)

    silu = jax.nn.silu
    hp = lax.Precision.HIGHEST
    h = conv3(silu(gn(x, gn1_g, gn1_b)), w1, b1)
    eo = jnp.dot(silu(emb), we, precision=hp) + be
    scale_e, shift_e = eo[:, :C], eo[:, C:]
    t2 = jnp.dot(silu(jnp.dot(tab, wt1, precision=hp) + bt1), wt2, precision=hp) + bt2
    hh = gn(h, gn2_g, gn2_b)
    hh = hh * (1.0 + scale_e[:, :, None, None]) + shift_e[:, :, None, None]
    hh = hh * (1.0 + cond[:, :, None, None])
    hh = hh * (1.0 + t2[:, :, None, None])
    hh = silu(hh)
    hh = conv3(hh, w2, b2)
    return x + hh


if __name__ == "__main__":
    key = jax.random.PRNGKey(0)
    ks = jax.random.split(key, 16)

    # ---- deterministic parameter init (shapes from ResBlock.__init__) ----
    gn1_g = jnp.ones((1, C), jnp.float32)      # GroupNorm32 affine (ones/zeros)
    gn1_b = jnp.zeros((1, C), jnp.float32)
    w1 = 0.05 * jax.random.normal(ks[0], (9, C, C), jnp.float32)   # conv_nd(C, C, 3)
    b1 = 0.02 * jax.random.normal(ks[1], (1, C), jnp.float32)
    we = 0.05 * jax.random.normal(ks[2], (E, 2 * C), jnp.float32)  # linear(E, 2C)
    be = 0.02 * jax.random.normal(ks[3], (1, 2 * C), jnp.float32)
    wt1 = 0.10 * jax.random.normal(ks[4], (T, CD), jnp.float32)    # linear(9, cond_dim)
    bt1 = 0.02 * jax.random.normal(ks[5], (1, CD), jnp.float32)
    wt2 = 0.10 * jax.random.normal(ks[6], (CD, C), jnp.float32)    # linear(cond_dim, C)
    bt2 = 0.02 * jax.random.normal(ks[7], (1, C), jnp.float32)
    gn2_g = jnp.ones((1, C), jnp.float32)
    gn2_b = jnp.zeros((1, C), jnp.float32)
    # NOTE: reference uses zero_module() here; small nonzero values used instead.
    w2 = 0.05 * jax.random.normal(ks[8], (9, C, C), jnp.float32)
    b2 = 0.02 * jax.random.normal(ks[9], (1, C), jnp.float32)
    params = (gn1_g, gn1_b, w1, b1, we, be, wt1, bt1, wt2, bt2,
              gn2_g, gn2_b, w2, b2)

    # one-time packing (module init) — NOT part of the per-call forward
    packed = jax.block_until_ready(pack_params(params))

    # ---- deterministic inputs ----
    x = jax.random.normal(ks[10], (N, C, H, W), jnp.float32)       # NCHW
    emb = jax.random.normal(ks[11], (N, E), jnp.float32)
    cond = 0.1 * jax.random.normal(ks[12], (N, C), jnp.float32)
    tab = jax.random.normal(ks[13], (N, T), jnp.float32)

    # boundary layout conversion (done once at network edges)
    x_p = to_packed(x)
    emb_p = emb.reshape(1, N * E)
    tab_p = tab.reshape(1, N * T)
    cond_p = cond.reshape(1, NC)

    out_p = resblock_forward_packed(x_p, emb_p, tab_p, cond_p, packed)
    out_p = jax.block_until_ready(out_p)
    out = from_packed(out_p)

    ref = jax.block_until_ready(ref_forward(x, emb, cond, tab, params))
    assert out.shape == (N, C, H, W)
    assert bool(jnp.all(jnp.isfinite(out)))
    assert bool(jnp.allclose(out, ref, atol=2e-2, rtol=2e-2)), (
        float(jnp.max(jnp.abs(out - ref))))

    print("KERNEL_OK")
</pallas_src>

<mosaic_0001>
module attributes {stable_mosaic.version = 11 : i64} {
  func.func @resblock_kernel(%arg0: i32, %arg1: memref<256x128xf32, #tpu.memory_space<vmem>>, %arg2: memref<1x64xf32, #tpu.memory_space<vmem>>, %arg3: memref<1x18xf32, #tpu.memory_space<vmem>>, %arg4: memref<1x128xf32, #tpu.memory_space<vmem>>, %arg5: memref<7x128xf32, #tpu.memory_space<vmem>>, %arg6: memref<1x256xf32, #tpu.memory_space<vmem>>, %arg7: memref<1x32xf32, #tpu.memory_space<vmem>>, %arg8: memref<64x256xf32, #tpu.memory_space<vmem>>, %arg9: memref<18x32xf32, #tpu.memory_space<vmem>>, %arg10: memref<32x128xf32, #tpu.memory_space<vmem>>, %arg11: memref<2x1152x128xbf16, #tpu.memory_space<vmem>>, %arg12: memref<256x128xf32, #tpu.memory_space<vmem>>, %arg13: memref<320x128xf32, #tpu.memory_space<vmem>>) attributes {dimension_semantics = [#tpu.dimension_semantics<arbitrary>], iteration_bounds = array<i64: 1>, scalar_prefetch = 0 : i64, scratch_operands = 1 : i64, tpu.core_type = #tpu.core_type<tc>, window_params = [{pipeline_mode = #tpu.pipeline_mode<synchronous>, transform_indices = @transform_0, window_bounds = array<i64: 256, 128>}, {pipeline_mode = #tpu.pipeline_mode<synchronous>, transform_indices = @transform_1, window_bounds = array<i64: 1, 64>}, {pipeline_mode = #tpu.pipeline_mode<synchronous>, transform_indices = @transform_2, window_bounds = array<i64: 1, 18>}, {pipeline_mode = #tpu.pipeline_mode<synchronous>, transform_indices = @transform_3, window_bounds = array<i64: 1, 128>}, {pipeline_mode = #tpu.pipeline_mode<synchronous>, transform_indices = @transform_4, window_bounds = array<i64: 7, 128>}, {pipeline_mode = #tpu.pipeline_mode<synchronous>, transform_indices = @transform_5, window_bounds = array<i64: 1, 256>}, {pipeline_mode = #tpu.pipeline_mode<synchronous>, transform_indices = @transform_6, window_bounds = array<i64: 1, 32>}, {pipeline_mode = #tpu.pipeline_mode<synchronous>, transform_indices = @transform_7, window_bounds = array<i64: 64, 256>}, {pipeline_mode = #tpu.pipeline_mode<synchronous>, transform_indices = @transform_8, window_bounds = array<i64: 18, 32>}, {pipeline_mode = #tpu.pipeline_mode<synchronous>, transform_indices = @transform_9, window_bounds = array<i64: 32, 128>}, {pipeline_mode = #tpu.pipeline_mode<synchronous>, transform_indices = @transform_10, window_bounds = array<i64: 2, 1152, 128>}, {pipeline_mode = #tpu.pipeline_mode<synchronous>, transform_indices = @transform_11, window_bounds = array<i64: 256, 128>}]} {
    %c0 = arith.constant 0 : index
    %c0_0 = arith.constant 0 : index
    %0 = vector.load %arg1[%c0, %c0_0] : memref<256x128xf32, #tpu.memory_space<vmem>>, vector<256x128xf32>
    %1 = tpu.iota {dimensions = array<i32: 0>} : vector<256x128xi32>
    %c16_i32 = arith.constant 16 : i32
    %c0_i32 = arith.constant 0 : i32
    %2 = arith.cmpi eq, %c16_i32, %c0_i32 : i32
    %c1_i32 = arith.constant 1 : i32
    %3 = arith.select %2, %c1_i32, %c16_i32 : i32
    %4 = vector.broadcast %3 : i32 to vector<256x128xi32>
    %5 = arith.remsi %1, %4 : vector<256x128xi32>
    %c0_i32_1 = arith.constant 0 : i32
    %6 = vector.broadcast %c0_i32_1 : i32 to vector<256x128xi32>
    %7 = arith.cmpi ne, %5, %6 : vector<256x128xi32>
    %c0_i32_2 = arith.constant 0 : i32
    %8 = vector.broadcast %c0_i32_2 : i32 to vector<256x128xi32>
    %9 = arith.cmpi slt, %5, %8 : vector<256x128xi32>
    %c0_i32_3 = arith.constant 0 : i32
    %10 = arith.cmpi slt, %3, %c0_i32_3 : i32
    %11 = vector.broadcast %10 : i1 to vector<256x128xi1>
    %12 = vector.broadcast %11 : vector<256x128xi1> to vector<256x128xi1>
    %13 = arith.xori %9, %12 : vector<256x128xi1>
    %14 = arith.andi %13, %7 : vector<256x128xi1>
    %15 = vector.broadcast %3 : i32 to vector<256x128xi32>
    %16 = arith.addi %5, %15 : vector<256x128xi32>
    %17 = arith.select %14, %16, %5 : vector<256x128xi1>, vector<256x128xi32>
    %c1_i32_4 = arith.constant 1 : i32
    %18 = vector.broadcast %c1_i32_4 : i32 to vector<256x128xi32>
    %19 = arith.cmpi sge, %17, %18 : vector<256x128xi32>
    %c15_i32 = arith.constant 15 : i32
    %20 = vector.broadcast %c15_i32 : i32 to vector<256x128xi32>
    %21 = arith.cmpi slt, %17, %20 : vector<256x128xi32>
    %22 = tpu.iota {dimensions = array<i32: 1>} : vector<1x128xi32>
    %c2_i32 = arith.constant 2 : i32
    %c0_i32_5 = arith.constant 0 : i32
    %23 = arith.cmpi eq, %c2_i32, %c0_i32_5 : i32
    %c1_i32_6 = arith.constant 1 : i32
    %24 = arith.select %23, %c1_i32_6, %c2_i32 : i32
    %25 = vector.broadcast %24 : i32 to vector<1x128xi32>
    %26 = arith.remsi %22, %25 : vector<1x128xi32>
    %c0_i32_7 = arith.constant 0 : i32
    %27 = vector.broadcast %c0_i32_7 : i32 to vector<1x128xi32>
    %28 = arith.cmpi ne, %26, %27 : vector<1x128xi32>
    %c0_i32_8 = arith.constant 0 : i32
    %29 = vector.broadcast %c0_i32_8 : i32 to vector<1x128xi32>
    %30 = arith.cmpi slt, %26, %29 : vector<1x128xi32>
    %c0_i32_9 = arith.constant 0 : i32
    %31 = arith.cmpi slt, %24, %c0_i32_9 : i32
    %32 = vector.broadcast %31 : i1 to vector<1x128xi1>
    %33 = vector.broadcast %32 : vector<1x128xi1> to vector<1x128xi1>
    %34 = arith.xori %30, %33 : vector<1x128xi1>
    %35 = arith.andi %34, %28 : vector<1x128xi1>
    %36 = vector.broadcast %24 : i32 to vector<1x128xi32>
    %37 = arith.addi %26, %36 : vector<1x128xi32>
    %38 = arith.select %35, %37, %26 : vector<1x128xi1>, vector<1x128xi32>
    %c0_i32_10 = arith.constant 0 : i32
    %39 = vector.broadcast %c0_i32_10 : i32 to vector<1x128xi32>
    %40 = arith.cmpi eq, %38, %39 : vector<1x128xi32>
    %cst = arith.constant 0.000000e+00 : f32
    %41 = vector.broadcast %cst : f32 to vector<32x128xf32>
    %c0_11 = arith.constant 0 : index
    %c0_12 = arith.constant 0 : index
    %42 = vector.load %arg13[%c0_11, %c0_12] : memref<320x128xf32, #tpu.memory_space<vmem>>, vector<32x128xf32>
    tpu.vector_store %arg13[%c0_11, %c0_12], %41 {strides = array<i32>} : memref<320x128xf32, #tpu.memory_space<vmem>>, vector<32x128xf32>,
    %c288 = arith.constant 288 : index
    %c0_13 = arith.constant 0 : index
    %43 = vector.load %arg13[%c288, %c0_13] : memref<320x128xf32, #tpu.memory_space<vmem>>, vector<32x128xf32>
    tpu.vector_store %arg13[%c288, %c0_13], %41 {strides = array<i32>} : memref<320x128xf32, #tpu.memory_space<vmem>>, vector<32x128xf32>,
    %c0_14 = arith.constant 0 : index
    %c0_15 = arith.constant 0 : index
    %44 = vector.load %arg5[%c0_14, %c0_15] : memref<7x128xf32, #tpu.memory_space<vmem>>, vector<1x128xf32>
    %c1 = arith.constant 1 : index
    %c0_16 = arith.constant 0 : index
    %45 = vector.load %arg5[%c1, %c0_16] : memref<7x128xf32, #tpu.memory_space<vmem>>, vector<1x128xf32>
    %c2 = arith.constant 2 : index
    %c0_17 = arith.constant 0 : index
    %46 = vector.load %arg5[%c2, %c0_17] : memref<7x128xf32, #tpu.memory_space<vmem>>, vector<1x128xf32>
    %c3 = arith.constant 3 : index
    %c0_18 = arith.constant 0 : index
    %47 = vector.load %arg5[%c3, %c0_18] : memref<7x128xf32, #tpu.memory_space<vmem>>, vector<1x128xf32>
    %c4 = arith.constant 4 : index
    %c0_19 = arith.constant 0 : index
    %48 = vector.load %arg5[%c4, %c0_19] : memref<7x128xf32, #tpu.memory_space<vmem>>, vector<1x128xf32>
    %c5 = arith.constant 5 : index
    %c0_20 = arith.constant 0 : index
    %49 = vector.load %arg5[%c5, %c0_20] : memref<7x128xf32, #tpu.memory_space<vmem>>, vector<1x128xf32>
    %c6 = arith.constant 6 : index
    %c0_21 = arith.constant 0 : index
    %50 = vector.load %arg5[%c6, %c0_21] : memref<7x128xf32, #tpu.memory_space<vmem>>, vector<1x128xf32>
    %cst_22 = arith.constant dense<0.000000e+00> : vector<128xf32>
    %51 = vector.multi_reduction <add>, %0, %cst_22 [0] : vector<256x128xf32> to vector<128xf32>
    %52 = vector.shape_cast %51 : vector<128xf32> to vector<1x128xf32>
    %53 = arith.mulf %0, %0 : vector<256x128xf32>
    %cst_23 = arith.constant dense<0.000000e+00> : vector<128xf32>
    %54 = vector.multi_reduction <add>, %53, %cst_23 [0] : vector<256x128xf32> to vector<128xf32>
    %55 = vector.shape_cast %54 : vector<128xf32> to vector<1x128xf32>
    %c127_i32 = arith.constant 127 : i32
    %56 = tpu.dynamic_rotate %52 by %c127_i32 dim 1 : vector<1x128xf32>, i32 -> vector<1x128xf32>
    %c1_i32_24 = arith.constant 1 : i32
    %57 = tpu.dynamic_rotate %52 by %c1_i32_24 dim 1 : vector<1x128xf32>, i32 -> vector<1x128xf32>
    %58 = arith.select %40, %56, %57 : vector<1x128xi1>, vector<1x128xf32>
    %59 = arith.addf %52, %58 : vector<1x128xf32>
    %cst_25 = arith.constant 5.120000e+02 : f32
    %60 = vector.broadcast %cst_25 : f32 to vector<1x128xf32>
    %61 = arith.divf %59, %60 : vector<1x128xf32>
    %c127_i32_26 = arith.constant 127 : i32
    %62 = tpu.dynamic_rotate %55 by %c127_i32_26 dim 1 : vector<1x128xf32>, i32 -> vector<1x128xf32>
    %c1_i32_27 = arith.constant 1 : i32
    %63 = tpu.dynamic_rotate %55 by %c1_i32_27 dim 1 : vector<1x128xf32>, i32 -> vector<1x128xf32>
    %64 = arith.select %40, %62, %63 : vector<1x128xi1>, vector<1x128xf32>
    %65 = arith.addf %55, %64 : vector<1x128xf32>
    %cst_28 = arith.constant 5.120000e+02 : f32
    %66 = vector.broadcast %cst_28 : f32 to vector<1x128xf32>
    %67 = arith.divf %65, %66 : vector<1x128xf32>
    %68 = arith.mulf %61, %61 : vector<1x128xf32>
    %69 = arith.subf %67, %68 : vector<1x128xf32>
    %cst_29 = arith.constant 0.000000e+00 : f32
    %70 = vector.broadcast %cst_29 : f32 to vector<1x128xf32>
    %71 = arith.maximumf %69, %70 : vector<1x128xf32>
    %cst_30 = arith.constant 9.99999974E-6 : f32
    %72 = vector.broadcast %cst_30 : f32 to vector<1x128xf32>
    %73 = arith.addf %71, %72 : vector<1x128xf32>
    %74 = math.rsqrt %73 : vector<1x128xf32>
    %75 = vector.broadcast %61 : vector<1x128xf32> to vector<256x128xf32>
    %76 = arith.subf %0, %75 : vector<256x128xf32>
    %77 = vector.broadcast %74 : vector<1x128xf32> to vector<256x128xf32>
    %78 = arith.mulf %76, %77 : vector<256x128xf32>
    %79 = vector.broadcast %44 : vector<1x128xf32> to vector<256x128xf32>
    %80 = arith.mulf %78, %79 : vector<256x128xf32>
    %81 = vector.broadcast %45 : vector<1x128xf32> to vector<256x128xf32>
    %82 = arith.addf %80, %81 : vector<256x128xf32>
    %83 = arith.negf %82 : vector<256x128xf32>
    %84 = math.exp %83 : vector<256x128xf32>
    %cst_31 = arith.constant 1.000000e+00 : f32
    %85 = vector.broadcast %cst_31 : f32 to vector<256x128xf32>
    %86 = arith.addf %85, %84 : vector<256x128xf32>
    %87 = arith.divf %85, %86 : vector<256x128xf32>
    %88 = arith.mulf %82, %87 : vector<256x128xf32>
    %c0_32 = arith.constant 0 : index
    %c0_33 = arith.constant 0 : index
    %c0_34 = arith.constant 0 : index
    %89 = vector.load %arg11[%c0_32, %c0_33, %c0_34] : memref<2x1152x128xbf16, #tpu.memory_space<vmem>>, vector<1x1152x128xbf16>
    %90 = vector.shape_cast %89 : vector<1x1152x128xbf16> to vector<1152x128xbf16>
    %c32 = arith.constant 32 : index
    %c0_35 = arith.constant 0 : index
    %91 = vector.load %arg13[%c32, %c0_35] : memref<320x128xf32, #tpu.memory_space<vmem>>, vector<256x128xf32>
    tpu.vector_store %arg13[%c32, %c0_35], %88 {strides = array<i32>} : memref<320x128xf32, #tpu.memory_space<vmem>>, vector<256x128xf32>,
    %c15 = arith.constant 15 : index
    %c0_36 = arith.constant 0 : index
    %92 = vector.load %arg13[%c15, %c0_36] : memref<320x128xf32, #tpu.memory_space<vmem>>, vector<256x128xf32>
    %cst_37 = arith.constant 0.000000e+00 : f32
    %93 = vector.broadcast %cst_37 : f32 to vector<256x128xf32>
    %94 = arith.select %19, %92, %93 : vector<256x128xi1>, vector<256x128xf32>
    %95 = arith.truncf %94 : vector<256x128xf32> to vector<256x128xbf16>
    %c16 = arith.constant 16 : index
    %c0_38 = arith.constant 0 : index
    %96 = vector.load %arg13[%c16, %c0_38] : memref<320x128xf32, #tpu.memory_space<vmem>>, vector<256x128xf32>
    %97 = arith.truncf %96 : vector<256x128xf32> to vector<256x128xbf16>
    %c17 = arith.constant 17 : index
    %c0_39 = arith.constant 0 : index
    %98 = vector.load %arg13[%c17, %c0_39] : memref<320x128xf32, #tpu.memory_space<vmem>>, vector<256x128xf32>
    %cst_40 = arith.constant 0.000000e+00 : f32
    %99 = vector.broadcast %cst_40 : f32 to vector<256x128xf32>
    %100 = arith.select %21, %98, %99 : vector<256x128xi1>, vector<256x128xf32>
    %101 = arith.truncf %100 : vector<256x128xf32> to vector<256x128xbf16>
    %c31 = arith.constant 31 : index
    %c0_41 = arith.constant 0 : index
    %102 = vector.load %arg13[%c31, %c0_41] : memref<320x128xf32, #tpu.memory_space<vmem>>, vector<256x128xf32>
    %cst_42 = arith.constant 0.000000e+00 : f32
    %103 = vector.broadcast %cst_42 : f32 to vector<256x128xf32>
    %104 = arith.select %19, %102, %103 : vector<256x128xi1>, vector<256x128xf32>
    %105 = arith.truncf %104 : vector<256x128xf32> to vector<256x128xbf16>
    %106 = arith.truncf %88 : vector<256x128xf32> to vector<256x128xbf16>
    %c33 = arith.constant 33 : index
    %c0_43 = arith.constant 0 : index
    %107 = vector.load %arg13[%c33, %c0_43] : memref<320x128xf32, #tpu.memory_space<vmem>>, vector<256x128xf32>
    %cst_44 = arith.constant 0.000000e+00 : f32
    %108 = vector.broadcast %cst_44 : f32 to vector<256x128xf32>
    %109 = arith.select %21, %107, %108 : vector<256x128xi1>, vector<256x128xf32>
    %110 = arith.truncf %109 : vector<256x128xf32> to vector<256x128xbf16>
    %c47 = arith.constant 47 : index
    %c0_45 = arith.constant 0 : index
    %111 = vector.load %arg13[%c47, %c0_45] : memref<320x128xf32, #tpu.memory_space<vmem>>, vector<256x128xf32>
    %cst_46 = arith.constant 0.000000e+00 : f32
    %112 = vector.broadcast %cst_46 : f32 to vector<256x128xf32>
    %113 = arith.select %19, %111, %112 : vector<256x128xi1>, vector<256x128xf32>
    %114 = arith.truncf %113 : vector<256x128xf32> to vector<256x128xbf16>
    %c48 = arith.constant 48 : index
    %c0_47 = arith.constant 0 : index
    %115 = vector.load %arg13[%c48, %c0_47] : memref<320x128xf32, #tpu.memory_space<vmem>>, vector<256x128xf32>
    %116 = arith.truncf %115 : vector<256x128xf32> to vector<256x128xbf16>
    %c49 = arith.constant 49 : index
    %c0_48 = arith.constant 0 : index
    %117 = vector.load %arg13[%c49, %c0_48] : memref<320x128xf32, #tpu.memory_space<vmem>>, vector<256x128xf32>
    %cst_49 = arith.constant 0.000000e+00 : f32
    %118 = vector.broadcast %cst_49 : f32 to vector<256x128xf32>
    %119 = arith.select %21, %117, %118 : vector<256x128xi1>, vector<256x128xf32>
    %120 = arith.truncf %119 : vector<256x128xf32> to vector<256x128xbf16>
    %121 = tpu.concatenate %95, %97, %101, %105, %106, %110, %114, %116, %120 in 1 : vector<256x128xbf16>, vector<256x128xbf16>, vector<256x128xbf16>, vector<256x128xbf16>, vector<256x128xbf16>, vector<256x128xbf16>, vector<256x128xbf16>, vector<256x128xbf16>, vector<256x128xbf16> -> vector<256x1152xbf16>
    %cst_50 = arith.constant dense<0.000000e+00> : vector<256x128xf32>
    %122 = tpu.matmul %121, %90, %cst_50 {dimension_numbers = #tpu.dot_dimension_numbers<[1], [0], [0], [1], [0, 0, 1, 1], [], []>} : vector<256x1152xbf16>, vector<1152x128xbf16>, vector<256x128xf32> -> vector<256x128xf32>
    %123 = vector.broadcast %46 : vector<1x128xf32> to vector<256x128xf32>
    %124 = arith.addf %122, %123 : vector<256x128xf32>
    %c0_51 = arith.constant 0 : index
    %c0_52 = arith.constant 0 : index
    %125 = vector.load %arg2[%c0_51, %c0_52] : memref<1x64xf32, #tpu.memory_space<vmem>>, vector<1x64xf32>
    %126 = arith.negf %125 : vector<1x64xf32>
    %127 = math.exp %126 : vector<1x64xf32>
    %cst_53 = arith.constant 1.000000e+00 : f32
    %128 = vector.broadcast %cst_53 : f32 to vector<1x64xf32>
    %129 = arith.addf %128, %127 : vector<1x64xf32>
    %130 = arith.divf %128, %129 : vector<1x64xf32>
    %131 = arith.mulf %125, %130 : vector<1x64xf32>
    %c0_54 = arith.constant 0 : index
    %c0_55 = arith.constant 0 : index
    %132 = vector.load %arg8[%c0_54, %c0_55] : memref<64x256xf32, #tpu.memory_space<vmem>>, vector<64x256xf32>
    %cst_56 = arith.constant dense<0.000000e+00> : vector<1x256xf32>
    %133 = tpu.matmul %131, %132, %cst_56 {dimension_numbers = #tpu.dot_dimension_numbers<[1], [0], [0], [1], [0, 0, 1, 1], [], []>} : vector<1x64xf32>, vector<64x256xf32>, vector<1x256xf32> -> vector<1x256xf32>
    %c0_57 = arith.constant 0 : index
    %c0_58 = arith.constant 0 : index
    %134 = vector.load %arg6[%c0_57, %c0_58] : memref<1x256xf32, #tpu.memory_space<vmem>>, vector<1x256xf32>
    %135 = arith.addf %133, %134 : vector<1x256xf32>
    %136 = vector.extract_strided_slice %135 {offsets = [0, 0], sizes = [1, 128], strides = [1, 1]} : vector<1x256xf32> to vector<1x128xf32>
    %137 = vector.extract_strided_slice %135 {offsets = [0, 128], sizes = [1, 128], strides = [1, 1]} : vector<1x256xf32> to vector<1x128xf32>
    %c0_59 = arith.constant 0 : index
    %c0_60 = arith.constant 0 : index
    %138 = vector.load %arg3[%c0_59, %c0_60] : memref<1x18xf32, #tpu.memory_space<vmem>>, vector<1x18xf32>
    %c0_61 = arith.constant 0 : index
    %c0_62 = arith.constant 0 : index
    %139 = vector.load %arg9[%c0_61, %c0_62] : memref<18x32xf32, #tpu.memory_space<vmem>>, vector<18x32xf32>
    %cst_63 = arith.constant dense<0.000000e+00> : vector<1x32xf32>
    %140 = tpu.matmul %138, %139, %cst_63 {dimension_numbers = #tpu.dot_dimension_numbers<[1], [0], [0], [1], [0, 0, 1, 1], [], []>} : vector<1x18xf32>, vector<18x32xf32>, vector<1x32xf32> -> vector<1x32xf32>
    %c0_64 = arith.constant 0 : index
    %c0_65 = arith.constant 0 : index
    %141 = vector.load %arg7[%c0_64, %c0_65] : memref<1x32xf32, #tpu.memory_space<vmem>>, vector<1x32xf32>
    %142 = arith.addf %140, %141 : vector<1x32xf32>
    %143 = arith.negf %142 : vector<1x32xf32>
    %144 = math.exp %143 : vector<1x32xf32>
    %cst_66 = arith.constant 1.000000e+00 : f32
    %145 = vector.broadcast %cst_66 : f32 to vector<1x32xf32>
    %146 = arith.addf %145, %144 : vector<1x32xf32>
    %147 = arith.divf %145, %146 : vector<1x32xf32>
    %148 = arith.mulf %142, %147 : vector<1x32xf32>
    %c0_67 = arith.constant 0 : index
    %c0_68 = arith.constant 0 : index
    %149 = vector.load %arg10[%c0_67, %c0_68] : memref<32x128xf32, #tpu.memory_space<vmem>>, vector<32x128xf32>
    %cst_69 = arith.constant dense<0.000000e+00> : vector<1x128xf32>
    %150 = tpu.matmul %148, %149, %cst_69 {dimension_numbers = #tpu.dot_dimension_numbers<[1], [0], [0], [1], [0, 0, 1, 1], [], []>} : vector<1x32xf32>, vector<32x128xf32>, vector<1x128xf32> -> vector<1x128xf32>
    %151 = arith.addf %150, %47 : vector<1x128xf32>
    %c0_70 = arith.constant 0 : index
    %c0_71 = arith.constant 0 : index
    %152 = vector.load %arg4[%c0_70, %c0_71] : memref<1x128xf32, #tpu.memory_space<vmem>>, vector<1x128xf32>
    %cst_72 = arith.constant dense<0.000000e+00> : vector<128xf32>
    %153 = vector.multi_reduction <add>, %124, %cst_72 [0] : vector<256x128xf32> to vector<128xf32>
    %154 = vector.shape_cast %153 : vector<128xf32> to vector<1x128xf32>
    %155 = arith.mulf %124, %124 : vector<256x128xf32>
    %cst_73 = arith.constant dense<0.000000e+00> : vector<128xf32>
    %156 = vector.multi_reduction <add>, %155, %cst_73 [0] : vector<256x128xf32> to vector<128xf32>
    %157 = vector.shape_cast %156 : vector<128xf32> to vector<1x128xf32>
    %c127_i32_74 = arith.constant 127 : i32
    %158 = tpu.dynamic_rotate %154 by %c127_i32_74 dim 1 : vector<1x128xf32>, i32 -> vector<1x128xf32>
    %c1_i32_75 = arith.constant 1 : i32
    %159 = tpu.dynamic_rotate %154 by %c1_i32_75 dim 1 : vector<1x128xf32>, i32 -> vector<1x128xf32>
    %160 = arith.select %40, %158, %159 : vector<1x128xi1>, vector<1x128xf32>
    %161 = arith.addf %154, %160 : vector<1x128xf32>
    %cst_76 = arith.constant 5.120000e+02 : f32
    %162 = vector.broadcast %cst_76 : f32 to vector<1x128xf32>
    %163 = arith.divf %161, %162 : vector<1x128xf32>
    %c127_i32_77 = arith.constant 127 : i32
    %164 = tpu.dynamic_rotate %157 by %c127_i32_77 dim 1 : vector<1x128xf32>, i32 -> vector<1x128xf32>
    %c1_i32_78 = arith.constant 1 : i32
    %165 = tpu.dynamic_rotate %157 by %c1_i32_78 dim 1 : vector<1x128xf32>, i32 -> vector<1x128xf32>
    %166 = arith.select %40, %164, %165 : vector<1x128xi1>, vector<1x128xf32>
    %167 = arith.addf %157, %166 : vector<1x128xf32>
    %cst_79 = arith.constant 5.120000e+02 : f32
    %168 = vector.broadcast %cst_79 : f32 to vector<1x128xf32>
    %169 = arith.divf %167, %168 : vector<1x128xf32>
    %170 = arith.mulf %163, %163 : vector<1x128xf32>
    %171 = arith.subf %169, %170 : vector<1x128xf32>
    %cst_80 = arith.constant 0.000000e+00 : f32
    %172 = vector.broadcast %cst_80 : f32 to vector<1x128xf32>
    %173 = arith.maximumf %171, %172 : vector<1x128xf32>
    %cst_81 = arith.constant 9.99999974E-6 : f32
    %174 = vector.broadcast %cst_81 : f32 to vector<1x128xf32>
    %175 = arith.addf %173, %174 : vector<1x128xf32>
    %176 = math.rsqrt %175 : vector<1x128xf32>
    %177 = vector.broadcast %163 : vector<1x128xf32> to vector<256x128xf32>
    %178 = arith.subf %124, %177 : vector<256x128xf32>
    %179 = vector.broadcast %176 : vector<1x128xf32> to vector<256x128xf32>
    %180 = arith.mulf %178, %179 : vector<256x128xf32>
    %181 = vector.broadcast %48 : vector<1x128xf32> to vector<256x128xf32>
    %182 = arith.mulf %180, %181 : vector<256x128xf32>
    %183 = vector.broadcast %49 : vector<1x128xf32> to vector<256x128xf32>
    %184 = arith.addf %182, %183 : vector<256x128xf32>
    %cst_82 = arith.constant 1.000000e+00 : f32
    %185 = vector.broadcast %cst_82 : f32 to vector<1x128xf32>
    %186 = arith.addf %185, %136 : vector<1x128xf32>
    %187 = vector.broadcast %186 : vector<1x128xf32> to vector<256x128xf32>
    %188 = arith.mulf %184, %187 : vector<256x128xf32>
    %189 = vector.broadcast %137 : vector<1x128xf32> to vector<256x128xf32>
    %190 = arith.addf %188, %189 : vector<256x128xf32>
    %cst_83 = arith.constant 1.000000e+00 : f32
    %191 = vector.broadcast %cst_83 : f32 to vector<1x128xf32>
    %192 = arith.addf %191, %152 : vector<1x128xf32>
    %193 = vector.broadcast %192 : vector<1x128xf32> to vector<256x128xf32>
    %194 = arith.mulf %190, %193 : vector<256x128xf32>
    %cst_84 = arith.constant 1.000000e+00 : f32
    %195 = vector.broadcast %cst_84 : f32 to vector<1x128xf32>
    %196 = arith.addf %195, %151 : vector<1x128xf32>
    %197 = vector.broadcast %196 : vector<1x128xf32> to vector<256x128xf32>
    %198 = arith.mulf %194, %197 : vector<256x128xf32>
    %199 = arith.negf %198 : vector<256x128xf32>
    %200 = math.exp %199 : vector<256x128xf32>
    %cst_85 = arith.constant 1.000000e+00 : f32
    %201 = vector.broadcast %cst_85 : f32 to vector<256x128xf32>
    %202 = arith.addf %201, %200 : vector<256x128xf32>
    %203 = arith.divf %201, %202 : vector<256x128xf32>
    %204 = arith.mulf %198, %203 : vector<256x128xf32>
    %c1_86 = arith.constant 1 : index
    %c0_87 = arith.constant 0 : index
    %c0_88 = arith.constant 0 : index
    %205 = vector.load %arg11[%c1_86, %c0_87, %c0_88] : memref<2x1152x128xbf16, #tpu.memory_space<vmem>>, vector<1x1152x128xbf16>
    %206 = vector.shape_cast %205 : vector<1x1152x128xbf16> to vector<1152x128xbf16>
    %c32_89 = arith.constant 32 : index
    %c0_90 = arith.constant 0 : index
    %207 = vector.load %arg13[%c32_89, %c0_90] : memref<320x128xf32, #tpu.memory_space<vmem>>, vector<256x128xf32>
    tpu.vector_store %arg13[%c32_89, %c0_90], %204 {strides = array<i32>} : memref<320x128xf32, #tpu.memory_space<vmem>>, vector<256x128xf32>,
    %c15_91 = arith.constant 15 : index
    %c0_92 = arith.constant 0 : index
    %208 = vector.load %arg13[%c15_91, %c0_92] : memref<320x128xf32, #tpu.memory_space<vmem>>, vector<256x128xf32>
    %cst_93 = arith.constant 0.000000e+00 : f32
    %209 = vector.broadcast %cst_93 : f32 to vector<256x128xf32>
    %210 = arith.select %19, %208, %209 : vector<256x128xi1>, vector<256x128xf32>
    %211 = arith.truncf %210 : vector<256x128xf32> to vector<256x128xbf16>
    %c16_94 = arith.constant 16 : index
    %c0_95 = arith.constant 0 : index
    %212 = vector.load %arg13[%c16_94, %c0_95] : memref<320x128xf32, #tpu.memory_space<vmem>>, vector<256x128xf32>
    %213 = arith.truncf %212 : vector<256x128xf32> to vector<256x128xbf16>
    %c17_96 = arith.constant 17 : index
    %c0_97 = arith.constant 0 : index
    %214 = vector.load %arg13[%c17_96, %c0_97] : memref<320x128xf32, #tpu.memory_space<vmem>>, vector<256x128xf32>
    %cst_98 = arith.constant 0.000000e+00 : f32
    %215 = vector.broadcast %cst_98 : f32 to vector<256x128xf32>
    %216 = arith.select %21, %214, %215 : vector<256x128xi1>, vector<256x128xf32>
    %217 = arith.truncf %216 : vector<256x128xf32> to vector<256x128xbf16>
    %c31_99 = arith.constant 31 : index
    %c0_100 = arith.constant 0 : index
    %218 = vector.load %arg13[%c31_99, %c0_100] : memref<320x128xf32, #tpu.memory_space<vmem>>, vector<256x128xf32>
    %cst_101 = arith.constant 0.000000e+00 : f32
    %219 = vector.broadcast %cst_101 : f32 to vector<256x128xf32>
    %220 = arith.select %19, %218, %219 : vector<256x128xi1>, vector<256x128xf32>
    %221 = arith.truncf %220 : vector<256x128xf32> to vector<256x128xbf16>
    %222 = arith.truncf %204 : vector<256x128xf32> to vector<256x128xbf16>
    %c33_102 = arith.constant 33 : index
    %c0_103 = arith.constant 0 : index
    %223 = vector.load %arg13[%c33_102, %c0_103] : memref<320x128xf32, #tpu.memory_space<vmem>>, vector<256x128xf32>
    %cst_104 = arith.constant 0.000000e+00 : f32
    %224 = vector.broadcast %cst_104 : f32 to vector<256x128xf32>
    %225 = arith.select %21, %223, %224 : vector<256x128xi1>, vector<256x128xf32>
    %226 = arith.truncf %225 : vector<256x128xf32> to vector<256x128xbf16>
    %c47_105 = arith.constant 47 : index
    %c0_106 = arith.constant 0 : index
    %227 = vector.load %arg13[%c47_105, %c0_106] : memref<320x128xf32, #tpu.memory_space<vmem>>, vector<256x128xf32>
    %cst_107 = arith.constant 0.000000e+00 : f32
    %228 = vector.broadcast %cst_107 : f32 to vector<256x128xf32>
    %229 = arith.select %19, %227, %228 : vector<256x128xi1>, vector<256x128xf32>
    %230 = arith.truncf %229 : vector<256x128xf32> to vector<256x128xbf16>
    %c48_108 = arith.constant 48 : index
    %c0_109 = arith.constant 0 : index
    %231 = vector.load %arg13[%c48_108, %c0_109] : memref<320x128xf32, #tpu.memory_space<vmem>>, vector<256x128xf32>
    %232 = arith.truncf %231 : vector<256x128xf32> to vector<256x128xbf16>
    %c49_110 = arith.constant 49 : index
    %c0_111 = arith.constant 0 : index
    %233 = vector.load %arg13[%c49_110, %c0_111] : memref<320x128xf32, #tpu.memory_space<vmem>>, vector<256x128xf32>
    %cst_112 = arith.constant 0.000000e+00 : f32
    %234 = vector.broadcast %cst_112 : f32 to vector<256x128xf32>
    %235 = arith.select %21, %233, %234 : vector<256x128xi1>, vector<256x128xf32>
    %236 = arith.truncf %235 : vector<256x128xf32> to vector<256x128xbf16>
    %237 = tpu.concatenate %211, %213, %217, %221, %222, %226, %230, %232, %236 in 1 : vector<256x128xbf16>, vector<256x128xbf16>, vector<256x128xbf16>, vector<256x128xbf16>, vector<256x128xbf16>, vector<256x128xbf16>, vector<256x128xbf16>, vector<256x128xbf16>, vector<256x128xbf16> -> vector<256x1152xbf16>
    %cst_113 = arith.constant dense<0.000000e+00> : vector<256x128xf32>
    %238 = tpu.matmul %237, %206, %cst_113 {dimension_numbers = #tpu.dot_dimension_numbers<[1], [0], [0], [1], [0, 0, 1, 1], [], []>} : vector<256x1152xbf16>, vector<1152x128xbf16>, vector<256x128xf32> -> vector<256x128xf32>
    %239 = vector.broadcast %50 : vector<1x128xf32> to vector<256x128xf32>
    %240 = arith.addf %238, %239 : vector<256x128xf32>
    %241 = arith.addf %0, %240 : vector<256x128xf32>
    %c0_114 = arith.constant 0 : index
    %c0_115 = arith.constant 0 : index
    %242 = vector.load %arg12[%c0_114, %c0_115] : memref<256x128xf32, #tpu.memory_space<vmem>>, vector<256x128xf32>
    tpu.vector_store %arg12[%c0_114, %c0_115], %241 {strides = array<i32>} : memref<256x128xf32, #tpu.memory_space<vmem>>, vector<256x128xf32>,
    return
  }
  func.func @transform_0(%arg0: i32) -> (i32, i32) {
    %c0_i32 = arith.constant 0 : i32
    %c0_i32_0 = arith.constant 0 : i32
    %c0_i32_1 = arith.constant 0 : i32
    return %c0_i32, %c0_i32_0 : i32, i32
  }
  func.func @transform_1(%arg0: i32) -> (i32, i32) {
    %c0_i32 = arith.constant 0 : i32
    %c0_i32_0 = arith.constant 0 : i32
    %c0_i32_1 = arith.constant 0 : i32
    return %c0_i32, %c0_i32_0 : i32, i32
  }
  func.func @transform_2(%arg0: i32) -> (i32, i32) {
    %c0_i32 = arith.constant 0 : i32
    %c0_i32_0 = arith.constant 0 : i32
    %c0_i32_1 = arith.constant 0 : i32
    return %c0_i32, %c0_i32_0 : i32, i32
  }
  func.func @transform_3(%arg0: i32) -> (i32, i32) {
    %c0_i32 = arith.constant 0 : i32
    %c0_i32_0 = arith.constant 0 : i32
    %c0_i32_1 = arith.constant 0 : i32
    return %c0_i32, %c0_i32_0 : i32, i32
  }
  func.func @transform_4(%arg0: i32) -> (i32, i32) {
    %c0_i32 = arith.constant 0 : i32
    %c0_i32_0 = arith.constant 0 : i32
    %c0_i32_1 = arith.constant 0 : i32
    return %c0_i32, %c0_i32_0 : i32, i32
  }
  func.func @transform_5(%arg0: i32) -> (i32, i32) {
    %c0_i32 = arith.constant 0 : i32
    %c0_i32_0 = arith.constant 0 : i32
    %c0_i32_1 = arith.constant 0 : i32
    return %c0_i32, %c0_i32_0 : i32, i32
  }
  func.func @transform_6(%arg0: i32) -> (i32, i32) {
    %c0_i32 = arith.constant 0 : i32
    %c0_i32_0 = arith.constant 0 : i32
    %c0_i32_1 = arith.constant 0 : i32
    return %c0_i32, %c0_i32_0 : i32, i32
  }
  func.func @transform_7(%arg0: i32) -> (i32, i32) {
    %c0_i32 = arith.constant 0 : i32
    %c0_i32_0 = arith.constant 0 : i32
    %c0_i32_1 = arith.constant 0 : i32
    return %c0_i32, %c0_i32_0 : i32, i32
  }
  func.func @transform_8(%arg0: i32) -> (i32, i32) {
    %c0_i32 = arith.constant 0 : i32
    %c0_i32_0 = arith.constant 0 : i32
    %c0_i32_1 = arith.constant 0 : i32
    return %c0_i32, %c0_i32_0 : i32, i32
  }
  func.func @transform_9(%arg0: i32) -> (i32, i32) {
    %c0_i32 = arith.constant 0 : i32
    %c0_i32_0 = arith.constant 0 : i32
    %c0_i32_1 = arith.constant 0 : i32
    return %c0_i32, %c0_i32_0 : i32, i32
  }
  func.func @transform_10(%arg0: i32) -> (i32, i32, i32) {
    %c0_i32 = arith.constant 0 : i32
    %c0_i32_0 = arith.constant 0 : i32
    %c0_i32_1 = arith.constant 0 : i32
    %c0_i32_2 = arith.constant 0 : i32
    return %c0_i32, %c0_i32_0, %c0_i32_1 : i32, i32, i32
  }
  func.func @transform_11(%arg0: i32) -> (i32, i32) {
    %c0_i32 = arith.constant 0 : i32
    %c0_i32_0 = arith.constant 0 : i32
    %c0_i32_1 = arith.constant 0 : i32
    return %c0_i32, %c0_i32_0 : i32, i32
  }
}

</mosaic_0001>

<llo_original>
// kernel: resblock_forward_packed.1
$region0: #{resblock_forward_packed.1}
  #allocation0 [shape = 'u32[]', space=smem, size = 0x4, offset = 0x4, fixed_abs, tag = 'smem constant byte address 0x4 - core index']
  #allocation1 [shape = 'u32[144,128]{1,0:T(1,128)}', space=vmem, size = 0x12000, scoped, tag = 'internal scratch']
  #allocation2 [shape = 'f32[320,128]{1,0:T(8,128)}', space=vmem, size = 0x28000, scoped, tag = 'scratch operand']
  %s0 = inlined_call_operand.hbm [shape: f32[256,128], index: 0, kind: input, shape index: {}]
  %s1 = inlined_call_operand.vmem [shape: f32[1,64], index: 1, kind: input, shape index: {}]
  %s2 = inlined_call_operand.hbm [shape: f32[1,18], index: 2, kind: input, shape index: {}]
  %s3 = inlined_call_operand.vmem [shape: f32[1,128], index: 3, kind: input, shape index: {}]
  %s4 = inlined_call_operand.hbm [shape: f32[7,128], index: 4, kind: input, shape index: {}]
  %s5 = inlined_call_operand.vmem [shape: f32[1,256], index: 5, kind: input, shape index: {}]
  %s6 = inlined_call_operand.vmem [shape: f32[1,32], index: 6, kind: input, shape index: {}]
  %s7 = inlined_call_operand.hbm [shape: f32[64,256], index: 7, kind: input, shape index: {}]
  %s8 = inlined_call_operand.hbm [shape: f32[18,32], index: 8, kind: input, shape index: {}]
  %s9 = inlined_call_operand.hbm [shape: f32[32,128], index: 9, kind: input, shape index: {}]
  %s10 = inlined_call_operand.hbm [shape: bf16[2,1152,128], index: 10, kind: input, shape index: {}]
  %s11 = inlined_call_operand.hbm [shape: f32[256,128], index: 11, kind: output, shape index: {}]
  %s12 = sld [smem:[#allocation0]]
  $region82: #{resblock_forward_packed.1} parent=0
    _
  %s14 = ssub.s32 1, %s12
  %s15 = scalar_select 0, %s14, %s12
  $region1: #{resblock_forward_packed.1} parent=0
    #allocation3 [shape = 'u8[131072]{0}', space=vmem, size = 0x20000, scoped, tag = 'input window, operand 0, single buffered']
    #allocation4 [shape = 's32[1]{0}', space=sflag, size = 0x4, scoped, tag = 'scoped memory for resblock_forward_packed.1']
    #allocation5 [shape = 's32[1]{0}', space=sflag, size = 0x4, scoped, tag = 'scoped memory for resblock_forward_packed.1']
    #allocation6 [shape = 'u8[512]{0}', space=vmem, size = 0x400, scoped, tag = 'input window, operand 2, single buffered']
    #allocation7 [shape = 's32[1]{0}', space=sflag, size = 0x4, scoped, tag = 'scoped memory for resblock_forward_packed.1']
    #allocation8 [shape = 'u8[4096]{0}', space=vmem, size = 0x1000, scoped, tag = 'input window, operand 4, single buffered']
    #allocation9 [shape = 'u8[65536]{0}', space=vmem, size = 0x10000, scoped, tag = 'input window, operand 7, single buffered']
    #allocation10 [shape = 's32[1]{0}', space=sflag, size = 0x4, scoped, tag = 'scoped memory for resblock_forward_packed.1']
    #allocation11 [shape = 'u8[12288]{0}', space=vmem, size = 0x3000, scoped, tag = 'input window, operand 8, single buffered']
    #allocation12 [shape = 'u8[16384]{0}', space=vmem, size = 0x4000, scoped, tag = 'input window, operand 9, single buffered']
    #allocation13 [shape = 's32[1]{0}', space=sflag, size = 0x4, scoped, tag = 'scoped memory for resblock_forward_packed.1']
    #allocation14 [shape = 'u8[589824]{0}', space=vmem, size = 0x90000, scoped, tag = 'input window, operand 10, single buffered']
    #allocation15 [shape = 'u8[131072]{0}', space=vmem, size = 0x20000, scoped, tag = 'output window, operand 0, single buffered']
    %16 = vsyncpa [#allocation4], 0
    %17 = vsyncpa [#allocation7], 0
    %18 = vsyncpa [#allocation10], 0
    %19 = vsyncpa [#allocation13], 0
    %20 = vsyncpa [#allocation5], 0
    // Predicated region
    $region2: #{resblock_forward_packed.1} parent=1 // pred_check
      _
    $region3: #{resblock_forward_packed.1} parent=1 // pred_check_branch
      %22 = sbr.rel (0) target = $region5
    $region4: #{resblock_forward_packed.1} parent=1 // pred_region
      %s24 = ssub.s32 4096, 4096
      %25 = vsyncadd [#allocation4], %s24
      %s26 = sshll.u32 [#allocation3], 4
      %s27 = int_to_ptr.vmem [resolvable:$true] %s26
      %32 = dma.hbm_to_vmem [thread:$0]  %s0, 4096, %s27, [#allocation4], 128, 128, 8
    $region5: #{resblock_forward_packed.1} parent=1 // pred_fallthru
      _
    // Predicated region
    $region6: #{resblock_forward_packed.1} parent=1 // pred_check
      _
    $region7: #{resblock_forward_packed.1} parent=1 // pred_check_branch
      %34 = sbr.rel (0) target = $region9
    $region8: #{resblock_forward_packed.1} parent=1 // pred_region
      _
    $region9: #{resblock_forward_packed.1} parent=1 // pred_fallthru
      _
    // Predicated region
    $region10: #{resblock_forward_packed.1} parent=1 // pred_check
      _
    $region11: #{resblock_forward_packed.1} parent=1 // pred_check_branch
      %36 = sbr.rel (0) target = $region13
    $region12: #{resblock_forward_packed.1} parent=1 // pred_region
      %s38 = ssub.s32 16, 16
      %39 = vsyncadd [#allocation7], %s38
      %s41 = sshll.u32 [#allocation6], 4
      %s42 = int_to_ptr.vmem [resolvable:$true] %s41
      %44 = dma.hbm_to_vmem [thread:$0]  %s2, 16, %s42, [#allocation7]
    $region13: #{resblock_forward_packed.1} parent=1 // pred_fallthru
      _
    // Predicated region
    $region14: #{resblock_forward_packed.1} parent=1 // pred_check
      _
    $region15: #{resblock_forward_packed.1} parent=1 // pred_check_branch
      %46 = sbr.rel (0) target = $region17
    $region16: #{resblock_forward_packed.1} parent=1 // pred_region
      _
    $region17: #{resblock_forward_packed.1} parent=1 // pred_fallthru
      _
    // Predicated region
    $region18: #{resblock_forward_packed.1} parent=1 // pred_check
      _
    $region19: #{resblock_forward_packed.1} parent=1 // pred_check_branch
      %48 = sbr.rel (0) target = $region21
    $region20: #{resblock_forward_packed.1} parent=1 // pred_region
      %s50 = ssub.s32 128, 128
      %51 = vsyncadd [#allocation7], %s50
      %s53 = sshll.u32 [#allocation8], 4
      %s54 = int_to_ptr.vmem [resolvable:$true] %s53
      %56 = dma.hbm_to_vmem [thread:$0]  %s4, 128, %s54, [#allocation7]
    $region21: #{resblock_forward_packed.1} parent=1 // pred_fallthru
      _
    // Predicated region
    $region22: #{resblock_forward_packed.1} parent=1 // pred_check
      _
    $region23: #{resblock_forward_packed.1} parent=1 // pred_check_branch
      %58 = sbr.rel (0) target = $region25
    $region24: #{resblock_forward_packed.1} parent=1 // pred_region
      _
    $region25: #{resblock_forward_packed.1} parent=1 // pred_fallthru
      _
    // Predicated region
    $region26: #{resblock_forward_packed.1} parent=1 // pred_check
      _
    $region27: #{resblock_forward_packed.1} parent=1 // pred_check_branch
      %60 = sbr.rel (0) target = $region29
    $region28: #{resblock_forward_packed.1} parent=1 // pred_region
      _
    $region29: #{resblock_forward_packed.1} parent=1 // pred_fallthru
      _
    // Predicated region
    $region30: #{resblock_forward_packed.1} parent=1 // pred_check
      _
    $region31: #{resblock_forward_packed.1} parent=1 // pred_check_branch
      %62 = sbr.rel (0) target = $region33
    $region32: #{resblock_forward_packed.1} parent=1 // pred_region
      %s64 = ssub.s32 2048, 2048
      %65 = vsyncadd [#allocation10], %s64
      %s66 = sshll.u32 [#allocation9], 4
      %s67 = int_to_ptr.vmem [resolvable:$true] %s66
      %72 = dma.hbm_to_vmem [thread:$0]  %s7, 2048, %s67, [#allocation10], 256, 256, 16
    $region33: #{resblock_forward_packed.1} parent=1 // pred_fallthru
      _
    // Predicated region
    $region34: #{resblock_forward_packed.1} parent=1 // pred_check
      _
    $region35: #{resblock_forward_packed.1} parent=1 // pred_check_branch
      %74 = sbr.rel (0) target = $region37
    $region36: #{resblock_forward_packed.1} parent=1 // pred_region
      %s76 = ssub.s32 384, 384
      %77 = vsyncadd [#allocation10], %s76
      %s78 = sshll.u32 [#allocation11], 4
      %s79 = int_to_ptr.vmem [resolvable:$true] %s78
      %84 = dma.hbm_to_vmem [thread:$0]  %s8, 384, %s79, [#allocation10], 128, 128, 8
    $region37: #{resblock_forward_packed.1} parent=1 // pred_fallthru
      _
    // Predicated region
    $region38: #{resblock_forward_packed.1} parent=1 // pred_check
      _
    $region39: #{resblock_forward_packed.1} parent=1 // pred_check_branch
      %86 = sbr.rel (0) target = $region41
    $region40: #{resblock_forward_packed.1} parent=1 // pred_region
      %s88 = ssub.s32 512, 512
      %89 = vsyncadd [#allocation13], %s88
      %s90 = sshll.u32 [#allocation12], 4
      %s91 = int_to_ptr.vmem [resolvable:$true] %s90
      %96 = dma.hbm_to_vmem [thread:$0]  %s9, 512, %s91, [#allocation13], 128, 128, 8
    $region41: #{resblock_forward_packed.1} parent=1 // pred_fallthru
      _
    // Predicated region
    $region42: #{resblock_forward_packed.1} parent=1 // pred_check
      _
    $region43: #{resblock_forward_packed.1} parent=1 // pred_check_branch
      %98 = sbr.rel (0) target = $region45
    $region44: #{resblock_forward_packed.1} parent=1 // pred_region
      %s100 = ssub.s32 18432, 18432
      %101 = vsyncadd [#allocation13], %s100
      %s102 = sshll.u32 [#allocation14], 4
      %s103 = int_to_ptr.vmem [resolvable:$true] %s102
      %108 = dma.hbm_to_vmem [thread:$0]  %s10, 18432, %s103, [#allocation13], 64, 64, 4
    $region45: #{resblock_forward_packed.1} parent=1 // pred_fallthru
      _
    // Predicated region
    $region46: #{resblock_forward_packed.1} parent=1 // pred_check
      _
    $region47: #{resblock_forward_packed.1} parent=1 // pred_check_branch
      %110 = sbr.rel (0) target = $region49
    $region48: #{resblock_forward_packed.1} parent=1 // pred_region
      %111 = dma.done [#allocation4], 4096
    $region49: #{resblock_forward_packed.1} parent=1 // pred_fallthru
      _
    // Predicated region
    $region50: #{resblock_forward_packed.1} parent=1 // pred_check
      _
    $region51: #{resblock_forward_packed.1} parent=1 // pred_check_branch
      %113 = sbr.rel (0) target = $region53
    $region52: #{resblock_forward_packed.1} parent=1 // pred_region
      %114 = dma.done [#allocation7], 16
    $region53: #{resblock_forward_packed.1} parent=1 // pred_fallthru
      _
    // Predicated region
    $region54: #{resblock_forward_packed.1} parent=1 // pred_check
      _
    $region55: #{resblock_forward_packed.1} parent=1 // pred_check_branch
      %116 = sbr.rel (0) target = $region57
    $region56: #{resblock_forward_packed.1} parent=1 // pred_region
      %117 = dma.done [#allocation7], 128
    $region57: #{resblock_forward_packed.1} parent=1 // pred_fallthru
      _
    // Predicated region
    $region58: #{resblock_forward_packed.1} parent=1 // pred_check
      _
    $region59: #{resblock_forward_packed.1} parent=1 // pred_check_branch
      %119 = sbr.rel (0) target = $region61
    $region60: #{resblock_forward_packed.1} parent=1 // pred_region
      %120 = dma.done [#allocation10], 2048
    $region61: #{resblock_forward_packed.1} parent=1 // pred_fallthru
      _
    // Predicated region
    $region62: #{resblock_forward_packed.1} parent=1 // pred_check
      _
    $region63: #{resblock_forward_packed.1} parent=1 // pred_check_branch
      %122 = sbr.rel (0) target = $region65
    $region64: #{resblock_forward_packed.1} parent=1 // pred_region
      %123 = dma.done [#allocation10], 384
    $region65: #{resblock_forward_packed.1} parent=1 // pred_fallthru
      _
    // Predicated region
    $region66: #{resblock_forward_packed.1} parent=1 // pred_check
      _
    $region67: #{resblock_forward_packed.1} parent=1 // pred_check_branch
      %125 = sbr.rel (0) target = $region69
    $region68: #{resblock_forward_packed.1} parent=1 // pred_region
      %126 = dma.done [#allocation13], 512
    $region69: #{resblock_forward_packed.1} parent=1 // pred_fallthru
      _
    // Predicated region
    $region70: #{resblock_forward_packed.1} parent=1 // pred_check
      _
    $region71: #{resblock_forward_packed.1} parent=1 // pred_check_branch
      %128 = sbr.rel (0) target = $region73
    $region72: #{resblock_forward_packed.1} parent=1 // pred_region
      %129 = dma.done [#allocation13], 18432
    $region73: #{resblock_forward_packed.1} parent=1 // pred_fallthru
      _
    %v131 = vld [vmem:[#allocation3] sm:$0xff]
    %v132 = vld [vmem:[#allocation3 + $0x8] sm:$0xff]
    %v133 = vld [vmem:[#allocation3 + $0x10] sm:$0xff]
    %v134 = vld [vmem:[#allocation3 + $0x18] sm:$0xff]
    %v135 = vld [vmem:[#allocation3 + $0x20] sm:$0xff]
    %v136 = vld [vmem:[#allocation3 + $0x28] sm:$0xff]
    %v137 = vld [vmem:[#allocation3 + $0x30] sm:$0xff]
    %v138 = vld [vmem:[#allocation3 + $0x38] sm:$0xff]
    %v139 = vld [vmem:[#allocation3 + $0x40] sm:$0xff]
    %v140 = vld [vmem:[#allocation3 + $0x48] sm:$0xff]
    %v141 = vld [vmem:[#allocation3 + $0x50] sm:$0xff]
    %v142 = vld [vmem:[#allocation3 + $0x58] sm:$0xff]
    %v143 = vld [vmem:[#allocation3 + $0x60] sm:$0xff]
    %v144 = vld [vmem:[#allocation3 + $0x68] sm:$0xff]
    %v145 = vld [vmem:[#allocation3 + $0x70] sm:$0xff]
    %v146 = vld [vmem:[#allocation3 + $0x78] sm:$0xff]
    %v147 = vld [vmem:[#allocation3 + $0x80] sm:$0xff]
    %v148 = vld [vmem:[#allocation3 + $0x88] sm:$0xff]
    %v149 = vld [vmem:[#allocation3 + $0x90] sm:$0xff]
    %v150 = vld [vmem:[#allocation3 + $0x98] sm:$0xff]
    %v151 = vld [vmem:[#allocation3 + $0xa0] sm:$0xff]
    %v152 = vld [vmem:[#allocation3 + $0xa8] sm:$0xff]
    %v153 = vld [vmem:[#allocation3 + $0xb0] sm:$0xff]
    %v154 = vld [vmem:[#allocation3 + $0xb8] sm:$0xff]
    %v155 = vld [vmem:[#allocation3 + $0xc0] sm:$0xff]
    %v156 = vld [vmem:[#allocation3 + $0xc8] sm:$0xff]
    %v157 = vld [vmem:[#allocation3 + $0xd0] sm:$0xff]
    %v158 = vld [vmem:[#allocation3 + $0xd8] sm:$0xff]
    %v159 = vld [vmem:[#allocation3 + $0xe0] sm:$0xff]
    %v160 = vld [vmem:[#allocation3 + $0xe8] sm:$0xff]
    %v161 = vld [vmem:[#allocation3 + $0xf0] sm:$0xff]
    %v162 = vld [vmem:[#allocation3 + $0xf8] sm:$0xff]
    %v163 = vlaneseq
    %v164 = vshrl.u32 %v163, 7
    %v165 = vadd.s32 %v164, 8
    %v166 = vadd.s32 %v164, 16
    %v167 = vadd.s32 %v164, 24
    %v168 = vadd.s32 %v164, 32
    %v169 = vadd.s32 %v164, 40
    %v170 = vadd.s32 %v164, 48
    %v171 = vadd.s32 %v164, 56
    %v172 = vadd.s32 %v164, 64
    %v173 = vadd.s32 %v164, 72
    %v174 = vadd.s32 %v164, 80
    %v175 = vadd.s32 %v164, 88
    %v176 = vadd.s32 %v164, 96
    %v177 = vadd.s32 %v164, 104
    %v178 = vadd.s32 %v164, 112
    %v179 = vadd.s32 %v164, 120
    %v180 = vadd.s32 %v164, 128
    %v181 = vadd.s32 %v164, 136
    %v182 = vadd.s32 %v164, 144
    %v183 = vadd.s32 %v164, 152
    %v184 = vadd.s32 %v164, 160
    %v185 = vadd.s32 %v164, 168
    %v186 = vadd.s32 %v164, 176
    %v187 = vadd.s32 %v164, 184
    %v188 = vadd.s32 %v164, 192
    %v189 = vadd.s32 %v164, 200
    %v190 = vadd.s32 %v164, 208
    %v191 = vadd.s32 %v164, 216
    %v192 = vadd.s32 %v164, 224
    %v193 = vadd.s32 %v164, 232
    %v194 = vadd.s32 %v164, 240
    %v195 = vadd.s32 %v164, 248
    %vm196 = vcmp.lt.s32.totalorder %v164, 0
    %v197 = vsub.s32 0, %v164
    %v198 = vsel %vm196, %v197, %v164
    %v199 = vshrl.u32 %v198, 4
    %v200 = vand.u32 %v198, 15
    %v201 = vsub.s32 0, %v200
    %v202 = vsel %vm196, %v201, %v200
    %vm203 = vcmp.lt.s32.totalorder %v165, 0
    %v204 = vsub.s32 0, %v165
    %v205 = vsel %vm203, %v204, %v165
    %v206 = vshrl.u32 %v205, 4
    %v207 = vand.u32 %v205, 15
    %v208 = vsub.s32 0, %v207
    %v209 = vsel %vm203, %v208, %v207
    %vm210 = vcmp.lt.s32.totalorder %v166, 0
    %v211 = vsub.s32 0, %v166
    %v212 = vsel %vm210, %v211, %v166
    %v213 = vshrl.u32 %v212, 4
    %v214 = vand.u32 %v212, 15
    %v215 = vsub.s32 0, %v214
    %v216 = vsel %vm210, %v215, %v214
    %vm217 = vcmp.lt.s32.totalorder %v167, 0
    %v218 = vsub.s32 0, %v167
    %v219 = vsel %vm217, %v218, %v167
    %v220 = vshrl.u32 %v219, 4
    %v221 = vand.u32 %v219, 15
    %v222 = vsub.s32 0, %v221
    %v223 = vsel %vm217, %v222, %v221
    %vm224 = vcmp.lt.s32.totalorder %v168, 0
    %v225 = vsub.s32 0, %v168
    %v226 = vsel %vm224, %v225, %v168
    %v227 = vshrl.u32 %v226, 4
    %v228 = vand.u32 %v226, 15
    %v229 = vsub.s32 0, %v228
    %v230 = vsel %vm224, %v229, %v228
    %vm231 = vcmp.lt.s32.totalorder %v169, 0
    %v232 = vsub.s32 0, %v169
    %v233 = vsel %vm231, %v232, %v169
    %v234 = vshrl.u32 %v233, 4
    %v235 = vand.u32 %v233, 15
    %v236 = vsub.s32 0, %v235
    %v237 = vsel %vm231, %v236, %v235
    %vm238 = vcmp.lt.s32.totalorder %v170, 0
    %v239 = vsub.s32 0, %v170
    %v240 = vsel %vm238, %v239, %v170
    %v241 = vshrl.u32 %v240, 4
    %v242 = vand.u32 %v240, 15
    %v243 = vsub.s32 0, %v242
    %v244 = vsel %vm238, %v243, %v242
    %vm245 = vcmp.lt.s32.totalorder %v171, 0
    %v246 = vsub.s32 0, %v171
    %v247 = vsel %vm245, %v246, %v171
    %v248 = vshrl.u32 %v247, 4
    %v249 = vand.u32 %v247, 15
    %v250 = vsub.s32 0, %v249
    %v251 = vsel %vm245, %v250, %v249
    %vm252 = vcmp.lt.s32.totalorder %v172, 0
    %v253 = vsub.s32 0, %v172
    %v254 = vsel %vm252, %v253, %v172
    %v255 = vshrl.u32 %v254, 4
    %v256 = vand.u32 %v254, 15
    %v257 = vsub.s32 0, %v256
    %v258 = vsel %vm252, %v257, %v256
    %vm259 = vcmp.lt.s32.totalorder %v173, 0
    %v260 = vsub.s32 0, %v173
    %v261 = vsel %vm259, %v260, %v173
    %v262 = vshrl.u32 %v261, 4
    %v263 = vand.u32 %v261, 15
    %v264 = vsub.s32 0, %v263
    %v265 = vsel %vm259, %v264, %v263
    %vm266 = vcmp.lt.s32.totalorder %v174, 0
    %v267 = vsub.s32 0, %v174
    %v268 = vsel %vm266, %v267, %v174
    %v269 = vshrl.u32 %v268, 4
    %v270 = vand.u32 %v268, 15
    %v271 = vsub.s32 0, %v270
    %v272 = vsel %vm266, %v271, %v270
    %vm273 = vcmp.lt.s32.totalorder %v175, 0
    %v274 = vsub.s32 0, %v175
    %v275 = vsel %vm273, %v274, %v175
    %v276 = vshrl.u32 %v275, 4
    %v277 = vand.u32 %v275, 15
    %v278 = vsub.s32 0, %v277
    %v279 = vsel %vm273, %v278, %v277
    %vm280 = vcmp.lt.s32.totalorder %v176, 0
    %v281 = vsub.s32 0, %v176
    %v282 = vsel %vm280, %v281, %v176
    %v283 = vshrl.u32 %v282, 4
    %v284 = vand.u32 %v282, 15
    %v285 = vsub.s32 0, %v284
    %v286 = vsel %vm280, %v285, %v284
    %vm287 = vcmp.lt.s32.totalorder %v177, 0
    %v288 = vsub.s32 0, %v177
    %v289 = vsel %vm287, %v288, %v177
    %v290 = vshrl.u32 %v289, 4
    %v291 = vand.u32 %v289, 15
    %v292 = vsub.s32 0, %v291
    %v293 = vsel %vm287, %v292, %v291
    %vm294 = vcmp.lt.s32.totalorder %v178, 0
    %v295 = vsub.s32 0, %v178
    %v296 = vsel %vm294, %v295, %v178
    %v297 = vshrl.u32 %v296, 4
    %v298 = vand.u32 %v296, 15
    %v299 = vsub.s32 0, %v298
    %v300 = vsel %vm294, %v299, %v298
    %vm301 = vcmp.lt.s32.totalorder %v179, 0
    %v302 = vsub.s32 0, %v179
    %v303 = vsel %vm301, %v302, %v179
    %v304 = vshrl.u32 %v303, 4
    %v305 = vand.u32 %v303, 15
    %v306 = vsub.s32 0, %v305
    %v307 = vsel %vm301, %v306, %v305
    %vm308 = vcmp.lt.s32.totalorder %v180, 0
    %v309 = vsub.s32 0, %v180
    %v310 = vsel %vm308, %v309, %v180
    %v311 = vshrl.u32 %v310, 4
    %v312 = vand.u32 %v310, 15
    %v313 = vsub.s32 0, %v312
    %v314 = vsel %vm308, %v313, %v312
    %vm315 = vcmp.lt.s32.totalorder %v181, 0
    %v316 = vsub.s32 0, %v181
    %v317 = vsel %vm315, %v316, %v181
    %v318 = vshrl.u32 %v317, 4
    %v319 = vand.u32 %v317, 15
    %v320 = vsub.s32 0, %v319
    %v321 = vsel %vm315, %v320, %v319
    %vm322 = vcmp.lt.s32.totalorder %v182, 0
    %v323 = vsub.s32 0, %v182
    %v324 = vsel %vm322, %v323, %v182
    %v325 = vshrl.u32 %v324, 4
    %v326 = vand.u32 %v324, 15
    %v327 = vsub.s32 0, %v326
    %v328 = vsel %vm322, %v327, %v326
    %vm329 = vcmp.lt.s32.totalorder %v183, 0
    %v330 = vsub.s32 0, %v183
    %v331 = vsel %vm329, %v330, %v183
    %v332 = vshrl.u32 %v331, 4
    %v333 = vand.u32 %v331, 15
    %v334 = vsub.s32 0, %v333
    %v335 = vsel %vm329, %v334, %v333
    %vm336 = vcmp.lt.s32.totalorder %v184, 0
    %v337 = vsub.s32 0, %v184
    %v338 = vsel %vm336, %v337, %v184
    %v339 = vshrl.u32 %v338, 4
    %v340 = vand.u32 %v338, 15
    %v341 = vsub.s32 0, %v340
    %v342 = vsel %vm336, %v341, %v340
    %vm343 = vcmp.lt.s32.totalorder %v185, 0
    %v344 = vsub.s32 0, %v185
    %v345 = vsel %vm343, %v344, %v185
    %v346 = vshrl.u32 %v345, 4
    %v347 = vand.u32 %v345, 15
    %v348 = vsub.s32 0, %v347
    %v349 = vsel %vm343, %v348, %v347
    %vm350 = vcmp.lt.s32.totalorder %v186, 0
    %v351 = vsub.s32 0, %v186
    %v352 = vsel %vm350, %v351, %v186
    %v353 = vshrl.u32 %v352, 4
    %v354 = vand.u32 %v352, 15
    %v355 = vsub.s32 0, %v354
    %v356 = vsel %vm350, %v355, %v354
    %vm357 = vcmp.lt.s32.totalorder %v187, 0
    %v358 = vsub.s32 0, %v187
    %v359 = vsel %vm357, %v358, %v187
    %v360 = vshrl.u32 %v359, 4
    %v361 = vand.u32 %v359, 15
    %v362 = vsub.s32 0, %v361
    %v363 = vsel %vm357, %v362, %v361
    %vm364 = vcmp.lt.s32.totalorder %v188, 0
    %v365 = vsub.s32 0, %v188
    %v366 = vsel %vm364, %v365, %v188
    %v367 = vshrl.u32 %v366, 4
    %v368 = vand.u32 %v366, 15
    %v369 = vsub.s32 0, %v368
    %v370 = vsel %vm364, %v369, %v368
    %vm371 = vcmp.lt.s32.totalorder %v189, 0
    %v372 = vsub.s32 0, %v189
    %v373 = vsel %vm371, %v372, %v189
    %v374 = vshrl.u32 %v373, 4
    %v375 = vand.u32 %v373, 15
    %v376 = vsub.s32 0, %v375
    %v377 = vsel %vm371, %v376, %v375
    %vm378 = vcmp.lt.s32.totalorder %v190, 0
    %v379 = vsub.s32 0, %v190
    %v380 = vsel %vm378, %v379, %v190
    %v381 = vshrl.u32 %v380, 4
    %v382 = vand.u32 %v380, 15
    %v383 = vsub.s32 0, %v382
    %v384 = vsel %vm378, %v383, %v382
    %vm385 = vcmp.lt.s32.totalorder %v191, 0
    %v386 = vsub.s32 0, %v191
    %v387 = vsel %vm385, %v386, %v191
    %v388 = vshrl.u32 %v387, 4
    %v389 = vand.u32 %v387, 15
    %v390 = vsub.s32 0, %v389
    %v391 = vsel %vm385, %v390, %v389
    %vm392 = vcmp.lt.s32.totalorder %v192, 0
    %v393 = vsub.s32 0, %v192
    %v394 = vsel %vm392, %v393, %v192
    %v395 = vshrl.u32 %v394, 4
    %v396 = vand.u32 %v394, 15
    %v397 = vsub.s32 0, %v396
    %v398 = vsel %vm392, %v397, %v396
    %vm399 = vcmp.lt.s32.totalorder %v193, 0
    %v400 = vsub.s32 0, %v193
    %v401 = vsel %vm399, %v400, %v193
    %v402 = vshrl.u32 %v401, 4
    %v403 = vand.u32 %v401, 15
    %v404 = vsub.s32 0, %v403
    %v405 = vsel %vm399, %v404, %v403
    %vm406 = vcmp.lt.s32.totalorder %v194, 0
    %v407 = vsub.s32 0, %v194
    %v408 = vsel %vm406, %v407, %v194
    %v409 = vshrl.u32 %v408, 4
    %v410 = vand.u32 %v408, 15
    %v411 = vsub.s32 0, %v410
    %v412 = vsel %vm406, %v411, %v410
    %vm413 = vcmp.lt.s32.totalorder %v195, 0
    %v414 = vsub.s32 0, %v195
    %v415 = vsel %vm413, %v414, %v195
    %v416 = vshrl.u32 %v415, 4
    %v417 = vand.u32 %v415, 15
    %v418 = vsub.s32 0, %v417
    %v419 = vsel %vm413, %v418, %v417
    %vm420 = vcmp.ne.s32.totalorder %v202, 0
    %vm421 = vcmp.ne.s32.totalorder %v209, 0
    %vm422 = vcmp.ne.s32.totalorder %v216, 0
    %vm423 = vcmp.ne.s32.totalorder %v223, 0
    %vm424 = vcmp.ne.s32.totalorder %v230, 0
    %vm425 = vcmp.ne.s32.totalorder %v237, 0
    %vm426 = vcmp.ne.s32.totalorder %v244, 0
    %vm427 = vcmp.ne.s32.totalorder %v251, 0
    %vm428 = vcmp.ne.s32.totalorder %v258, 0
    %vm429 = vcmp.ne.s32.totalorder %v265, 0
    %vm430 = vcmp.ne.s32.totalorder %v272, 0
    %vm431 = vcmp.ne.s32.totalorder %v279, 0
    %vm432 = vcmp.ne.s32.totalorder %v286, 0
    %vm433 = vcmp.ne.s32.totalorder %v293, 0
    %vm434 = vcmp.ne.s32.totalorder %v300, 0
    %vm435 = vcmp.ne.s32.totalorder %v307, 0
    %vm436 = vcmp.ne.s32.totalorder %v314, 0
    %vm437 = vcmp.ne.s32.totalorder %v321, 0
    %vm438 = vcmp.ne.s32.totalorder %v328, 0
    %vm439 = vcmp.ne.s32.totalorder %v335, 0
    %vm440 = vcmp.ne.s32.totalorder %v342, 0
    %vm441 = vcmp.ne.s32.totalorder %v349, 0
    %vm442 = vcmp.ne.s32.totalorder %v356, 0
    %vm443 = vcmp.ne.s32.totalorder %v363, 0
    %vm444 = vcmp.ne.s32.totalorder %v370, 0
    %vm445 = vcmp.ne.s32.totalorder %v377, 0
    %vm446 = vcmp.ne.s32.totalorder %v384, 0
    %vm447 = vcmp.ne.s32.totalorder %v391, 0
    %vm448 = vcmp.ne.s32.totalorder %v398, 0
    %vm449 = vcmp.ne.s32.totalorder %v405, 0
    %vm450 = vcmp.ne.s32.totalorder %v412, 0
    %vm451 = vcmp.ne.s32.totalorder %v419, 0
    %vm452 = vcmp.lt.s32.totalorder %v202, 0
    %vm453 = vcmp.lt.s32.totalorder %v209, 0
    %vm454 = vcmp.lt.s32.totalorder %v216, 0
    %vm455 = vcmp.lt.s32.totalorder %v223, 0
    %vm456 = vcmp.lt.s32.totalorder %v230, 0
    %vm457 = vcmp.lt.s32.totalorder %v237, 0
    %vm458 = vcmp.lt.s32.totalorder %v244, 0
    %vm459 = vcmp.lt.s32.totalorder %v251, 0
    %vm460 = vcmp.lt.s32.totalorder %v258, 0
    %vm461 = vcmp.lt.s32.totalorder %v265, 0
    %vm462 = vcmp.lt.s32.totalorder %v272, 0
    %vm463 = vcmp.lt.s32.totalorder %v279, 0
    %vm464 = vcmp.lt.s32.totalorder %v286, 0
    %vm465 = vcmp.lt.s32.totalorder %v293, 0
    %vm466 = vcmp.lt.s32.totalorder %v300, 0
    %vm467 = vcmp.lt.s32.totalorder %v307, 0
    %vm468 = vcmp.lt.s32.totalorder %v314, 0
    %vm469 = vcmp.lt.s32.totalorder %v321, 0
    %vm470 = vcmp.lt.s32.totalorder %v328, 0
    %vm471 = vcmp.lt.s32.totalorder %v335, 0
    %vm472 = vcmp.lt.s32.totalorder %v342, 0
    %vm473 = vcmp.lt.s32.totalorder %v349, 0
    %vm474 = vcmp.lt.s32.totalorder %v356, 0
    %vm475 = vcmp.lt.s32.totalorder %v363, 0
    %vm476 = vcmp.lt.s32.totalorder %v370, 0
    %vm477 = vcmp.lt.s32.totalorder %v377, 0
    %vm478 = vcmp.lt.s32.totalorder %v384, 0
    %vm479 = vcmp.lt.s32.totalorder %v391, 0
    %vm480 = vcmp.lt.s32.totalorder %v398, 0
    %vm481 = vcmp.lt.s32.totalorder %v405, 0
    %vm482 = vcmp.lt.s32.totalorder %v412, 0
    %vm483 = vcmp.lt.s32.totalorder %v419, 0
    %vm484 = vmand %vm452, %vm420
    %vm485 = vmand %vm453, %vm421
    %vm486 = vmand %vm454, %vm422
    %vm487 = vmand %vm455, %vm423
    %vm488 = vmand %vm456, %vm424
    %vm489 = vmand %vm457, %vm425
    %vm490 = vmand %vm458, %vm426
    %vm491 = vmand %vm459, %vm427
    %vm492 = vmand %vm460, %vm428
    %vm493 = vmand %vm461, %vm429
    %vm494 = vmand %vm462, %vm430
    %vm495 = vmand %vm463, %vm431
    %vm496 = vmand %vm464, %vm432
    %vm497 = vmand %vm465, %vm433
    %vm498 = vmand %vm466, %vm434
    %vm499 = vmand %vm467, %vm435
    %vm500 = vmand %vm468, %vm436
    %vm501 = vmand %vm469, %vm437
    %vm502 = vmand %vm470, %vm438
    %vm503 = vmand %vm471, %vm439
    %vm504 = vmand %vm472, %vm440
    %vm505 = vmand %vm473, %vm441
    %vm506 = vmand %vm474, %vm442
    %vm507 = vmand %vm475, %vm443
    %vm508 = vmand %vm476, %vm444
    %vm509 = vmand %vm477, %vm445
    %vm510 = vmand %vm478, %vm446
    %vm511 = vmand %vm479, %vm447
    %vm512 = vmand %vm480, %vm448
    %vm513 = vmand %vm481, %vm449
    %vm514 = vmand %vm482, %vm450
    %vm515 = vmand %vm483, %vm451
    %v516 = vadd.s32 %v202, 16
    %v517 = vadd.s32 %v209, 16
    %v518 = vadd.s32 %v216, 16
    %v519 = vadd.s32 %v223, 16
    %v520 = vadd.s32 %v230, 16
    %v521 = vadd.s32 %v237, 16
    %v522 = vadd.s32 %v244, 16
    %v523 = vadd.s32 %v251, 16
    %v524 = vadd.s32 %v258, 16
    %v525 = vadd.s32 %v265, 16
    %v526 = vadd.s32 %v272, 16
    %v527 = vadd.s32 %v279, 16
    %v528 = vadd.s32 %v286, 16
    %v529 = vadd.s32 %v293, 16
    %v530 = vadd.s32 %v300, 16
    %v531 = vadd.s32 %v307, 16
    %v532 = vadd.s32 %v314, 16
    %v533 = vadd.s32 %v321, 16
    %v534 = vadd.s32 %v328, 16
    %v535 = vadd.s32 %v335, 16
    %v536 = vadd.s32 %v342, 16
    %v537 = vadd.s32 %v349, 16
    %v538 = vadd.s32 %v356, 16
    %v539 = vadd.s32 %v363, 16
    %v540 = vadd.s32 %v370, 16
    %v541 = vadd.s32 %v377, 16
    %v542 = vadd.s32 %v384, 16
    %v543 = vadd.s32 %v391, 16
    %v544 = vadd.s32 %v398, 16
    %v545 = vadd.s32 %v405, 16
    %v546 = vadd.s32 %v412, 16
    %v547 = vadd.s32 %v419, 16
    %v548 = vsel %vm484, %v516, %v202
    %v549 = vsel %vm485, %v517, %v209
    %v550 = vsel %vm486, %v518, %v216
    %v551 = vsel %vm487, %v519, %v223
    %v552 = vsel %vm488, %v520, %v230
    %v553 = vsel %vm489, %v521, %v237
    %v554 = vsel %vm490, %v522, %v244
    %v555 = vsel %vm491, %v523, %v251
    %v556 = vsel %vm492, %v524, %v258
    %v557 = vsel %vm493, %v525, %v265
    %v558 = vsel %vm494, %v526, %v272
    %v559 = vsel %vm495, %v527, %v279
    %v560 = vsel %vm496, %v528, %v286
    %v561 = vsel %vm497, %v529, %v293
    %v562 = vsel %vm498, %v530, %v300
    %v563 = vsel %vm499, %v531, %v307
    %v564 = vsel %vm500, %v532, %v314
    %v565 = vsel %vm501, %v533, %v321
    %v566 = vsel %vm502, %v534, %v328
    %v567 = vsel %vm503, %v535, %v335
    %v568 = vsel %vm504, %v536, %v342
    %v569 = vsel %vm505, %v537, %v349
    %v570 = vsel %vm506, %v538, %v356
    %v571 = vsel %vm507, %v539, %v363
    %v572 = vsel %vm508, %v540, %v370
    %v573 = vsel %vm509, %v541, %v377
    %v574 = vsel %vm510, %v542, %v384
    %v575 = vsel %vm511, %v543, %v391
    %v576 = vsel %vm512, %v544, %v398
    %v577 = vsel %vm513, %v545, %v405
    %v578 = vsel %vm514, %v546, %v412
    %v579 = vsel %vm515, %v547, %v419
    %vm580 = vcmp.ge.s32.totalorder %v548, 1
    %vm581 = vcmp.ge.s32.totalorder %v549, 1
    %vm582 = vcmp.ge.s32.totalorder %v550, 1
    %vm583 = vcmp.ge.s32.totalorder %v551, 1
    %vm584 = vcmp.ge.s32.totalorder %v552, 1
    %vm585 = vcmp.ge.s32.totalorder %v553, 1
    %vm586 = vcmp.ge.s32.totalorder %v554, 1
    %vm587 = vcmp.ge.s32.totalorder %v555, 1
    %vm588 = vcmp.ge.s32.totalorder %v556, 1
    %vm589 = vcmp.ge.s32.totalorder %v557, 1
    %vm590 = vcmp.ge.s32.totalorder %v558, 1
    %vm591 = vcmp.ge.s32.totalorder %v559, 1
    %vm592 = vcmp.ge.s32.totalorder %v560, 1
    %vm593 = vcmp.ge.s32.totalorder %v561, 1
    %vm594 = vcmp.ge.s32.totalorder %v562, 1
    %vm595 = vcmp.ge.s32.totalorder %v563, 1
    %vm596 = vcmp.ge.s32.totalorder %v564, 1
    %vm597 = vcmp.ge.s32.totalorder %v565, 1
    %vm598 = vcmp.ge.s32.totalorder %v566, 1
    %vm599 = vcmp.ge.s32.totalorder %v567, 1
    %vm600 = vcmp.ge.s32.totalorder %v568, 1
    %vm601 = vcmp.ge.s32.totalorder %v569, 1
    %vm602 = vcmp.ge.s32.totalorder %v570, 1
    %vm603 = vcmp.ge.s32.totalorder %v571, 1
    %vm604 = vcmp.ge.s32.totalorder %v572, 1
    %vm605 = vcmp.ge.s32.totalorder %v573, 1
    %vm606 = vcmp.ge.s32.totalorder %v574, 1
    %vm607 = vcmp.ge.s32.totalorder %v575, 1
    %vm608 = vcmp.ge.s32.totalorder %v576, 1
    %vm609 = vcmp.ge.s32.totalorder %v577, 1
    %vm610 = vcmp.ge.s32.totalorder %v578, 1
    %vm611 = vcmp.ge.s32.totalorder %v579, 1
    %vm612 = vcmp.lt.s32.totalorder %v548, 15
    %vm613 = vcmp.lt.s32.totalorder %v549, 15
    %vm614 = vcmp.lt.s32.totalorder %v550, 15
    %vm615 = vcmp.lt.s32.totalorder %v551, 15
    %vm616 = vcmp.lt.s32.totalorder %v552, 15
    %vm617 = vcmp.lt.s32.totalorder %v553, 15
    %vm618 = vcmp.lt.s32.totalorder %v554, 15
    %vm619 = vcmp.lt.s32.totalorder %v555, 15
    %vm620 = vcmp.lt.s32.totalorder %v556, 15
    %vm621 = vcmp.lt.s32.totalorder %v557, 15
    %vm622 = vcmp.lt.s32.totalorder %v558, 15
    %vm623 = vcmp.lt.s32.totalorder %v559, 15
    %vm624 = vcmp.lt.s32.totalorder %v560, 15
    %vm625 = vcmp.lt.s32.totalorder %v561, 15
    %vm626 = vcmp.lt.s32.totalorder %v562, 15
    %vm627 = vcmp.lt.s32.totalorder %v563, 15
    %vm628 = vcmp.lt.s32.totalorder %v564, 15
    %vm629 = vcmp.lt.s32.totalorder %v565, 15
    %vm630 = vcmp.lt.s32.totalorder %v566, 15
    %vm631 = vcmp.lt.s32.totalorder %v567, 15
    %vm632 = vcmp.lt.s32.totalorder %v568, 15
    %vm633 = vcmp.lt.s32.totalorder %v569, 15
    %vm634 = vcmp.lt.s32.totalorder %v570, 15
    %vm635 = vcmp.lt.s32.totalorder %v571, 15
    %vm636 = vcmp.lt.s32.totalorder %v572, 15
    %vm637 = vcmp.lt.s32.totalorder %v573, 15
    %vm638 = vcmp.lt.s32.totalorder %v574, 15
    %vm639 = vcmp.lt.s32.totalorder %v575, 15
    %vm640 = vcmp.lt.s32.totalorder %v576, 15
    %vm641 = vcmp.lt.s32.totalorder %v577, 15
    %vm642 = vcmp.lt.s32.totalorder %v578, 15
    %vm643 = vcmp.lt.s32.totalorder %v579, 15
    %v644 = vlaneseq
    %v645 = vand.u32 %v644, 127
    %vm646 = vcmp.lt.s32.totalorder %v645, 0
    %v647 = vsub.s32 0, %v645
    %v648 = vsel %vm646, %v647, %v645
    %v649 = vshrl.u32 %v648, 1
    %v650 = vand.u32 %v648, 1
    %v651 = vsub.s32 0, %v650
    %v652 = vsel %vm646, %v651, %v650
    %vm653 = vcmp.ne.s32.totalorder %v652, 0
    %vm654 = vcmp.lt.s32.totalorder %v652, 0
    %vm655 = vmand %vm654, %vm653
    %v656 = vadd.s32 %v652, 2
    %v657 = vsel %vm655, %v656, %v652
    %vm658 = vcmp.eq.s32.totalorder %v657, 0
    %659 = vst [vmem:[#allocation2] sm:$0xff] 0.0
    %660 = vst [vmem:[#allocation2 + $0x8] sm:$0xff] 0.0
    %661 = vst [vmem:[#allocation2 + $0x10] sm:$0xff] 0.0
    %662 = vst [vmem:[#allocation2 + $0x18] sm:$0xff] 0.0
    %663 = vst [vmem:[#allocation2 + $0x120] sm:$0xff] 0.0
    %664 = vst [vmem:[#allocation2 + $0x128] sm:$0xff] 0.0
    %665 = vst [vmem:[#allocation2 + $0x130] sm:$0xff] 0.0
    %666 = vst [vmem:[#allocation2 + $0x138] sm:$0xff] 0.0
    %v667 = vld [vmem:[#allocation8] sm:$0x1]
    %v668 = vld [vmem:[#allocation8 + $0x1] sm:$0x1]
    %v669 = vld [vmem:[#allocation8 + $0x2] sm:$0x1]
    %v670 = vld [vmem:[#allocation8 + $0x3] sm:$0x1]
    %v671 = vld [vmem:[#allocation8 + $0x4] sm:$0x1]
    %v672 = vld [vmem:[#allocation8 + $0x5] sm:$0x1]
    %v673 = vld [vmem:[#allocation8 + $0x6] sm:$0x1]
    %v674 = vadd.f32 %v131, %v132
    %v675 = vadd.f32 %v674, %v133
    %v676 = vadd.f32 %v675, %v134
    %v677 = vadd.f32 %v676, %v135
    %v678 = vadd.f32 %v677, %v136
    %v679 = vadd.f32 %v678, %v137
    %v680 = vadd.f32 %v679, %v138
    %v681 = vadd.f32 %v680, %v139
    %v682 = vadd.f32 %v681, %v140
    %v683 = vadd.f32 %v682, %v141
    %v684 = vadd.f32 %v683, %v142
    %v685 = vadd.f32 %v684, %v143
    %v686 = vadd.f32 %v685, %v144
    %v687 = vadd.f32 %v686, %v145
    %v688 = vadd.f32 %v687, %v146
    %v689 = vadd.f32 %v688, %v147
    %v690 = vadd.f32 %v689, %v148
    %v691 = vadd.f32 %v690, %v149
    %v692 = vadd.f32 %v691, %v150
    %v693 = vadd.f32 %v692, %v151
    %v694 = vadd.f32 %v693, %v152
    %v695 = vadd.f32 %v694, %v153
    %v696 = vadd.f32 %v695, %v154
    %v697 = vadd.f32 %v696, %v155
    %v698 = vadd.f32 %v697, %v156
    %v699 = vadd.f32 %v698, %v157
    %v700 = vadd.f32 %v699, %v158
    %v701 = vadd.f32 %v700, %v159
    %v702 = vadd.f32 %v701, %v160
    %v703 = vadd.f32 %v702, %v161
    %v704 = vadd.f32 %v703, %v162
    %v705 = vrot.slane %v704, 4
    %v706 = vadd.f32 %v704, %v705
    %v707 = vrot.slane %v706, 2
    %v708 = vadd.f32 %v706, %v707
    %v709 = vrot.slane %v708, 1
    %v710 = vadd.f32 %v708, %v709
    %v711 = vmul.f32 %v131, %v131
    %v712 = vmul.f32 %v132, %v132
    %v713 = vmul.f32 %v133, %v133
    %v714 = vmul.f32 %v134, %v134
    %v715 = vmul.f32 %v135, %v135
    %v716 = vmul.f32 %v136, %v136
    %v717 = vmul.f32 %v137, %v137
    %v718 = vmul.f32 %v138, %v138
    %v719 = vmul.f32 %v139, %v139
    %v720 = vmul.f32 %v140, %v140
    %v721 = vmul.f32 %v141, %v141
    %v722 = vmul.f32 %v142, %v142
    %v723 = vmul.f32 %v143, %v143
    %v724 = vmul.f32 %v144, %v144
    %v725 = vmul.f32 %v145, %v145
    %v726 = vmul.f32 %v146, %v146
    %v727 = vmul.f32 %v147, %v147
    %v728 = vmul.f32 %v148, %v148
    %v729 = vmul.f32 %v149, %v149
    %v730 = vmul.f32 %v150, %v150
    %v731 = vmul.f32 %v151, %v151
    %v732 = vmul.f32 %v152, %v152
    %v733 = vmul.f32 %v153, %v153
    %v734 = vmul.f32 %v154, %v154
    %v735 = vmul.f32 %v155, %v155
    %v736 = vmul.f32 %v156, %v156
    %v737 = vmul.f32 %v157, %v157
    %v738 = vmul.f32 %v158, %v158
    %v739 = vmul.f32 %v159, %v159
    %v740 = vmul.f32 %v160, %v160
    %v741 = vmul.f32 %v161, %v161
    %v742 = vmul.f32 %v162, %v162
    %v743 = vadd.f32 %v711, %v712
    %v744 = vadd.f32 %v743, %v713
    %v745 = vadd.f32 %v744, %v714
    %v746 = vadd.f32 %v745, %v715
    %v747 = vadd.f32 %v746, %v716
    %v748 = vadd.f32 %v747, %v717
    %v749 = vadd.f32 %v748, %v718
    %v750 = vadd.f32 %v749, %v719
    %v751 = vadd.f32 %v750, %v720
    %v752 = vadd.f32 %v751, %v721
    %v753 = vadd.f32 %v752, %v722
    %v754 = vadd.f32 %v753, %v723
    %v755 = vadd.f32 %v754, %v724
    %v756 = vadd.f32 %v755, %v725
    %v757 = vadd.f32 %v756, %v726
    %v758 = vadd.f32 %v757, %v727
    %v759 = vadd.f32 %v758, %v728
    %v760 = vadd.f32 %v759, %v729
    %v761 = vadd.f32 %v760, %v730
    %v762 = vadd.f32 %v761, %v731
    %v763 = vadd.f32 %v762, %v732
    %v764 = vadd.f32 %v763, %v733
    %v765 = vadd.f32 %v764, %v734
    %v766 = vadd.f32 %v765, %v735
    %v767 = vadd.f32 %v766, %v736
    %v768 = vadd.f32 %v767, %v737
    %v769 = vadd.f32 %v768, %v738
    %v770 = vadd.f32 %v769, %v739
    %v771 = vadd.f32 %v770, %v740
    %v772 = vadd.f32 %v771, %v741
    %v773 = vadd.f32 %v772, %v742
    %v774 = vrot.slane %v773, 4
    %v775 = vadd.f32 %v773, %v774
    %v776 = vrot.slane %v775, 2
    %v777 = vadd.f32 %v775, %v776
    %v778 = vrot.slane %v777, 1
    %v779 = vadd.f32 %v777, %v778
    %780 = vrot.lane.b32.xlu0 %v710, 127
    %v781 = vpop.permute.xlu0 %780
    %782 = vrot.lane.b32.xlu0 %v710, 1
    %v783 = vpop.permute.xlu0 %782
    %v784 = vsel %vm658, %v781, %v783
    %v785 = vadd.f32 %v710, %v784
    %v786 = vrcp.pop 512.0
    %v787 = vmul.f32 %v785, %v786
    %788 = vrot.lane.b32.xlu0 %v779, 127
    %v789 = vpop.permute.xlu0 %788
    %790 = vrot.lane.b32.xlu0 %v779, 1
    %v791 = vpop.permute.xlu0 %790
    %v792 = vsel %vm658, %v789, %v791
    %v793 = vadd.f32 %v779, %v792
    %v794 = vmul.f32 %v793, %v786
    %v795 = vmul.f32 %v787, %v787
    %v796 = vsub.f32 %v794, %v795
    %v797 = vmax.f32 %v796, 0.0
    %v798 = vadd.f32 %v797, 1e-05
    %v799 = vrsqrt.pop %v798
    %v800 = vlaneseq
    %v801 = vshrl.u32 %v800, 7
    %v802 = vsub.s32 0, %v801
    %v803 = vrot.slane %v787, %v802
    %v804 = vsub.f32 %v131, %v803
    %v805 = vsub.f32 %v132, %v803
    %v806 = vsub.f32 %v133, %v803
    %v807 = vsub.f32 %v134, %v803
    %v808 = vsub.f32 %v135, %v803
    %v809 = vsub.f32 %v136, %v803
    %v810 = vsub.f32 %v137, %v803
    %v811 = vsub.f32 %v138, %v803
    %v812 = vsub.f32 %v139, %v803
    %v813 = vsub.f32 %v140, %v803
    %v814 = vsub.f32 %v141, %v803
    %v815 = vsub.f32 %v142, %v803
    %v816 = vsub.f32 %v143, %v803
    %v817 = vsub.f32 %v144, %v803
    %v818 = vsub.f32 %v145, %v803
    %v819 = vsub.f32 %v146, %v803
    %v820 = vsub.f32 %v147, %v803
    %v821 = vsub.f32 %v148, %v803
    %v822 = vsub.f32 %v149, %v803
    %v823 = vsub.f32 %v150, %v803
    %v824 = vsub.f32 %v151, %v803
    %v825 = vsub.f32 %v152, %v803
    %v826 = vsub.f32 %v153, %v803
    %v827 = vsub.f32 %v154, %v803
    %v828 = vsub.f32 %v155, %v803
    %v829 = vsub.f32 %v156, %v803
    %v830 = vsub.f32 %v157, %v803
    %v831 = vsub.f32 %v158, %v803
    %v832 = vsub.f32 %v159, %v803
    %v833 = vsub.f32 %v160, %v803
    %v834 = vsub.f32 %v161, %v803
    %v835 = vsub.f32 %v162, %v803
    %v836 = vlaneseq
    %v837 = vshrl.u32 %v836, 7
    %v838 = vsub.s32 0, %v837
    %v839 = vrot.slane %v799, %v838
    %v840 = vmul.f32 %v804, %v839
    %v841 = vmul.f32 %v805, %v839
    %v842 = vmul.f32 %v806, %v839
    %v843 = vmul.f32 %v807, %v839
    %v844 = vmul.f32 %v808, %v839
    %v845 = vmul.f32 %v809, %v839
    %v846 = vmul.f32 %v810, %v839
    %v847 = vmul.f32 %v811, %v839
    %v848 = vmul.f32 %v812, %v839
    %v849 = vmul.f32 %v813, %v839
    %v850 = vmul.f32 %v814, %v839
    %v851 = vmul.f32 %v815, %v839
    %v852 = vmul.f32 %v816, %v839
    %v853 = vmul.f32 %v817, %v839
    %v854 = vmul.f32 %v818, %v839
    %v855 = vmul.f32 %v819, %v839
    %v856 = vmul.f32 %v820, %v839
    %v857 = vmul.f32 %v821, %v839
    %v858 = vmul.f32 %v822, %v839
    %v859 = vmul.f32 %v823, %v839
    %v860 = vmul.f32 %v824, %v839
    %v861 = vmul.f32 %v825, %v839
    %v862 = vmul.f32 %v826, %v839
    %v863 = vmul.f32 %v827, %v839
    %v864 = vmul.f32 %v828, %v839
    %v865 = vmul.f32 %v829, %v839
    %v866 = vmul.f32 %v830, %v839
    %v867 = vmul.f32 %v831, %v839
    %v868 = vmul.f32 %v832, %v839
    %v869 = vmul.f32 %v833, %v839
    %v870 = vmul.f32 %v834, %v839
    %v871 = vmul.f32 %v835, %v839
    %v872 = vlaneseq
    %v873 = vshrl.u32 %v872, 7
    %v874 = vsub.s32 0, %v873
    %v875 = vrot.slane %v667, %v874
    %v876 = vmul.f32 %v840, %v875
    %v877 = vmul.f32 %v841, %v875
    %v878 = vmul.f32 %v842, %v875
    %v879 = vmul.f32 %v843, %v875
    %v880 = vmul.f32 %v844, %v875
    %v881 = vmul.f32 %v845, %v875
    %v882 = vmul.f32 %v846, %v875
    %v883 = vmul.f32 %v847, %v875
    %v884 = vmul.f32 %v848, %v875
    %v885 = vmul.f32 %v849, %v875
    %v886 = vmul.f32 %v850, %v875
    %v887 = vmul.f32 %v851, %v875
    %v888 = vmul.f32 %v852, %v875
    %v889 = vmul.f32 %v853, %v875
    %v890 = vmul.f32 %v854, %v875
    %v891 = vmul.f32 %v855, %v875
    %v892 = vmul.f32 %v856, %v875
    %v893 = vmul.f32 %v857, %v875
    %v894 = vmul.f32 %v858, %v875
    %v895 = vmul.f32 %v859, %v875
    %v896 = vmul.f32 %v860, %v875
    %v897 = vmul.f32 %v861, %v875
    %v898 = vmul.f32 %v862, %v875
    %v899 = vmul.f32 %v863, %v875
    %v900 = vmul.f32 %v864, %v875
    %v901 = vmul.f32 %v865, %v875
    %v902 = vmul.f32 %v866, %v875
    %v903 = vmul.f32 %v867, %v875
    %v904 = vmul.f32 %v868, %v875
    %v905 = vmul.f32 %v869, %v875
    %v906 = vmul.f32 %v870, %v875
    %v907 = vmul.f32 %v871, %v875
    %v908 = vlaneseq
    %v909 = vshrl.u32 %v908, 7
    %v910 = vsub.s32 0, %v909
    %v911 = vrot.slane %v668, %v910
    %v912 = vadd.f32 %v876, %v911
    %v913 = vadd.f32 %v877, %v911
    %v914 = vadd.f32 %v878, %v911
    %v915 = vadd.f32 %v879, %v911
    %v916 = vadd.f32 %v880, %v911
    %v917 = vadd.f32 %v881, %v911
    %v918 = vadd.f32 %v882, %v911
    %v919 = vadd.f32 %v883, %v911
    %v920 = vadd.f32 %v884, %v911
    %v921 = vadd.f32 %v885, %v911
    %v922 = vadd.f32 %v886, %v911
    %v923 = vadd.f32 %v887, %v911
    %v924 = vadd.f32 %v888, %v911
    %v925 = vadd.f32 %v889, %v911
    %v926 = vadd.f32 %v890, %v911
    %v927 = vadd.f32 %v891, %v911
    %v928 = vadd.f32 %v892, %v911
    %v929 = vadd.f32 %v893, %v911
    %v930 = vadd.f32 %v894, %v911
    %v931 = vadd.f32 %v895, %v911
    %v932 = vadd.f32 %v896, %v911
    %v933 = vadd.f32 %v897, %v911
    %v934 = vadd.f32 %v898, %v911
    %v935 = vadd.f32 %v899, %v911
    %v936 = vadd.f32 %v900, %v911
    %v937 = vadd.f32 %v901, %v911
    %v938 = vadd.f32 %v902, %v911
    %v939 = vadd.f32 %v903, %v911
    %v940 = vadd.f32 %v904, %v911
    %v941 = vadd.f32 %v905, %v911
    %v942 = vadd.f32 %v906, %v911
    %v943 = vadd.f32 %v907, %v911
    %v944 = vxor.u32 %v912, 2147483648
    %v945 = vxor.u32 %v913, 2147483648
    %v946 = vxor.u32 %v914, 2147483648
    %v947 = vxor.u32 %v915, 2147483648
    %v948 = vxor.u32 %v916, 2147483648
    %v949 = vxor.u32 %v917, 2147483648
    %v950 = vxor.u32 %v918, 2147483648
    %v951 = vxor.u32 %v919, 2147483648
    %v952 = vxor.u32 %v920, 2147483648
    %v953 = vxor.u32 %v921, 2147483648
    %v954 = vxor.u32 %v922, 2147483648
    %v955 = vxor.u32 %v923, 2147483648
    %v956 = vxor.u32 %v924, 2147483648
    %v957 = vxor.u32 %v925, 2147483648
    %v958 = vxor.u32 %v926, 2147483648
    %v959 = vxor.u32 %v927, 2147483648
    %v960 = vxor.u32 %v928, 2147483648
    %v961 = vxor.u32 %v929, 2147483648
    %v962 = vxor.u32 %v930, 2147483648
    %v963 = vxor.u32 %v931, 2147483648
    %v964 = vxor.u32 %v932, 2147483648
    %v965 = vxor.u32 %v933, 2147483648
    %v966 = vxor.u32 %v934, 2147483648
    %v967 = vxor.u32 %v935, 2147483648
    %v968 = vxor.u32 %v936, 2147483648
    %v969 = vxor.u32 %v937, 2147483648
    %v970 = vxor.u32 %v938, 2147483648
    %v971 = vxor.u32 %v939, 2147483648
    %v972 = vxor.u32 %v940, 2147483648
    %v973 = vxor.u32 %v941, 2147483648
    %v974 = vxor.u32 %v942, 2147483648
    %v975 = vxor.u32 %v943, 2147483648
    %v976 = vmul.f32 %v944, 1.442695
    %v977 = vpow.pop %v976
    %v978 = vmul.f32 %v945, 1.442695
    %v979 = vpow.pop %v978
    %v980 = vmul.f32 %v946, 1.442695
    %v981 = vpow.pop %v980
    %v982 = vmul.f32 %v947, 1.442695
    %v983 = vpow.pop %v982
    %v984 = vmul.f32 %v948, 1.442695
    %v985 = vpow.pop %v984
    %v986 = vmul.f32 %v949, 1.442695
    %v987 = vpow.pop %v986
    %v988 = vmul.f32 %v950, 1.442695
    %v989 = vpow.pop %v988
    %v990 = vmul.f32 %v951, 1.442695
    %v991 = vpow.pop %v990
    %v992 = vmul.f32 %v952, 1.442695
    %v993 = vpow.pop %v992
    %v994 = vmul.f32 %v953, 1.442695
    %v995 = vpow.pop %v994
    %v996 = vmul.f32 %v954, 1.442695
    %v997 = vpow.pop %v996
    %v998 = vmul.f32 %v955, 1.442695
    %v999 = vpow.pop %v998
    %v1000 = vmul.f32 %v956, 1.442695
    %v1001 = vpow.pop %v1000
    %v1002 = vmul.f32 %v957, 1.442695
    %v1003 = vpow.pop %v1002
    %v1004 = vmul.f32 %v958, 1.442695
    %v1005 = vpow.pop %v1004
    %v1006 = vmul.f32 %v959, 1.442695
    %v1007 = vpow.pop %v1006
    %v1008 = vmul.f32 %v960, 1.442695
    %v1009 = vpow.pop %v1008
    %v1010 = vmul.f32 %v961, 1.442695
    %v1011 = vpow.pop %v1010
    %v1012 = vmul.f32 %v962, 1.442695
    %v1013 = vpow.pop %v1012
    %v1014 = vmul.f32 %v963, 1.442695
    %v1015 = vpow.pop %v1014
    %v1016 = vmul.f32 %v964, 1.442695
    %v1017 = vpow.pop %v1016
    %v1018 = vmul.f32 %v965, 1.442695
    %v1019 = vpow.pop %v1018
    %v1020 = vmul.f32 %v966, 1.442695
    %v1021 = vpow.pop %v1020
    %v1022 = vmul.f32 %v967, 1.442695
    %v1023 = vpow.pop %v1022
    %v1024 = vmul.f32 %v968, 1.442695
    %v1025 = vpow.pop %v1024
    %v1026 = vmul.f32 %v969, 1.442695
    %v1027 = vpow.pop %v1026
    %v1028 = vmul.f32 %v970, 1.442695
    %v1029 = vpow.pop %v1028
    %v1030 = vmul.f32 %v971, 1.442695
    %v1031 = vpow.pop %v1030
    %v1032 = vmul.f32 %v972, 1.442695
    %v1033 = vpow.pop %v1032
    %v1034 = vmul.f32 %v973, 1.442695
    %v1035 = vpow.pop %v1034
    %v1036 = vmul.f32 %v974, 1.442695
    %v1037 = vpow.pop %v1036
    %v1038 = vmul.f32 %v975, 1.442695
    %v1039 = vpow.pop %v1038
    %v1040 = vadd.f32 %v977, 1.0
    %v1041 = vadd.f32 %v979, 1.0
    %v1042 = vadd.f32 %v981, 1.0
    %v1043 = vadd.f32 %v983, 1.0
    %v1044 = vadd.f32 %v985, 1.0
    %v1045 = vadd.f32 %v987, 1.0
    %v1046 = vadd.f32 %v989, 1.0
    %v1047 = vadd.f32 %v991, 1.0
    %v1048 = vadd.f32 %v993, 1.0
    %v1049 = vadd.f32 %v995, 1.0
    %v1050 = vadd.f32 %v997, 1.0
    %v1051 = vadd.f32 %v999, 1.0
    %v1052 = vadd.f32 %v1001, 1.0
    %v1053 = vadd.f32 %v1003, 1.0
    %v1054 = vadd.f32 %v1005, 1.0
    %v1055 = vadd.f32 %v1007, 1.0
    %v1056 = vadd.f32 %v1009, 1.0
    %v1057 = vadd.f32 %v1011, 1.0
    %v1058 = vadd.f32 %v1013, 1.0
    %v1059 = vadd.f32 %v1015, 1.0
    %v1060 = vadd.f32 %v1017, 1.0
    %v1061 = vadd.f32 %v1019, 1.0
    %v1062 = vadd.f32 %v1021, 1.0
    %v1063 = vadd.f32 %v1023, 1.0
    %v1064 = vadd.f32 %v1025, 1.0
    %v1065 = vadd.f32 %v1027, 1.0
    %v1066 = vadd.f32 %v1029, 1.0
    %v1067 = vadd.f32 %v1031, 1.0
    %v1068 = vadd.f32 %v1033, 1.0
    %v1069 = vadd.f32 %v1035, 1.0
    %v1070 = vadd.f32 %v1037, 1.0
    %v1071 = vadd.f32 %v1039, 1.0
    %v1072 = vrcp.pop %v1040
    %v1073 = vmul.f32 1.0, %v1072
    %v1074 = vrcp.pop %v1041
    %v1075 = vmul.f32 1.0, %v1074
    %v1076 = vrcp.pop %v1042
    %v1077 = vmul.f32 1.0, %v1076
    %v1078 = vrcp.pop %v1043
    %v1079 = vmul.f32 1.0, %v1078
    %v1080 = vrcp.pop %v1044
    %v1081 = vmul.f32 1.0, %v1080
    %v1082 = vrcp.pop %v1045
    %v1083 = vmul.f32 1.0, %v1082
    %v1084 = vrcp.pop %v1046
    %v1085 = vmul.f32 1.0, %v1084
    %v1086 = vrcp.pop %v1047
    %v1087 = vmul.f32 1.0, %v1086
    %v1088 = vrcp.pop %v1048
    %v1089 = vmul.f32 1.0, %v1088
    %v1090 = vrcp.pop %v1049
    %v1091 = vmul.f32 1.0, %v1090
    %v1092 = vrcp.pop %v1050
    %v1093 = vmul.f32 1.0, %v1092
    %v1094 = vrcp.pop %v1051
    %v1095 = vmul.f32 1.0, %v1094
    %v1096 = vrcp.pop %v1052
    %v1097 = vmul.f32 1.0, %v1096
    %v1098 = vrcp.pop %v1053
    %v1099 = vmul.f32 1.0, %v1098
    %v1100 = vrcp.pop %v1054
    %v1101 = vmul.f32 1.0, %v1100
    %v1102 = vrcp.pop %v1055
    %v1103 = vmul.f32 1.0, %v1102
    %v1104 = vrcp.pop %v1056
    %v1105 = vmul.f32 1.0, %v1104
    %v1106 = vrcp.pop %v1057
    %v1107 = vmul.f32 1.0, %v1106
    %v1108 = vrcp.pop %v1058
    %v1109 = vmul.f32 1.0, %v1108
    %v1110 = vrcp.pop %v1059
    %v1111 = vmul.f32 1.0, %v1110
    %v1112 = vrcp.pop %v1060
    %v1113 = vmul.f32 1.0, %v1112
    %v1114 = vrcp.pop %v1061
    %v1115 = vmul.f32 1.0, %v1114
    %v1116 = vrcp.pop %v1062
    %v1117 = vmul.f32 1.0, %v1116
    %v1118 = vrcp.pop %v1063
    %v1119 = vmul.f32 1.0, %v1118
    %v1120 = vrcp.pop %v1064
    %v1121 = vmul.f32 1.0, %v1120
    %v1122 = vrcp.pop %v1065
    %v1123 = vmul.f32 1.0, %v1122
    %v1124 = vrcp.pop %v1066
    %v1125 = vmul.f32 1.0, %v1124
    %v1126 = vrcp.pop %v1067
    %v1127 = vmul.f32 1.0, %v1126
    %v1128 = vrcp.pop %v1068
    %v1129 = vmul.f32 1.0, %v1128
    %v1130 = vrcp.pop %v1069
    %v1131 = vmul.f32 1.0, %v1130
    %v1132 = vrcp.pop %v1070
    %v1133 = vmul.f32 1.0, %v1132
    %v1134 = vrcp.pop %v1071
    %v1135 = vmul.f32 1.0, %v1134
    %v1136 = vmul.f32 %v912, %v1073
    %v1137 = vmul.f32 %v913, %v1075
    %v1138 = vmul.f32 %v914, %v1077
    %v1139 = vmul.f32 %v915, %v1079
    %v1140 = vmul.f32 %v916, %v1081
    %v1141 = vmul.f32 %v917, %v1083
    %v1142 = vmul.f32 %v918, %v1085
    %v1143 = vmul.f32 %v919, %v1087
    %v1144 = vmul.f32 %v920, %v1089
    %v1145 = vmul.f32 %v921, %v1091
    %v1146 = vmul.f32 %v922, %v1093
    %v1147 = vmul.f32 %v923, %v1095
    %v1148 = vmul.f32 %v924, %v1097
    %v1149 = vmul.f32 %v925, %v1099
    %v1150 = vmul.f32 %v926, %v1101
    %v1151 = vmul.f32 %v927, %v1103
    %v1152 = vmul.f32 %v928, %v1105
    %v1153 = vmul.f32 %v929, %v1107
    %v1154 = vmul.f32 %v930, %v1109
    %v1155 = vmul.f32 %v931, %v1111
    %v1156 = vmul.f32 %v932, %v1113
    %v1157 = vmul.f32 %v933, %v1115
    %v1158 = vmul.f32 %v934, %v1117
    %v1159 = vmul.f32 %v935, %v1119
    %v1160 = vmul.f32 %v936, %v1121
    %v1161 = vmul.f32 %v937, %v1123
    %v1162 = vmul.f32 %v938, %v1125
    %v1163 = vmul.f32 %v939, %v1127
    %v1164 = vmul.f32 %v940, %v1129
    %v1165 = vmul.f32 %v941, %v1131
    %v1166 = vmul.f32 %v942, %v1133
    %v1167 = vmul.f32 %v943, %v1135
    %v1168 = vld [vmem:[#allocation14] sm:$0xf]
    %v1169 = vld [vmem:[#allocation14 + $0x4] sm:$0xf]
    %v1170 = vld [vmem:[#allocation14 + $0x8] sm:$0xf]
    %v1171 = vld [vmem:[#allocation14 + $0xc] sm:$0xf]
    %v1172 = vld [vmem:[#allocation14 + $0x10] sm:$0xf]
    %v1173 = vld [vmem:[#allocation14 + $0x14] sm:$0xf]
    %v1174 = vld [vmem:[#allocation14 + $0x18] sm:$0xf]
    %v1175 = vld [vmem:[#allocation14 + $0x1c] sm:$0xf]
    %v1176 = vld [vmem:[#allocation14 + $0x20] sm:$0xf]
    %v1177 = vld [vmem:[#allocation14 + $0x24] sm:$0xf]
    %v1178 = vld [vmem:[#allocation14 + $0x28] sm:$0xf]
    %v1179 = vld [vmem:[#allocation14 + $0x2c] sm:$0xf]
    %v1180 = vld [vmem:[#allocation14 + $0x30] sm:$0xf]
    %v1181 = vld [vmem:[#allocation14 + $0x34] sm:$0xf]
    %v1182 = vld [vmem:[#allocation14 + $0x38] sm:$0xf]
    %v1183 = vld [vmem:[#allocation14 + $0x3c] sm:$0xf]
    %v1184 = vld [vmem:[#allocation14 + $0x40] sm:$0xf]
    %v1185 = vld [vmem:[#allocation14 + $0x44] sm:$0xf]
    %v1186 = vld [vmem:[#allocation14 + $0x48] sm:$0xf]
    %v1187 = vld [vmem:[#allocation14 + $0x4c] sm:$0xf]
    %v1188 = vld [vmem:[#allocation14 + $0x50] sm:$0xf]
    %v1189 = vld [vmem:[#allocation14 + $0x54] sm:$0xf]
    %v1190 = vld [vmem:[#allocation14 + $0x58] sm:$0xf]
    %v1191 = vld [vmem:[#allocation14 + $0x5c] sm:$0xf]
    %v1192 = vld [vmem:[#allocation14 + $0x60] sm:$0xf]
    %v1193 = vld [vmem:[#allocation14 + $0x64] sm:$0xf]
    %v1194 = vld [vmem:[#allocation14 + $0x68] sm:$0xf]
    %v1195 = vld [vmem:[#allocation14 + $0x6c] sm:$0xf]
    %v1196 = vld [vmem:[#allocation14 + $0x70] sm:$0xf]
    %v1197 = vld [vmem:[#allocation14 + $0x74] sm:$0xf]
    %v1198 = vld [vmem:[#allocation14 + $0x78] sm:$0xf]
    %v1199 = vld [vmem:[#allocation14 + $0x7c] sm:$0xf]
    %v1200 = vld [vmem:[#allocation14 + $0x80] sm:$0xf]
    %v1201 = vld [vmem:[#allocation14 + $0x84] sm:$0xf]
    %v1202 = vld [vmem:[#allocation14 + $0x88] sm:$0xf]
    %v1203 = vld [vmem:[#allocation14 + $0x8c] sm:$0xf]
    %v1204 = vld [vmem:[#allocation14 + $0x90] sm:$0xf]
    %v1205 = vld [vmem:[#allocation14 + $0x94] sm:$0xf]
    %v1206 = vld [vmem:[#allocation14 + $0x98] sm:$0xf]
    %v1207 = vld [vmem:[#allocation14 + $0x9c] sm:$0xf]
    %v1208 = vld [vmem:[#allocation14 + $0xa0] sm:$0xf]
    %v1209 = vld [vmem:[#allocation14 + $0xa4] sm:$0xf]
    %v1210 = vld [vmem:[#allocation14 + $0xa8] sm:$0xf]
    %v1211 = vld [vmem:[#allocation14 + $0xac] sm:$0xf]
    %v1212 = vld [vmem:[#allocation14 + $0xb0] sm:$0xf]
    %v1213 = vld [vmem:[#allocation14 + $0xb4] sm:$0xf]
    %v1214 = vld [vmem:[#allocation14 + $0xb8] sm:$0xf]
    %v1215 = vld [vmem:[#allocation14 + $0xbc] sm:$0xf]
    %v1216 = vld [vmem:[#allocation14 + $0xc0] sm:$0xf]
    %v1217 = vld [vmem:[#allocation14 + $0xc4] sm:$0xf]
    %v1218 = vld [vmem:[#allocation14 + $0xc8] sm:$0xf]
    %v1219 = vld [vmem:[#allocation14 + $0xcc] sm:$0xf]
    %v1220 = vld [vmem:[#allocation14 + $0xd0] sm:$0xf]
    %v1221 = vld [vmem:[#allocation14 + $0xd4] sm:$0xf]
    %v1222 = vld [vmem:[#allocation14 + $0xd8] sm:$0xf]
    %v1223 = vld [vmem:[#allocation14 + $0xdc] sm:$0xf]
    %v1224 = vld [vmem:[#allocation14 + $0xe0] sm:$0xf]
    %v1225 = vld [vmem:[#allocation14 + $0xe4] sm:$0xf]
    %v1226 = vld [vmem:[#allocation14 + $0xe8] sm:$0xf]
    %v1227 = vld [vmem:[#allocation14 + $0xec] sm:$0xf]
    %v1228 = vld [vmem:[#allocation14 + $0xf0] sm:$0xf]
    %v1229 = vld [vmem:[#allocation14 + $0xf4] sm:$0xf]
    %v1230 = vld [vmem:[#allocation14 + $0xf8] sm:$0xf]
    %v1231 = vld [vmem:[#allocation14 + $0xfc] sm:$0xf]
    %v1232 = vld [vmem:[#allocation14 + $0x100] sm:$0xf]
    %v1233 = vld [vmem:[#allocation14 + $0x104] sm:$0xf]
    %v1234 = vld [vmem:[#allocation14 + $0x108] sm:$0xf]
    %v1235 = vld [vmem:[#allocation14 + $0x10c] sm:$0xf]
    %v1236 = vld [vmem:[#allocation14 + $0x110] sm:$0xf]
    %v1237 = vld [vmem:[#allocation14 + $0x114] sm:$0xf]
    %v1238 = vld [vmem:[#allocation14 + $0x118] sm:$0xf]
    %v1239 = vld [vmem:[#allocation14 + $0x11c] sm:$0xf]
    %v1240 = vld [vmem:[#allocation14 + $0x120] sm:$0xf]
    %v1241 = vld [vmem:[#allocation14 + $0x124] sm:$0xf]
    %v1242 = vld [vmem:[#allocation14 + $0x128] sm:$0xf]
    %v1243 = vld [vmem:[#allocation14 + $0x12c] sm:$0xf]
    %v1244 = vld [vmem:[#allocation14 + $0x130] sm:$0xf]
    %v1245 = vld [vmem:[#allocation14 + $0x134] sm:$0xf]
    %v1246 = vld [vmem:[#allocation14 + $0x138] sm:$0xf]
    %v1247 = vld [vmem:[#allocation14 + $0x13c] sm:$0xf]
    %v1248 = vld [vmem:[#allocation14 + $0x140] sm:$0xf]
    %v1249 = vld [vmem:[#allocation14 + $0x144] sm:$0xf]
    %v1250 = vld [vmem:[#allocation14 + $0x148] sm:$0xf]
    %v1251 = vld [vmem:[#allocation14 + $0x14c] sm:$0xf]
    %v1252 = vld [vmem:[#allocation14 + $0x150] sm:$0xf]
    %v1253 = vld [vmem:[#allocation14 + $0x154] sm:$0xf]
    %v1254 = vld [vmem:[#allocation14 + $0x158] sm:$0xf]
    %v1255 = vld [vmem:[#allocation14 + $0x15c] sm:$0xf]
    %v1256 = vld [vmem:[#allocation14 + $0x160] sm:$0xf]
    %v1257 = vld [vmem:[#allocation14 + $0x164] sm:$0xf]
    %v1258 = vld [vmem:[#allocation14 + $0x168] sm:$0xf]
    %v1259 = vld [vmem:[#allocation14 + $0x16c] sm:$0xf]
    %v1260 = vld [vmem:[#allocation14 + $0x170] sm:$0xf]
    %v1261 = vld [vmem:[#allocation14 + $0x174] sm:$0xf]
    %v1262 = vld [vmem:[#allocation14 + $0x178] sm:$0xf]
    %v1263 = vld [vmem:[#allocation14 + $0x17c] sm:$0xf]
    %v1264 = vld [vmem:[#allocation14 + $0x180] sm:$0xf]
    %v1265 = vld [vmem:[#allocation14 + $0x184] sm:$0xf]
    %v1266 = vld [vmem:[#allocation14 + $0x188] sm:$0xf]
    %v1267 = vld [vmem:[#allocation14 + $0x18c] sm:$0xf]
    %v1268 = vld [vmem:[#allocation14 + $0x190] sm:$0xf]
    %v1269 = vld [vmem:[#allocation14 + $0x194] sm:$0xf]
    %v1270 = vld [vmem:[#allocation14 + $0x198] sm:$0xf]
    %v1271 = vld [vmem:[#allocation14 + $0x19c] sm:$0xf]
    %v1272 = vld [vmem:[#allocation14 + $0x1a0] sm:$0xf]
    %v1273 = vld [vmem:[#allocation14 + $0x1a4] sm:$0xf]
    %v1274 = vld [vmem:[#allocation14 + $0x1a8] sm:$0xf]
    %v1275 = vld [vmem:[#allocation14 + $0x1ac] sm:$0xf]
    %v1276 = vld [vmem:[#allocation14 + $0x1b0] sm:$0xf]
    %v1277 = vld [vmem:[#allocation14 + $0x1b4] sm:$0xf]
    %v1278 = vld [vmem:[#allocation14 + $0x1b8] sm:$0xf]
    %v1279 = vld [vmem:[#allocation14 + $0x1bc] sm:$0xf]
    %v1280 = vld [vmem:[#allocation14 + $0x1c0] sm:$0xf]
    %v1281 = vld [vmem:[#allocation14 + $0x1c4] sm:$0xf]
    %v1282 = vld [vmem:[#allocation14 + $0x1c8] sm:$0xf]
    %v1283 = vld [vmem:[#allocation14 + $0x1cc] sm:$0xf]
    %v1284 = vld [vmem:[#allocation14 + $0x1d0] sm:$0xf]
    %v1285 = vld [vmem:[#allocation14 + $0x1d4] sm:$0xf]
    %v1286 = vld [vmem:[#allocation14 + $0x1d8] sm:$0xf]
    %v1287 = vld [vmem:[#allocation14 + $0x1dc] sm:$0xf]
    %v1288 = vld [vmem:[#allocation14 + $0x1e0] sm:$0xf]
    %v1289 = vld [vmem:[#allocation14 + $0x1e4] sm:$0xf]
    %v1290 = vld [vmem:[#allocation14 + $0x1e8] sm:$0xf]
    %v1291 = vld [vmem:[#allocation14 + $0x1ec] sm:$0xf]
    %v1292 = vld [vmem:[#allocation14 + $0x1f0] sm:$0xf]
    %v1293 = vld [vmem:[#allocation14 + $0x1f4] sm:$0xf]
    %v1294 = vld [vmem:[#allocation14 + $0x1f8] sm:$0xf]
    %v1295 = vld [vmem:[#allocation14 + $0x1fc] sm:$0xf]
    %v1296 = vld [vmem:[#allocation14 + $0x200] sm:$0xf]
    %v1297 = vld [vmem:[#allocation14 + $0x204] sm:$0xf]
    %v1298 = vld [vmem:[#allocation14 + $0x208] sm:$0xf]
    %v1299 = vld [vmem:[#allocation14 + $0x20c] sm:$0xf]
    %v1300 = vld [vmem:[#allocation14 + $0x210] sm:$0xf]
    %v1301 = vld [vmem:[#allocation14 + $0x214] sm:$0xf]
    %v1302 = vld [vmem:[#allocation14 + $0x218] sm:$0xf]
    %v1303 = vld [vmem:[#allocation14 + $0x21c] sm:$0xf]
    %v1304 = vld [vmem:[#allocation14 + $0x220] sm:$0xf]
    %v1305 = vld [vmem:[#allocation14 + $0x224] sm:$0xf]
    %v1306 = vld [vmem:[#allocation14 + $0x228] sm:$0xf]
    %v1307 = vld [vmem:[#allocation14 + $0x22c] sm:$0xf]
    %v1308 = vld [vmem:[#allocation14 + $0x230] sm:$0xf]
    %v1309 = vld [vmem:[#allocation14 + $0x234] sm:$0xf]
    %v1310 = vld [vmem:[#allocation14 + $0x238] sm:$0xf]
    %v1311 = vld [vmem:[#allocation14 + $0x23c] sm:$0xf]
    %1312 = vst [vmem:[#allocation2 + $0x20] sm:$0xff] %v1136
    %1313 = vst [vmem:[#allocation2 + $0x28] sm:$0xff] %v1137
    %1314 = vst [vmem:[#allocation2 + $0x30] sm:$0xff] %v1138
    %1315 = vst [vmem:[#allocation2 + $0x38] sm:$0xff] %v1139
    %1316 = vst [vmem:[#allocation2 + $0x40] sm:$0xff] %v1140
    %1317 = vst [vmem:[#allocation2 + $0x48] sm:$0xff] %v1141
    %1318 = vst [vmem:[#allocation2 + $0x50] sm:$0xff] %v1142
    %1319 = vst [vmem:[#allocation2 + $0x58] sm:$0xff] %v1143
    %1320 = vst [vmem:[#allocation2 + $0x60] sm:$0xff] %v1144
    %1321 = vst [vmem:[#allocation2 + $0x68] sm:$0xff] %v1145
    %1322 = vst [vmem:[#allocation2 + $0x70] sm:$0xff] %v1146
    %1323 = vst [vmem:[#allocation2 + $0x78] sm:$0xff] %v1147
    %1324 = vst [vmem:[#allocation2 + $0x80] sm:$0xff] %v1148
    %1325 = vst [vmem:[#allocation2 + $0x88] sm:$0xff] %v1149
    %1326 = vst [vmem:[#allocation2 + $0x90] sm:$0xff] %v1150
    %1327 = vst [vmem:[#allocation2 + $0x98] sm:$0xff] %v1151
    %1328 = vst [vmem:[#allocation2 + $0xa0] sm:$0xff] %v1152
    %1329 = vst [vmem:[#allocation2 + $0xa8] sm:$0xff] %v1153
    %1330 = vst [vmem:[#allocation2 + $0xb0] sm:$0xff] %v1154
    %1331 = vst [vmem:[#allocation2 + $0xb8] sm:$0xff] %v1155
    %1332 = vst [vmem:[#allocation2 + $0xc0] sm:$0xff] %v1156
    %1333 = vst [vmem:[#allocation2 + $0xc8] sm:$0xff] %v1157
    %1334 = vst [vmem:[#allocation2 + $0xd0] sm:$0xff] %v1158
    %1335 = vst [vmem:[#allocation2 + $0xd8] sm:$0xff] %v1159
    %1336 = vst [vmem:[#allocation2 + $0xe0] sm:$0xff] %v1160
    %1337 = vst [vmem:[#allocation2 + $0xe8] sm:$0xff] %v1161
    %1338 = vst [vmem:[#allocation2 + $0xf0] sm:$0xff] %v1162
    %1339 = vst [vmem:[#allocation2 + $0xf8] sm:$0xff] %v1163
    %1340 = vst [vmem:[#allocation2 + $0x100] sm:$0xff] %v1164
    %1341 = vst [vmem:[#allocation2 + $0x108] sm:$0xff] %v1165
    %1342 = vst [vmem:[#allocation2 + $0x110] sm:$0xff] %v1166
    %1343 = vst [vmem:[#allocation2 + $0x118] sm:$0xff] %v1167
    %v1344 = vld [vmem:[#allocation2 + $0xf] sm:$0xff]
    %v1345 = vld [vmem:[#allocation2 + $0x17] sm:$0xff]
    %v1346 = vld [vmem:[#allocation2 + $0x1f] sm:$0xff]
    %v1347 = vld [vmem:[#allocation2 + $0x27] sm:$0xff]
    %v1348 = vld [vmem:[#allocation2 + $0x2f] sm:$0xff]
    %v1349 = vld [vmem:[#allocation2 + $0x37] sm:$0xff]
    %v1350 = vld [vmem:[#allocation2 + $0x3f] sm:$0xff]
    %v1351 = vld [vmem:[#allocation2 + $0x47] sm:$0xff]
    %v1352 = vld [vmem:[#allocation2 + $0x4f] sm:$0xff]
    %v1353 = vld [vmem:[#allocation2 + $0x57] sm:$0xff]
    %v1354 = vld [vmem:[#allocation2 + $0x5f] sm:$0xff]
    %v1355 = vld [vmem:[#allocation2 + $0x67] sm:$0xff]
    %v1356 = vld [vmem:[#allocation2 + $0x6f] sm:$0xff]
    %v1357 = vld [vmem:[#allocation2 + $0x77] sm:$0xff]
    %v1358 = vld [vmem:[#allocation2 + $0x7f] sm:$0xff]
    %v1359 = vld [vmem:[#allocation2 + $0x87] sm:$0xff]
    %v1360 = vld [vmem:[#allocation2 + $0x8f] sm:$0xff]
    %v1361 = vld [vmem:[#allocation2 + $0x97] sm:$0xff]
    %v1362 = vld [vmem:[#allocation2 + $0x9f] sm:$0xff]
    %v1363 = vld [vmem:[#allocation2 + $0xa7] sm:$0xff]
    %v1364 = vld [vmem:[#allocation2 + $0xaf] sm:$0xff]
    %v1365 = vld [vmem:[#allocation2 + $0xb7] sm:$0xff]
    %v1366 = vld [vmem:[#allocation2 + $0xbf] sm:$0xff]
    %v1367 = vld [vmem:[#allocation2 + $0xc7] sm:$0xff]
    %v1368 = vld [vmem:[#allocation2 + $0xcf] sm:$0xff]
    %v1369 = vld [vmem:[#allocation2 + $0xd7] sm:$0xff]
    %v1370 = vld [vmem:[#allocation2 + $0xdf] sm:$0xff]
    %v1371 = vld [vmem:[#allocation2 + $0xe7] sm:$0xff]
    %v1372 = vld [vmem:[#allocation2 + $0xef] sm:$0xff]
    %v1373 = vld [vmem:[#allocation2 + $0xf7] sm:$0xff]
    %v1374 = vld [vmem:[#allocation2 + $0xff] sm:$0xff]
    %v1375 = vld [vmem:[#allocation2 + $0x107] sm:$0xff]
    %v1376 = vsel %vm580, %v1344, 0.0
    %v1377 = vsel %vm581, %v1345, 0.0
    %v1378 = vsel %vm582, %v1346, 0.0
    %v1379 = vsel %vm583, %v1347, 0.0
    %v1380 = vsel %vm584, %v1348, 0.0
    %v1381 = vsel %vm585, %v1349, 0.0
    %v1382 = vsel %vm586, %v1350, 0.0
    %v1383 = vsel %vm587, %v1351, 0.0
    %v1384 = vsel %vm588, %v1352, 0.0
    %v1385 = vsel %vm589, %v1353, 0.0
    %v1386 = vsel %vm590, %v1354, 0.0
    %v1387 = vsel %vm591, %v1355, 0.0
    %v1388 = vsel %vm592, %v1356, 0.0
    %v1389 = vsel %vm593, %v1357, 0.0
    %v1390 = vsel %vm594, %v1358, 0.0
    %v1391 = vsel %vm595, %v1359, 0.0
    %v1392 = vsel %vm596, %v1360, 0.0
    %v1393 = vsel %vm597, %v1361, 0.0
    %v1394 = vsel %vm598, %v1362, 0.0
    %v1395 = vsel %vm599, %v1363, 0.0
    %v1396 = vsel %vm600, %v1364, 0.0
    %v1397 = vsel %vm601, %v1365, 0.0
    %v1398 = vsel %vm602, %v1366, 0.0
    %v1399 = vsel %vm603, %v1367, 0.0
    %v1400 = vsel %vm604, %v1368, 0.0
    %v1401 = vsel %vm605, %v1369, 0.0
    %v1402 = vsel %vm606, %v1370, 0.0
    %v1403 = vsel %vm607, %v1371, 0.0
    %v1404 = vsel %vm608, %v1372, 0.0
    %v1405 = vsel %vm609, %v1373, 0.0
    %v1406 = vsel %vm610, %v1374, 0.0
    %v1407 = vsel %vm611, %v1375, 0.0
    %v1408 = vpack.c.bf16 %v1377, %v1376
    %v1409 = vpack.c.bf16 %v1379, %v1378
    %v1410 = vpack.c.bf16 %v1381, %v1380
    %v1411 = vpack.c.bf16 %v1383, %v1382
    %v1412 = vpack.c.bf16 %v1385, %v1384
    %v1413 = vpack.c.bf16 %v1387, %v1386
    %v1414 = vpack.c.bf16 %v1389, %v1388
    %v1415 = vpack.c.bf16 %v1391, %v1390
    %v1416 = vpack.c.bf16 %v1393, %v1392
    %v1417 = vpack.c.bf16 %v1395, %v1394
    %v1418 = vpack.c.bf16 %v1397, %v1396
    %v1419 = vpack.c.bf16 %v1399, %v1398
    %v1420 = vpack.c.bf16 %v1401, %v1400
    %v1421 = vpack.c.bf16 %v1403, %v1402
    %v1422 = vpack.c.bf16 %v1405, %v1404
    %v1423 = vpack.c.bf16 %v1407, %v1406
    %v1424 = vld [vmem:[#allocation2 + $0x10] sm:$0xff]
    %v1425 = vld [vmem:[#allocation2 + $0x18] sm:$0xff]
    %v1426 = vld [vmem:[#allocation2 + $0x20] sm:$0xff]
    %v1427 = vld [vmem:[#allocation2 + $0x28] sm:$0xff]
    %v1428 = vld [vmem:[#allocation2 + $0x30] sm:$0xff]
    %v1429 = vld [vmem:[#allocation2 + $0x38] sm:$0xff]
    %v1430 = vld [vmem:[#allocation2 + $0x40] sm:$0xff]
    %v1431 = vld [vmem:[#allocation2 + $0x48] sm:$0xff]
    %v1432 = vld [vmem:[#allocation2 + $0x50] sm:$0xff]
    %v1433 = vld [vmem:[#allocation2 + $0x58] sm:$0xff]
    %v1434 = vld [vmem:[#allocation2 + $0x60] sm:$0xff]
    %v1435 = vld [vmem:[#allocation2 + $0x68] sm:$0xff]
    %v1436 = vld [vmem:[#allocation2 + $0x70] sm:$0xff]
    %v1437 = vld [vmem:[#allocation2 + $0x78] sm:$0xff]
    %v1438 = vld [vmem:[#allocation2 + $0x80] sm:$0xff]
    %v1439 = vld [vmem:[#allocation2 + $0x88] sm:$0xff]
    %v1440 = vld [vmem:[#allocation2 + $0x90] sm:$0xff]
    %v1441 = vld [vmem:[#allocation2 + $0x98] sm:$0xff]
    %v1442 = vld [vmem:[#allocation2 + $0xa0] sm:$0xff]
    %v1443 = vld [vmem:[#allocation2 + $0xa8] sm:$0xff]
    %v1444 = vld [vmem:[#allocation2 + $0xb0] sm:$0xff]
    %v1445 = vld [vmem:[#allocation2 + $0xb8] sm:$0xff]
    %v1446 = vld [vmem:[#allocation2 + $0xc0] sm:$0xff]
    %v1447 = vld [vmem:[#allocation2 + $0xc8] sm:$0xff]
    %v1448 = vld [vmem:[#allocation2 + $0xd0] sm:$0xff]
    %v1449 = vld [vmem:[#allocation2 + $0xd8] sm:$0xff]
    %v1450 = vld [vmem:[#allocation2 + $0xe0] sm:$0xff]
    %v1451 = vld [vmem:[#allocation2 + $0xe8] sm:$0xff]
    %v1452 = vld [vmem:[#allocation2 + $0xf0] sm:$0xff]
    %v1453 = vld [vmem:[#allocation2 + $0xf8] sm:$0xff]
    %v1454 = vld [vmem:[#allocation2 + $0x100] sm:$0xff]
    %v1455 = vld [vmem:[#allocation2 + $0x108] sm:$0xff]
    %v1456 = vpack.c.bf16 %v1425, %v1424
    %v1457 = vpack.c.bf16 %v1427, %v1426
    %v1458 = vpack.c.bf16 %v1429, %v1428
    %v1459 = vpack.c.bf16 %v1431, %v1430
    %v1460 = vpack.c.bf16 %v1433, %v1432
    %v1461 = vpack.c.bf16 %v1435, %v1434
    %v1462 = vpack.c.bf16 %v1437, %v1436
    %v1463 = vpack.c.bf16 %v1439, %v1438
    %v1464 = vpack.c.bf16 %v1441, %v1440
    %v1465 = vpack.c.bf16 %v1443, %v1442
    %v1466 = vpack.c.bf16 %v1445, %v1444
    %v1467 = vpack.c.bf16 %v1447, %v1446
    %v1468 = vpack.c.bf16 %v1449, %v1448
    %v1469 = vpack.c.bf16 %v1451, %v1450
    %v1470 = vpack.c.bf16 %v1453, %v1452
    %v1471 = vpack.c.bf16 %v1455, %v1454
    %v1472 = vld [vmem:[#allocation2 + $0x11] sm:$0xff]
    %v1473 = vld [vmem:[#allocation2 + $0x19] sm:$0xff]
    %v1474 = vld [vmem:[#allocation2 + $0x21] sm:$0xff]
    %v1475 = vld [vmem:[#allocation2 + $0x29] sm:$0xff]
    %v1476 = vld [vmem:[#allocation2 + $0x31] sm:$0xff]
    %v1477 = vld [vmem:[#allocation2 + $0x39] sm:$0xff]
    %v1478 = vld [vmem:[#allocation2 + $0x41] sm:$0xff]
    %v1479 = vld [vmem:[#allocation2 + $0x49] sm:$0xff]
    %v1480 = vld [vmem:[#allocation2 + $0x51] sm:$0xff]
    %v1481 = vld [vmem:[#allocation2 + $0x59] sm:$0xff]
    %v1482 = vld [vmem:[#allocation2 + $0x61] sm:$0xff]
    %v1483 = vld [vmem:[#allocation2 + $0x69] sm:$0xff]
    %v1484 = vld [vmem:[#allocation2 + $0x71] sm:$0xff]
    %v1485 = vld [vmem:[#allocation2 + $0x79] sm:$0xff]
    %v1486 = vld [vmem:[#allocation2 + $0x81] sm:$0xff]
    %v1487 = vld [vmem:[#allocation2 + $0x89] sm:$0xff]
    %v1488 = vld [vmem:[#allocation2 + $0x91] sm:$0xff]
    %v1489 = vld [vmem:[#allocation2 + $0x99] sm:$0xff]
    %v1490 = vld [vmem:[#allocation2 + $0xa1] sm:$0xff]
    %v1491 = vld [vmem:[#allocation2 + $0xa9] sm:$0xff]
    %v1492 = vld [vmem:[#allocation2 + $0xb1] sm:$0xff]
    %v1493 = vld [vmem:[#allocation2 + $0xb9] sm:$0xff]
    %v1494 = vld [vmem:[#allocation2 + $0xc1] sm:$0xff]
    %v1495 = vld [vmem:[#allocation2 + $0xc9] sm:$0xff]
    %v1496 = vld [vmem:[#allocation2 + $0xd1] sm:$0xff]
    %v1497 = vld [vmem:[#allocation2 + $0xd9] sm:$0xff]
    %v1498 = vld [vmem:[#allocation2 + $0xe1] sm:$0xff]
    %v1499 = vld [vmem:[#allocation2 + $0xe9] sm:$0xff]
    %v1500 = vld [vmem:[#allocation2 + $0xf1] sm:$0xff]
    %v1501 = vld [vmem:[#allocation2 + $0xf9] sm:$0xff]
    %v1502 = vld [vmem:[#allocation2 + $0x101] sm:$0xff]
    %v1503 = vld [vmem:[#allocation2 + $0x109] sm:$0xff]
    %v1504 = vsel %vm612, %v1472, 0.0
    %v1505 = vsel %vm613, %v1473, 0.0
    %v1506 = vsel %vm614, %v1474, 0.0
    %v1507 = vsel %vm615, %v1475, 0.0
    %v1508 = vsel %vm616, %v1476, 0.0
    %v1509 = vsel %vm617, %v1477, 0.0
    %v1510 = vsel %vm618, %v1478, 0.0
    %v1511 = vsel %vm619, %v1479, 0.0
    %v1512 = vsel %vm620, %v1480, 0.0
    %v1513 = vsel %vm621, %v1481, 0.0
    %v1514 = vsel %vm622, %v1482, 0.0
    %v1515 = vsel %vm623, %v1483, 0.0
    %v1516 = vsel %vm624, %v1484, 0.0
    %v1517 = vsel %vm625, %v1485, 0.0
    %v1518 = vsel %vm626, %v1486, 0.0
    %v1519 = vsel %vm627, %v1487, 0.0
    %v1520 = vsel %vm628, %v1488, 0.0
    %v1521 = vsel %vm629, %v1489, 0.0
    %v1522 = vsel %vm630, %v1490, 0.0
    %v1523 = vsel %vm631, %v1491, 0.0
    %v1524 = vsel %vm632, %v1492, 0.0
    %v1525 = vsel %vm633, %v1493, 0.0
    %v1526 = vsel %vm634, %v1494, 0.0
    %v1527 = vsel %vm635, %v1495, 0.0
    %v1528 = vsel %vm636, %v1496, 0.0
    %v1529 = vsel %vm637, %v1497, 0.0
    %v1530 = vsel %vm638, %v1498, 0.0
    %v1531 = vsel %vm639, %v1499, 0.0
    %v1532 = vsel %vm640, %v1500, 0.0
    %v1533 = vsel %vm641, %v1501, 0.0
    %v1534 = vsel %vm642, %v1502, 0.0
    %v1535 = vsel %vm643, %v1503, 0.0
    %v1536 = vpack.c.bf16 %v1505, %v1504
    %v1537 = vpack.c.bf16 %v1507, %v1506
    %v1538 = vpack.c.bf16 %v1509, %v1508
    %v1539 = vpack.c.bf16 %v1511, %v1510
    %v1540 = vpack.c.bf16 %v1513, %v1512
    %v1541 = vpack.c.bf16 %v1515, %v1514
    %v1542 = vpack.c.bf16 %v1517, %v1516
    %v1543 = vpack.c.bf16 %v1519, %v1518
    %v1544 = vpack.c.bf16 %v1521, %v1520
    %v1545 = vpack.c.bf16 %v1523, %v1522
    %v1546 = vpack.c.bf16 %v1525, %v1524
    %v1547 = vpack.c.bf16 %v1527, %v1526
    %v1548 = vpack.c.bf16 %v1529, %v1528
    %v1549 = vpack.c.bf16 %v1531, %v1530
    %v1550 = vpack.c.bf16 %v1533, %v1532
    %v1551 = vpack.c.bf16 %v1535, %v1534
    %v1552 = vld [vmem:[#allocation2 + $0x10f] sm:$0xff]
    %v1553 = vld [vmem:[#allocation2 + $0x117] sm:$0xff]
    %v1554 = vsel %vm580, %v1346, 0.0
    %v1555 = vsel %vm581, %v1347, 0.0
    %v1556 = vsel %vm582, %v1348, 0.0
    %v1557 = vsel %vm583, %v1349, 0.0
    %v1558 = vsel %vm584, %v1350, 0.0
    %v1559 = vsel %vm585, %v1351, 0.0
    %v1560 = vsel %vm586, %v1352, 0.0
    %v1561 = vsel %vm587, %v1353, 0.0
    %v1562 = vsel %vm588, %v1354, 0.0
    %v1563 = vsel %vm589, %v1355, 0.0
    %v1564 = vsel %vm590, %v1356, 0.0
    %v1565 = vsel %vm591, %v1357, 0.0
    %v1566 = vsel %vm592, %v1358, 0.0
    %v1567 = vsel %vm593, %v1359, 0.0
    %v1568 = vsel %vm594, %v1360, 0.0
    %v1569 = vsel %vm595, %v1361, 0.0
    %v1570 = vsel %vm596, %v1362, 0.0
    %v1571 = vsel %vm597, %v1363, 0.0
    %v1572 = vsel %vm598, %v1364, 0.0
    %v1573 = vsel %vm599, %v1365, 0.0
    %v1574 = vsel %vm600, %v1366, 0.0
    %v1575 = vsel %vm601, %v1367, 0.0
    %v1576 = vsel %vm602, %v1368, 0.0
    %v1577 = vsel %vm603, %v1369, 0.0
    %v1578 = vsel %vm604, %v1370, 0.0
    %v1579 = vsel %vm605, %v1371, 0.0
    %v1580 = vsel %vm606, %v1372, 0.0
    %v1581 = vsel %vm607, %v1373, 0.0
    %v1582 = vsel %vm608, %v1374, 0.0
    %v1583 = vsel %vm609, %v1375, 0.0
    %v1584 = vsel %vm610, %v1552, 0.0
    %v1585 = vsel %vm611, %v1553, 0.0
    %v1586 = vpack.c.bf16 %v1555, %v1554
    %v1587 = vpack.c.bf16 %v1557, %v1556
    %v1588 = vpack.c.bf16 %v1559, %v1558
    %v1589 = vpack.c.bf16 %v1561, %v1560
    %v1590 = vpack.c.bf16 %v1563, %v1562
    %v1591 = vpack.c.bf16 %v1565, %v1564
    %v1592 = vpack.c.bf16 %v1567, %v1566
    %v1593 = vpack.c.bf16 %v1569, %v1568
    %v1594 = vpack.c.bf16 %v1571, %v1570
    %v1595 = vpack.c.bf16 %v1573, %v1572
    %v1596 = vpack.c.bf16 %v1575, %v1574
    %v1597 = vpack.c.bf16 %v1577, %v1576
    %v1598 = vpack.c.bf16 %v1579, %v1578
    %v1599 = vpack.c.bf16 %v1581, %v1580
    %v1600 = vpack.c.bf16 %v1583, %v1582
    %v1601 = vpack.c.bf16 %v1585, %v1584
    %v1602 = vpack.c.bf16 %v1137, %v1136
    %v1603 = vpack.c.bf16 %v1139, %v1138
    %v1604 = vpack.c.bf16 %v1141, %v1140
    %v1605 = vpack.c.bf16 %v1143, %v1142
    %v1606 = vpack.c.bf16 %v1145, %v1144
    %v1607 = vpack.c.bf16 %v1147, %v1146
    %v1608 = vpack.c.bf16 %v1149, %v1148
    %v1609 = vpack.c.bf16 %v1151, %v1150
    %v1610 = vpack.c.bf16 %v1153, %v1152
    %v1611 = vpack.c.bf16 %v1155, %v1154
    %v1612 = vpack.c.bf16 %v1157, %v1156
    %v1613 = vpack.c.bf16 %v1159, %v1158
    %v1614 = vpack.c.bf16 %v1161, %v1160
    %v1615 = vpack.c.bf16 %v1163, %v1162
    %v1616 = vpack.c.bf16 %v1165, %v1164
    %v1617 = vpack.c.bf16 %v1167, %v1166
    %v1618 = vld [vmem:[#allocation2 + $0x111] sm:$0xff]
    %v1619 = vld [vmem:[#allocation2 + $0x119] sm:$0xff]
    %v1620 = vsel %vm612, %v1474, 0.0
    %v1621 = vsel %vm613, %v1475, 0.0
    %v1622 = vsel %vm614, %v1476, 0.0
    %v1623 = vsel %vm615, %v1477, 0.0
    %v1624 = vsel %vm616, %v1478, 0.0
    %v1625 = vsel %vm617, %v1479, 0.0
    %v1626 = vsel %vm618, %v1480, 0.0
    %v1627 = vsel %vm619, %v1481, 0.0
    %v1628 = vsel %vm620, %v1482, 0.0
    %v1629 = vsel %vm621, %v1483, 0.0
    %v1630 = vsel %vm622, %v1484, 0.0
    %v1631 = vsel %vm623, %v1485, 0.0
    %v1632 = vsel %vm624, %v1486, 0.0
    %v1633 = vsel %vm625, %v1487, 0.0
    %v1634 = vsel %vm626, %v1488, 0.0
    %v1635 = vsel %vm627, %v1489, 0.0
    %v1636 = vsel %vm628, %v1490, 0.0
    %v1637 = vsel %vm629, %v1491, 0.0
    %v1638 = vsel %vm630, %v1492, 0.0
    %v1639 = vsel %vm631, %v1493, 0.0
    %v1640 = vsel %vm632, %v1494, 0.0
    %v1641 = vsel %vm633, %v1495, 0.0
    %v1642 = vsel %vm634, %v1496, 0.0
    %v1643 = vsel %vm635, %v1497, 0.0
    %v1644 = vsel %vm636, %v1498, 0.0
    %v1645 = vsel %vm637, %v1499, 0.0
    %v1646 = vsel %vm638, %v1500, 0.0
    %v1647 = vsel %vm639, %v1501, 0.0
    %v1648 = vsel %vm640, %v1502, 0.0
    %v1649 = vsel %vm641, %v1503, 0.0
    %v1650 = vsel %vm642, %v1618, 0.0
    %v1651 = vsel %vm643, %v1619, 0.0
    %v1652 = vpack.c.bf16 %v1621, %v1620
    %v1653 = vpack.c.bf16 %v1623, %v1622
    %v1654 = vpack.c.bf16 %v1625, %v1624
    %v1655 = vpack.c.bf16 %v1627, %v1626
    %v1656 = vpack.c.bf16 %v1629, %v1628
    %v1657 = vpack.c.bf16 %v1631, %v1630
    %v1658 = vpack.c.bf16 %v1633, %v1632
    %v1659 = vpack.c.bf16 %v1635, %v1634
    %v1660 = vpack.c.bf16 %v1637, %v1636
    %v1661 = vpack.c.bf16 %v1639, %v1638
    %v1662 = vpack.c.bf16 %v1641, %v1640
    %v1663 = vpack.c.bf16 %v1643, %v1642
    %v1664 = vpack.c.bf16 %v1645, %v1644
    %v1665 = vpack.c.bf16 %v1647, %v1646
    %v1666 = vpack.c.bf16 %v1649, %v1648
    %v1667 = vpack.c.bf16 %v1651, %v1650
    %v1668 = vld [vmem:[#allocation2 + $0x11f] sm:$0xff]
    %v1669 = vld [vmem:[#allocation2 + $0x127] sm:$0xff]
    %v1670 = vsel %vm580, %v1348, 0.0
    %v1671 = vsel %vm581, %v1349, 0.0
    %v1672 = vsel %vm582, %v1350, 0.0
    %v1673 = vsel %vm583, %v1351, 0.0
    %v1674 = vsel %vm584, %v1352, 0.0
    %v1675 = vsel %vm585, %v1353, 0.0
    %v1676 = vsel %vm586, %v1354, 0.0
    %v1677 = vsel %vm587, %v1355, 0.0
    %v1678 = vsel %vm588, %v1356, 0.0
    %v1679 = vsel %vm589, %v1357, 0.0
    %v1680 = vsel %vm590, %v1358, 0.0
    %v1681 = vsel %vm591, %v1359, 0.0
    %v1682 = vsel %vm592, %v1360, 0.0
    %v1683 = vsel %vm593, %v1361, 0.0
    %v1684 = vsel %vm594, %v1362, 0.0
    %v1685 = vsel %vm595, %v1363, 0.0
    %v1686 = vsel %vm596, %v1364, 0.0
    %v1687 = vsel %vm597, %v1365, 0.0
    %v1688 = vsel %vm598, %v1366, 0.0
    %v1689 = vsel %vm599, %v1367, 0.0
    %v1690 = vsel %vm600, %v1368, 0.0
    %v1691 = vsel %vm601, %v1369, 0.0
    %v1692 = vsel %vm602, %v1370, 0.0
    %v1693 = vsel %vm603, %v1371, 0.0
    %v1694 = vsel %vm604, %v1372, 0.0
    %v1695 = vsel %vm605, %v1373, 0.0
    %v1696 = vsel %vm606, %v1374, 0.0
    %v1697 = vsel %vm607, %v1375, 0.0
    %v1698 = vsel %vm608, %v1552, 0.0
    %v1699 = vsel %vm609, %v1553, 0.0
    %v1700 = vsel %vm610, %v1668, 0.0
    %v1701 = vsel %vm611, %v1669, 0.0
    %v1702 = vpack.c.bf16 %v1671, %v1670
    %v1703 = vpack.c.bf16 %v1673, %v1672
    %v1704 = vpack.c.bf16 %v1675, %v1674
    %v1705 = vpack.c.bf16 %v1677, %v1676
    %v1706 = vpack.c.bf16 %v1679, %v1678
    %v1707 = vpack.c.bf16 %v1681, %v1680
    %v1708 = vpack.c.bf16 %v1683, %v1682
    %v1709 = vpack.c.bf16 %v1685, %v1684
    %v1710 = vpack.c.bf16 %v1687, %v1686
    %v1711 = vpack.c.bf16 %v1689, %v1688
    %v1712 = vpack.c.bf16 %v1691, %v1690
    %v1713 = vpack.c.bf16 %v1693, %v1692
    %v1714 = vpack.c.bf16 %v1695, %v1694
    %v1715 = vpack.c.bf16 %v1697, %v1696
    %v1716 = vpack.c.bf16 %v1699, %v1698
    %v1717 = vpack.c.bf16 %v1701, %v1700
    %v1718 = vld [vmem:[#allocation2 + $0x110] sm:$0xff]
    %v1719 = vld [vmem:[#allocation2 + $0x118] sm:$0xff]
    %v1720 = vld [vmem:[#allocation2 + $0x120] sm:$0xff]
    %v1721 = vld [vmem:[#allocation2 + $0x128] sm:$0xff]
    %v1722 = vpack.c.bf16 %v1719, %v1718
    %v1723 = vpack.c.bf16 %v1721, %v1720
    %v1724 = vld [vmem:[#allocation2 + $0x121] sm:$0xff]
    %v1725 = vld [vmem:[#allocation2 + $0x129] sm:$0xff]
    %v1726 = vsel %vm612, %v1476, 0.0
    %v1727 = vsel %vm613, %v1477, 0.0
    %v1728 = vsel %vm614, %v1478, 0.0
    %v1729 = vsel %vm615, %v1479, 0.0
    %v1730 = vsel %vm616, %v1480, 0.0
    %v1731 = vsel %vm617, %v1481, 0.0
    %v1732 = vsel %vm618, %v1482, 0.0
    %v1733 = vsel %vm619, %v1483, 0.0
    %v1734 = vsel %vm620, %v1484, 0.0
    %v1735 = vsel %vm621, %v1485, 0.0
    %v1736 = vsel %vm622, %v1486, 0.0
    %v1737 = vsel %vm623, %v1487, 0.0
    %v1738 = vsel %vm624, %v1488, 0.0
    %v1739 = vsel %vm625, %v1489, 0.0
    %v1740 = vsel %vm626, %v1490, 0.0
    %v1741 = vsel %vm627, %v1491, 0.0
    %v1742 = vsel %vm628, %v1492, 0.0
    %v1743 = vsel %vm629, %v1493, 0.0
    %v1744 = vsel %vm630, %v1494, 0.0
    %v1745 = vsel %vm631, %v1495, 0.0
    %v1746 = vsel %vm632, %v1496, 0.0
    %v1747 = vsel %vm633, %v1497, 0.0
    %v1748 = vsel %vm634, %v1498, 0.0
    %v1749 = vsel %vm635, %v1499, 0.0
    %v1750 = vsel %vm636, %v1500, 0.0
    %v1751 = vsel %vm637, %v1501, 0.0
    %v1752 = vsel %vm638, %v1502, 0.0
    %v1753 = vsel %vm639, %v1503, 0.0
    %v1754 = vsel %vm640, %v1618, 0.0
    %v1755 = vsel %vm641, %v1619, 0.0
    %v1756 = vsel %vm642, %v1724, 0.0
    %v1757 = vsel %vm643, %v1725, 0.0
    %v1758 = vpack.c.bf16 %v1727, %v1726
    %v1759 = vpack.c.bf16 %v1729, %v1728
    %v1760 = vpack.c.bf16 %v1731, %v1730
    %v1761 = vpack.c.bf16 %v1733, %v1732
    %v1762 = vpack.c.bf16 %v1735, %v1734
    %v1763 = vpack.c.bf16 %v1737, %v1736
    %v1764 = vpack.c.bf16 %v1739, %v1738
    %v1765 = vpack.c.bf16 %v1741, %v1740
    %v1766 = vpack.c.bf16 %v1743, %v1742
    %v1767 = vpack.c.bf16 %v1745, %v1744
    %v1768 = vpack.c.bf16 %v1747, %v1746
    %v1769 = vpack.c.bf16 %v1749, %v1748
    %v1770 = vpack.c.bf16 %v1751, %v1750
    %v1771 = vpack.c.bf16 %v1753, %v1752
    %v1772 = vpack.c.bf16 %v1755, %v1754
    %v1773 = vpack.c.bf16 %v1757, %v1756
    %v1774 = vlaneseq
    %v1775 = vshrl.u32 %v1774, 7
    %v1776 = vsub.s32 0, %v1775
    %v1777 = vrot.slane %v669, %v1776
    %v1922 = vunpack.c.l.b16 %v1168
    %v1923 = vunpack.c.l.b16 %v1169
    %v1924 = vunpack.c.l.b16 %v1170
    %v1925 = vunpack.c.l.b16 %v1171
    %v1926 = vunpack.c.l.b16 %v1172
    %v1927 = vunpack.c.l.b16 %v1173
    %v1928 = vunpack.c.l.b16 %v1174
    %v1929 = vunpack.c.l.b16 %v1175
    %v1930 = vunpack.c.l.b16 %v1176
    %v1931 = vunpack.c.l.b16 %v1177
    %v1932 = vunpack.c.l.b16 %v1178
    %v1933 = vunpack.c.l.b16 %v1179
    %v1934 = vunpack.c.l.b16 %v1180
    %v1935 = vunpack.c.l.b16 %v1181
    %v1936 = vunpack.c.l.b16 %v1182
    %v1937 = vunpack.c.l.b16 %v1183
    %v1938 = vunpack.c.l.b16 %v1184
    %v1939 = vunpack.c.l.b16 %v1185
    %v1940 = vunpack.c.l.b16 %v1186
    %v1941 = vunpack.c.l.b16 %v1187
    %v1942 = vunpack.c.l.b16 %v1188
    %v1943 = vunpack.c.l.b16 %v1189
    %v1944 = vunpack.c.l.b16 %v1190
    %v1945 = vunpack.c.l.b16 %v1191
    %v1946 = vunpack.c.l.b16 %v1192
    %v1947 = vunpack.c.l.b16 %v1193
    %v1948 = vunpack.c.l.b16 %v1194
    %v1949 = vunpack.c.l.b16 %v1195
    %v1950 = vunpack.c.l.b16 %v1196
    %v1951 = vunpack.c.l.b16 %v1197
    %v1952 = vunpack.c.l.b16 %v1198
    %v1953 = vunpack.c.l.b16 %v1199
    %v1954 = vunpack.c.l.b16 %v1200
    %v1955 = vunpack.c.l.b16 %v1201
    %v1956 = vunpack.c.l.b16 %v1202
    %v1957 = vunpack.c.l.b16 %v1203
    %v1958 = vunpack.c.l.b16 %v1204
    %v1959 = vunpack.c.l.b16 %v1205
    %v1960 = vunpack.c.l.b16 %v1206
    %v1961 = vunpack.c.l.b16 %v1207
    %v1962 = vunpack.c.l.b16 %v1208
    %v1963 = vunpack.c.l.b16 %v1209
    %v1964 = vunpack.c.l.b16 %v1210
    %v1965 = vunpack.c.l.b16 %v1211
    %v1966 = vunpack.c.l.b16 %v1212
    %v1967 = vunpack.c.l.b16 %v1213
    %v1968 = vunpack.c.l.b16 %v1214
    %v1969 = vunpack.c.l.b16 %v1215
    %v1970 = vunpack.c.l.b16 %v1216
    %v1971 = vunpack.c.l.b16 %v1217
    %v1972 = vunpack.c.l.b16 %v1218
    %v1973 = vunpack.c.l.b16 %v1219
    %v1974 = vunpack.c.l.b16 %v1220
    %v1975 = vunpack.c.l.b16 %v1221
    %v1976 = vunpack.c.l.b16 %v1222
    %v1977 = vunpack.c.l.b16 %v1223
    %v1978 = vunpack.c.l.b16 %v1224
    %v1979 = vunpack.c.l.b16 %v1225
    %v1980 = vunpack.c.l.b16 %v1226
    %v1981 = vunpack.c.l.b16 %v1227
    %v1982 = vunpack.c.l.b16 %v1228
    %v1983 = vunpack.c.l.b16 %v1229
    %v1984 = vunpack.c.l.b16 %v1230
    %v1985 = vunpack.c.l.b16 %v1231
    %v1986 = vunpack.c.l.b16 %v1232
    %v1987 = vunpack.c.l.b16 %v1233
    %v1988 = vunpack.c.l.b16 %v1234
    %v1989 = vunpack.c.l.b16 %v1235
    %v1990 = vunpack.c.l.b16 %v1236
    %v1991 = vunpack.c.l.b16 %v1237
    %v1992 = vunpack.c.l.b16 %v1238
    %v1993 = vunpack.c.l.b16 %v1239
    %v1994 = vunpack.c.l.b16 %v1240
    %v1995 = vunpack.c.l.b16 %v1241
    %v1996 = vunpack.c.l.b16 %v1242
    %v1997 = vunpack.c.l.b16 %v1243
    %v1998 = vunpack.c.l.b16 %v1244
    %v1999 = vunpack.c.l.b16 %v1245
    %v2000 = vunpack.c.l.b16 %v1246
    %v2001 = vunpack.c.l.b16 %v1247
    %v2002 = vunpack.c.l.b16 %v1248
    %v2003 = vunpack.c.l.b16 %v1249
    %v2004 = vunpack.c.l.b16 %v1250
    %v2005 = vunpack.c.l.b16 %v1251
    %v2006 = vunpack.c.l.b16 %v1252
    %v2007 = vunpack.c.l.b16 %v1253
    %v2008 = vunpack.c.l.b16 %v1254
    %v2009 = vunpack.c.l.b16 %v1255
    %v2010 = vunpack.c.l.b16 %v1256
    %v2011 = vunpack.c.l.b16 %v1257
    %v2012 = vunpack.c.l.b16 %v1258
    %v2013 = vunpack.c.l.b16 %v1259
    %v2014 = vunpack.c.l.b16 %v1260
    %v2015 = vunpack.c.l.b16 %v1261
    %v2016 = vunpack.c.l.b16 %v1262
    %v2017 = vunpack.c.l.b16 %v1263
    %v2018 = vunpack.c.l.b16 %v1264
    %v2019 = vunpack.c.l.b16 %v1265
    %v2020 = vunpack.c.l.b16 %v1266
    %v2021 = vunpack.c.l.b16 %v1267
    %v2022 = vunpack.c.l.b16 %v1268
    %v2023 = vunpack.c.l.b16 %v1269
    %v2024 = vunpack.c.l.b16 %v1270
    %v2025 = vunpack.c.l.b16 %v1271
    %v2026 = vunpack.c.l.b16 %v1272
    %v2027 = vunpack.c.l.b16 %v1273
    %v2028 = vunpack.c.l.b16 %v1274
    %v2029 = vunpack.c.l.b16 %v1275
    %v2030 = vunpack.c.l.b16 %v1276
    %v2031 = vunpack.c.l.b16 %v1277
    %v2032 = vunpack.c.l.b16 %v1278
    %v2033 = vunpack.c.l.b16 %v1279
    %v2034 = vunpack.c.l.b16 %v1280
    %v2035 = vunpack.c.l.b16 %v1281
    %v2036 = vunpack.c.l.b16 %v1282
    %v2037 = vunpack.c.l.b16 %v1283
    %v2038 = vunpack.c.l.b16 %v1284
    %v2039 = vunpack.c.l.b16 %v1285
    %v2040 = vunpack.c.l.b16 %v1286
    %v2041 = vunpack.c.l.b16 %v1287
    %v2042 = vunpack.c.l.b16 %v1288
    %v2043 = vunpack.c.l.b16 %v1289
    %v2044 = vunpack.c.l.b16 %v1290
    %v2045 = vunpack.c.l.b16 %v1291
    %v2046 = vunpack.c.l.b16 %v1292
    %v2047 = vunpack.c.l.b16 %v1293
    %v2048 = vunpack.c.l.b16 %v1294
    %v2049 = vunpack.c.l.b16 %v1295
    %v2050 = vunpack.c.l.b16 %v1296
    %v2051 = vunpack.c.l.b16 %v1297
    %v2052 = vunpack.c.l.b16 %v1298
    %v2053 = vunpack.c.l.b16 %v1299
    %v2054 = vunpack.c.l.b16 %v1300
    %v2055 = vunpack.c.l.b16 %v1301
    %v2056 = vunpack.c.l.b16 %v1302
    %v2057 = vunpack.c.l.b16 %v1303
    %v2058 = vunpack.c.l.b16 %v1304
    %v2059 = vunpack.c.l.b16 %v1305
    %v2060 = vunpack.c.l.b16 %v1306
    %v2061 = vunpack.c.l.b16 %v1307
    %v2062 = vunpack.c.l.b16 %v1308
    %v2063 = vunpack.c.l.b16 %v1309
    %v2064 = vunpack.c.l.b16 %v1310
    %v2065 = vunpack.c.l.b16 %v1311
    %v2066 = vpack.c.b16 %v1923, %v1922
    %v2067 = vpack.c.b16 %v1925, %v1924
    %v2068 = vpack.c.b16 %v1927, %v1926
    %v2069 = vpack.c.b16 %v1929, %v1928
    %v2070 = vpack.c.b16 %v1931, %v1930
    %v2071 = vpack.c.b16 %v1933, %v1932
    %v2072 = vpack.c.b16 %v1935, %v1934
    %v2073 = vpack.c.b16 %v1937, %v1936
    %v2074 = vpack.c.b16 %v1939, %v1938
    %v2075 = vpack.c.b16 %v1941, %v1940
    %v2076 = vpack.c.b16 %v1943, %v1942
    %v2077 = vpack.c.b16 %v1945, %v1944
    %v2078 = vpack.c.b16 %v1947, %v1946
    %v2079 = vpack.c.b16 %v1949, %v1948
    %v2080 = vpack.c.b16 %v1951, %v1950
    %v2081 = vpack.c.b16 %v1953, %v1952
    %v2082 = vpack.c.b16 %v1955, %v1954
    %v2083 = vpack.c.b16 %v1957, %v1956
    %v2084 = vpack.c.b16 %v1959, %v1958
    %v2085 = vpack.c.b16 %v1961, %v1960
    %v2086 = vpack.c.b16 %v1963, %v1962
    %v2087 = vpack.c.b16 %v1965, %v1964
    %v2088 = vpack.c.b16 %v1967, %v1966
    %v2089 = vpack.c.b16 %v1969, %v1968
    %v2090 = vpack.c.b16 %v1971, %v1970
    %v2091 = vpack.c.b16 %v1973, %v1972
    %v2092 = vpack.c.b16 %v1975, %v1974
    %v2093 = vpack.c.b16 %v1977, %v1976
    %v2094 = vpack.c.b16 %v1979, %v1978
    %v2095 = vpack.c.b16 %v1981, %v1980
    %v2096 = vpack.c.b16 %v1983, %v1982
    %v2097 = vpack.c.b16 %v1985, %v1984
    %v2098 = vpack.c.b16 %v1987, %v1986
    %v2099 = vpack.c.b16 %v1989, %v1988
    %v2100 = vpack.c.b16 %v1991, %v1990
    %v2101 = vpack.c.b16 %v1993, %v1992
    %v2102 = vpack.c.b16 %v1995, %v1994
    %v2103 = vpack.c.b16 %v1997, %v1996
    %v2104 = vpack.c.b16 %v1999, %v1998
    %v2105 = vpack.c.b16 %v2001, %v2000
    %v2106 = vpack.c.b16 %v2003, %v2002
    %v2107 = vpack.c.b16 %v2005, %v2004
    %v2108 = vpack.c.b16 %v2007, %v2006
    %v2109 = vpack.c.b16 %v2009, %v2008
    %v2110 = vpack.c.b16 %v2011, %v2010
    %v2111 = vpack.c.b16 %v2013, %v2012
    %v2112 = vpack.c.b16 %v2015, %v2014
    %v2113 = vpack.c.b16 %v2017, %v2016
    %v2114 = vpack.c.b16 %v2019, %v2018
    %v2115 = vpack.c.b16 %v2021, %v2020
    %v2116 = vpack.c.b16 %v2023, %v2022
    %v2117 = vpack.c.b16 %v2025, %v2024
    %v2118 = vpack.c.b16 %v2027, %v2026
    %v2119 = vpack.c.b16 %v2029, %v2028
    %v2120 = vpack.c.b16 %v2031, %v2030
    %v2121 = vpack.c.b16 %v2033, %v2032
    %v2122 = vpack.c.b16 %v2035, %v2034
    %v2123 = vpack.c.b16 %v2037, %v2036
    %v2124 = vpack.c.b16 %v2039, %v2038
    %v2125 = vpack.c.b16 %v2041, %v2040
    %v2126 = vpack.c.b16 %v2043, %v2042
    %v2127 = vpack.c.b16 %v2045, %v2044
    %v2128 = vpack.c.b16 %v2047, %v2046
    %v2129 = vpack.c.b16 %v2049, %v2048
    %v2130 = vpack.c.b16 %v2051, %v2050
    %v2131 = vpack.c.b16 %v2053, %v2052
    %v2132 = vpack.c.b16 %v2055, %v2054
    %v2133 = vpack.c.b16 %v2057, %v2056
    %v2134 = vpack.c.b16 %v2059, %v2058
    %v2135 = vpack.c.b16 %v2061, %v2060
    %v2136 = vpack.c.b16 %v2063, %v2062
    %v2137 = vpack.c.b16 %v2065, %v2064
    %2210 = vmatprep.subr.bf16.mxu0 0
    %2211 = vmatpush1.bf16.msra.mxu0 %v2073
    %2212 = vmatprep.subr.bf16.mxu0 0
    %2213 = vmatpush1.bf16.msra.mxu0 %v2072
    %2214 = vmatprep.subr.bf16.mxu0 0
    %2215 = vmatpush1.bf16.msra.mxu0 %v2071
    %2216 = vmatprep.subr.bf16.mxu0 0
    %2217 = vmatpush1.bf16.msra.mxu0 %v2070
    %2218 = vmatprep.subr.bf16.mxu0 0
    %2219 = vmatpush1.bf16.msra.mxu0 %v2069
    %2220 = vmatprep.subr.bf16.mxu0 0
    %2221 = vmatpush1.bf16.msra.mxu0 %v2068
    %2222 = vmatprep.subr.bf16.mxu0 0
    %2223 = vmatpush1.bf16.msra.mxu0 %v2067
    %2224 = vmatprep.subr.bf16.mxu0 0
    %2225 = vmatpush1.bf16.msra.mxu0 %v2066
    %2226 = vmatprep.subr.bf16.mxu0 0
    %2227 = vmatpush2.bf16.msra.mxu0 %v2081
    %2228 = vmatprep.subr.bf16.mxu0 0
    %2229 = vmatpush2.bf16.msra.mxu0 %v2080
    %2230 = vmatprep.subr.bf16.mxu0 0
    %2231 = vmatpush2.bf16.msra.mxu0 %v2079
    %2232 = vmatprep.subr.bf16.mxu0 0
    %2233 = vmatpush2.bf16.msra.mxu0 %v2078
    %2234 = vmatprep.subr.bf16.mxu0 0
    %2235 = vmatpush2.bf16.msra.mxu0 %v2077
    %2236 = vmatprep.subr.bf16.mxu0 0
    %2237 = vmatpush2.bf16.msra.mxu0 %v2076
    %2238 = vmatprep.subr.bf16.mxu0 0
    %2239 = vmatpush2.bf16.msra.mxu0 %v2075
    %2240 = vmatprep.subr.bf16.mxu0 0
    %2241 = vmatpush2.bf16.msra.mxu0 %v2074
    %2242 = vmatprep.mubr.bf16.mxu0 %v1456
    %2243 = vmatmul.mubr.bf16.gmra.mxu0 %v1408
    %v2244 = vpop.f32.mrf.mxu0
    %v2245 = vadd.f32 %v1777, %v2244
    %v2246 = vpop.f32.mrf.mxu0
    %v2247 = vpop.f32.mrf.mxu0
    %v2248 = vadd.f32 %v1777, %v2247
    %v2249 = vpop.f32.mrf.mxu0
    %2250 = vmatprep.mubr.bf16.mxu0 %v1457
    %2251 = vmatmul.mubr.bf16.gmra.mxu0 %v1409
    %v2252 = vpop.f32.mrf.mxu0
    %v2253 = vadd.f32 %v1777, %v2252
    %v2254 = vpop.f32.mrf.mxu0
    %v2255 = vpop.f32.mrf.mxu0
    %v2256 = vadd.f32 %v1777, %v2255
    %v2257 = vpop.f32.mrf.mxu0
    %2258 = vmatprep.mubr.bf16.mxu0 %v1458
    %2259 = vmatmul.mubr.bf16.gmra.mxu0 %v1410
    %v2260 = vpop.f32.mrf.mxu0
    %v2261 = vadd.f32 %v1777, %v2260
    %v2262 = vpop.f32.mrf.mxu0
    %v2263 = vpop.f32.mrf.mxu0
    %v2264 = vadd.f32 %v1777, %v2263
    %v2265 = vpop.f32.mrf.mxu0
    %2266 = vmatprep.mubr.bf16.mxu0 %v1459
    %2267 = vmatmul.mubr.bf16.gmra.mxu0 %v1411
    %v2268 = vpop.f32.mrf.mxu0
    %v2269 = vadd.f32 %v1777, %v2268
    %v2270 = vpop.f32.mrf.mxu0
    %v2271 = vpop.f32.mrf.mxu0
    %v2272 = vadd.f32 %v1777, %v2271
    %v2273 = vpop.f32.mrf.mxu0
    %2274 = vmatprep.mubr.bf16.mxu0 %v1460
    %2275 = vmatmul.mubr.bf16.gmra.mxu0 %v1412
    %v2276 = vpop.f32.mrf.mxu0
    %v2277 = vadd.f32 %v1777, %v2276
    %v2278 = vpop.f32.mrf.mxu0
    %v2279 = vpop.f32.mrf.mxu0
    %v2280 = vadd.f32 %v1777, %v2279
    %v2281 = vpop.f32.mrf.mxu0
    %2282 = vmatprep.mubr.bf16.mxu0 %v1461
    %2283 = vmatmul.mubr.bf16.gmra.mxu0 %v1413
    %v2284 = vpop.f32.mrf.mxu0
    %v2285 = vadd.f32 %v1777, %v2284
    %v2286 = vpop.f32.mrf.mxu0
    %v2287 = vpop.f32.mrf.mxu0
    %v2288 = vadd.f32 %v1777, %v2287
    %v2289 = vpop.f32.mrf.mxu0
    %2290 = vmatprep.mubr.bf16.mxu0 %v1462
    %2291 = vmatmul.mubr.bf16.gmra.mxu0 %v1414
    %v2292 = vpop.f32.mrf.mxu0
    %v2293 = vadd.f32 %v1777, %v2292
    %v2294 = vpop.f32.mrf.mxu0
    %v2295 = vpop.f32.mrf.mxu0
    %v2296 = vadd.f32 %v1777, %v2295
    %v2297 = vpop.f32.mrf.mxu0
    %2298 = vmatprep.mubr.bf16.mxu0 %v1463
    %2299 = vmatmul.mubr.bf16.gmra.mxu0 %v1415
    %v2300 = vpop.f32.mrf.mxu0
    %v2301 = vadd.f32 %v1777, %v2300
    %v2302 = vpop.f32.mrf.mxu0
    %v2303 = vpop.f32.mrf.mxu0
    %v2304 = vadd.f32 %v1777, %v2303
    %v2305 = vpop.f32.mrf.mxu0
    %2306 = vmatprep.mubr.bf16.mxu0 %v1464
    %2307 = vmatmul.mubr.bf16.gmra.mxu0 %v1416
    %v2308 = vpop.f32.mrf.mxu0
    %v2309 = vadd.f32 %v1777, %v2308
    %v2310 = vpop.f32.mrf.mxu0
    %v2311 = vpop.f32.mrf.mxu0
    %v2312 = vadd.f32 %v1777, %v2311
    %v2313 = vpop.f32.mrf.mxu0
    %2314 = vmatprep.mubr.bf16.mxu0 %v1465
    %2315 = vmatmul.mubr.bf16.gmra.mxu0 %v1417
    %v2316 = vpop.f32.mrf.mxu0
    %v2317 = vadd.f32 %v1777, %v2316
    %v2318 = vpop.f32.mrf.mxu0
    %v2319 = vpop.f32.mrf.mxu0
    %v2320 = vadd.f32 %v1777, %v2319
    %v2321 = vpop.f32.mrf.mxu0
    %2322 = vmatprep.mubr.bf16.mxu0 %v1466
    %2323 = vmatmul.mubr.bf16.gmra.mxu0 %v1418
    %v2324 = vpop.f32.mrf.mxu0
    %v2325 = vadd.f32 %v1777, %v2324
    %v2326 = vpop.f32.mrf.mxu0
    %v2327 = vpop.f32.mrf.mxu0
    %v2328 = vadd.f32 %v1777, %v2327
    %v2329 = vpop.f32.mrf.mxu0
    %2330 = vmatprep.mubr.bf16.mxu0 %v1467
    %2331 = vmatmul.mubr.bf16.gmra.mxu0 %v1419
    %v2332 = vpop.f32.mrf.mxu0
    %v2333 = vadd.f32 %v1777, %v2332
    %v2334 = vpop.f32.mrf.mxu0
    %v2335 = vpop.f32.mrf.mxu0
    %v2336 = vadd.f32 %v1777, %v2335
    %v2337 = vpop.f32.mrf.mxu0
    %2338 = vmatprep.mubr.bf16.mxu0 %v1468
    %2339 = vmatmul.mubr.bf16.gmra.mxu0 %v1420
    %v2340 = vpop.f32.mrf.mxu0
    %v2341 = vadd.f32 %v1777, %v2340
    %v2342 = vpop.f32.mrf.mxu0
    %v2343 = vpop.f32.mrf.mxu0
    %v2344 = vadd.f32 %v1777, %v2343
    %v2345 = vpop.f32.mrf.mxu0
    %2346 = vmatprep.mubr.bf16.mxu0 %v1469
    %2347 = vmatmul.mubr.bf16.gmra.mxu0 %v1421
    %v2348 = vpop.f32.mrf.mxu0
    %v2349 = vadd.f32 %v1777, %v2348
    %v2350 = vpop.f32.mrf.mxu0
    %v2351 = vpop.f32.mrf.mxu0
    %v2352 = vadd.f32 %v1777, %v2351
    %v2353 = vpop.f32.mrf.mxu0
    %2354 = vmatprep.mubr.bf16.mxu0 %v1470
    %2355 = vmatmul.mubr.bf16.gmra.mxu0 %v1422
    %v2356 = vpop.f32.mrf.mxu0
    %v2357 = vadd.f32 %v1777, %v2356
    %v2358 = vpop.f32.mrf.mxu0
    %v2359 = vpop.f32.mrf.mxu0
    %v2360 = vadd.f32 %v1777, %v2359
    %v2361 = vpop.f32.mrf.mxu0
    %2362 = vmatprep.mubr.bf16.mxu0 %v1471
    %2363 = vmatmul.mubr.bf16.gmra.mxu0 %v1423
    %v2364 = vpop.f32.mrf.mxu0
    %v2365 = vadd.f32 %v1777, %v2364
    %v2366 = vpop.f32.mrf.mxu0
    %v2367 = vpop.f32.mrf.mxu0
    %v2368 = vadd.f32 %v1777, %v2367
    %v2369 = vpop.f32.mrf.mxu0
    %2370 = vdwg.mxu0
    %2371 = vmatprep.subr.bf16.mxu0 0
    %2372 = vmatpush1.bf16.msra.mxu0 %v2089
    %2373 = vmatprep.subr.bf16.mxu0 0
    %2374 = vmatpush1.bf16.msra.mxu0 %v2088
    %2375 = vmatprep.subr.bf16.mxu0 0
    %2376 = vmatpush1.bf16.msra.mxu0 %v2087
    %2377 = vmatprep.subr.bf16.mxu0 0
    %2378 = vmatpush1.bf16.msra.mxu0 %v2086
    %2379 = vmatprep.subr.bf16.mxu0 0
    %2380 = vmatpush1.bf16.msra.mxu0 %v2085
    %2381 = vmatprep.subr.bf16.mxu0 0
    %2382 = vmatpush1.bf16.msra.mxu0 %v2084
    %2383 = vmatprep.subr.bf16.mxu0 0
    %2384 = vmatpush1.bf16.msra.mxu0 %v2083
    %2385 = vmatprep.subr.bf16.mxu0 0
    %2386 = vmatpush1.bf16.msra.mxu0 %v2082
    %2387 = vmatprep.subr.bf16.mxu0 0
    %2388 = vmatpush2.bf16.msra.mxu0 %v2097
    %2389 = vmatprep.subr.bf16.mxu0 0
    %2390 = vmatpush2.bf16.msra.mxu0 %v2096
    %2391 = vmatprep.subr.bf16.mxu0 0
    %2392 = vmatpush2.bf16.msra.mxu0 %v2095
    %2393 = vmatprep.subr.bf16.mxu0 0
    %2394 = vmatpush2.bf16.msra.mxu0 %v2094
    %2395 = vmatprep.subr.bf16.mxu0 0
    %2396 = vmatpush2.bf16.msra.mxu0 %v2093
    %2397 = vmatprep.subr.bf16.mxu0 0
    %2398 = vmatpush2.bf16.msra.mxu0 %v2092
    %2399 = vmatprep.subr.bf16.mxu0 0
    %2400 = vmatpush2.bf16.msra.mxu0 %v2091
    %2401 = vmatprep.subr.bf16.mxu0 0
    %2402 = vmatpush2.bf16.msra.mxu0 %v2090
    %2403 = vmatprep.mubr.bf16.mxu0 %v1586
    %2404 = vmatmul.mubr.bf16.gmra.mxu0 %v1536
    %v2405 = vpop.f32.mrf.mxu0
    %v2406 = vadd.f32 %v2245, %v2405
    %v2407 = vpop.f32.mrf.mxu0
    %v2408 = vpop.f32.mrf.mxu0
    %v2409 = vadd.f32 %v2248, %v2408
    %v2410 = vpop.f32.mrf.mxu0
    %2411 = vmatprep.mubr.bf16.mxu0 %v1587
    %2412 = vmatmul.mubr.bf16.gmra.mxu0 %v1537
    %v2413 = vpop.f32.mrf.mxu0
    %v2414 = vadd.f32 %v2253, %v2413
    %v2415 = vpop.f32.mrf.mxu0
    %v2416 = vpop.f32.mrf.mxu0
    %v2417 = vadd.f32 %v2256, %v2416
    %v2418 = vpop.f32.mrf.mxu0
    %2419 = vmatprep.mubr.bf16.mxu0 %v1588
    %2420 = vmatmul.mubr.bf16.gmra.mxu0 %v1538
    %v2421 = vpop.f32.mrf.mxu0
    %v2422 = vadd.f32 %v2261, %v2421
    %v2423 = vpop.f32.mrf.mxu0
    %v2424 = vpop.f32.mrf.mxu0
    %v2425 = vadd.f32 %v2264, %v2424
    %v2426 = vpop.f32.mrf.mxu0
    %2427 = vmatprep.mubr.bf16.mxu0 %v1589
    %2428 = vmatmul.mubr.bf16.gmra.mxu0 %v1539
    %v2429 = vpop.f32.mrf.mxu0
    %v2430 = vadd.f32 %v2269, %v2429
    %v2431 = vpop.f32.mrf.mxu0
    %v2432 = vpop.f32.mrf.mxu0
    %v2433 = vadd.f32 %v2272, %v2432
    %v2434 = vpop.f32.mrf.mxu0
    %2435 = vmatprep.mubr.bf16.mxu0 %v1590
    %2436 = vmatmul.mubr.bf16.gmra.mxu0 %v1540
    %v2437 = vpop.f32.mrf.mxu0
    %v2438 = vadd.f32 %v2277, %v2437
    %v2439 = vpop.f32.mrf.mxu0
    %v2440 = vpop.f32.mrf.mxu0
    %v2441 = vadd.f32 %v2280, %v2440
    %v2442 = vpop.f32.mrf.mxu0
    %2443 = vmatprep.mubr.bf16.mxu0 %v1591
    %2444 = vmatmul.mubr.bf16.gmra.mxu0 %v1541
    %v2445 = vpop.f32.mrf.mxu0
    %v2446 = vadd.f32 %v2285, %v2445
    %v2447 = vpop.f32.mrf.mxu0
    %v2448 = vpop.f32.mrf.mxu0
    %v2449 = vadd.f32 %v2288, %v2448
    %v2450 = vpop.f32.mrf.mxu0
    %2451 = vmatprep.mubr.bf16.mxu0 %v1592
    %2452 = vmatmul.mubr.bf16.gmra.mxu0 %v1542
    %v2453 = vpop.f32.mrf.mxu0
    %v2454 = vadd.f32 %v2293, %v2453
    %v2455 = vpop.f32.mrf.mxu0
    %v2456 = vpop.f32.mrf.mxu0
    %v2457 = vadd.f32 %v2296, %v2456
    %v2458 = vpop.f32.mrf.mxu0
    %2459 = vmatprep.mubr.bf16.mxu0 %v1593
    %2460 = vmatmul.mubr.bf16.gmra.mxu0 %v1543
    %v2461 = vpop.f32.mrf.mxu0
    %v2462 = vadd.f32 %v2301, %v2461
    %v2463 = vpop.f32.mrf.mxu0
    %v2464 = vpop.f32.mrf.mxu0
    %v2465 = vadd.f32 %v2304, %v2464
    %v2466 = vpop.f32.mrf.mxu0
    %2467 = vmatprep.mubr.bf16.mxu0 %v1594
    %2468 = vmatmul.mubr.bf16.gmra.mxu0 %v1544
    %v2469 = vpop.f32.mrf.mxu0
    %v2470 = vadd.f32 %v2309, %v2469
    %v2471 = vpop.f32.mrf.mxu0
    %v2472 = vpop.f32.mrf.mxu0
    %v2473 = vadd.f32 %v2312, %v2472
    %v2474 = vpop.f32.mrf.mxu0
    %2475 = vmatprep.mubr.bf16.mxu0 %v1595
    %2476 = vmatmul.mubr.bf16.gmra.mxu0 %v1545
    %v2477 = vpop.f32.mrf.mxu0
    %v2478 = vadd.f32 %v2317, %v2477
    %v2479 = vpop.f32.mrf.mxu0
    %v2480 = vpop.f32.mrf.mxu0
    %v2481 = vadd.f32 %v2320, %v2480
    %v2482 = vpop.f32.mrf.mxu0
    %2483 = vmatprep.mubr.bf16.mxu0 %v1596
    %2484 = vmatmul.mubr.bf16.gmra.mxu0 %v1546
    %v2485 = vpop.f32.mrf.mxu0
    %v2486 = vadd.f32 %v2325, %v2485
    %v2487 = vpop.f32.mrf.mxu0
    %v2488 = vpop.f32.mrf.mxu0
    %v2489 = vadd.f32 %v2328, %v2488
    %v2490 = vpop.f32.mrf.mxu0
    %2491 = vmatprep.mubr.bf16.mxu0 %v1597
    %2492 = vmatmul.mubr.bf16.gmra.mxu0 %v1547
    %v2493 = vpop.f32.mrf.mxu0
    %v2494 = vadd.f32 %v2333, %v2493
    %v2495 = vpop.f32.mrf.mxu0
    %v2496 = vpop.f32.mrf.mxu0
    %v2497 = vadd.f32 %v2336, %v2496
    %v2498 = vpop.f32.mrf.mxu0
    %2499 = vmatprep.mubr.bf16.mxu0 %v1598
    %2500 = vmatmul.mubr.bf16.gmra.mxu0 %v1548
    %v2501 = vpop.f32.mrf.mxu0
    %v2502 = vadd.f32 %v2341, %v2501
    %v2503 = vpop.f32.mrf.mxu0
    %v2504 = vpop.f32.mrf.mxu0
    %v2505 = vadd.f32 %v2344, %v2504
    %v2506 = vpop.f32.mrf.mxu0
    %2507 = vmatprep.mubr.bf16.mxu0 %v1599
    %2508 = vmatmul.mubr.bf16.gmra.mxu0 %v1549
    %v2509 = vpop.f32.mrf.mxu0
    %v2510 = vadd.f32 %v2349, %v2509
    %v2511 = vpop.f32.mrf.mxu0
    %v2512 = vpop.f32.mrf.mxu0
    %v2513 = vadd.f32 %v2352, %v2512
    %v2514 = vpop.f32.mrf.mxu0
    %2515 = vmatprep.mubr.bf16.mxu0 %v1600
    %2516 = vmatmul.mubr.bf16.gmra.mxu0 %v1550
    %v2517 = vpop.f32.mrf.mxu0
    %v2518 = vadd.f32 %v2357, %v2517
    %v2519 = vpop.f32.mrf.mxu0
    %v2520 = vpop.f32.mrf.mxu0
    %v2521 = vadd.f32 %v2360, %v2520
    %v2522 = vpop.f32.mrf.mxu0
    %2523 = vmatprep.mubr.bf16.mxu0 %v1601
    %2524 = vmatmul.mubr.bf16.gmra.mxu0 %v1551
    %v2525 = vpop.f32.mrf.mxu0
    %v2526 = vadd.f32 %v2365, %v2525
    %v2527 = vpop.f32.mrf.mxu0
    %v2528 = vpop.f32.mrf.mxu0
    %v2529 = vadd.f32 %v2368, %v2528
    %v2530 = vpop.f32.mrf.mxu0
    %2531 = vdwg.mxu0
    %2532 = vmatprep.subr.bf16.mxu0 0
    %2533 = vmatpush1.bf16.msra.mxu0 %v2105
    %2534 = vmatprep.subr.bf16.mxu0 0
    %2535 = vmatpush1.bf16.msra.mxu0 %v2104
    %2536 = vmatprep.subr.bf16.mxu0 0
    %2537 = vmatpush1.bf16.msra.mxu0 %v2103
    %2538 = vmatprep.subr.bf16.mxu0 0
    %2539 = vmatpush1.bf16.msra.mxu0 %v2102
    %2540 = vmatprep.subr.bf16.mxu0 0
    %2541 = vmatpush1.bf16.msra.mxu0 %v2101
    %2542 = vmatprep.subr.bf16.mxu0 0
    %2543 = vmatpush1.bf16.msra.mxu0 %v2100
    %2544 = vmatprep.subr.bf16.mxu0 0
    %2545 = vmatpush1.bf16.msra.mxu0 %v2099
    %2546 = vmatprep.subr.bf16.mxu0 0
    %2547 = vmatpush1.bf16.msra.mxu0 %v2098
    %2548 = vmatprep.subr.bf16.mxu0 0
    %2549 = vmatpush2.bf16.msra.mxu0 %v2113
    %2550 = vmatprep.subr.bf16.mxu0 0
    %2551 = vmatpush2.bf16.msra.mxu0 %v2112
    %2552 = vmatprep.subr.bf16.mxu0 0
    %2553 = vmatpush2.bf16.msra.mxu0 %v2111
    %2554 = vmatprep.subr.bf16.mxu0 0
    %2555 = vmatpush2.bf16.msra.mxu0 %v2110
    %2556 = vmatprep.subr.bf16.mxu0 0
    %2557 = vmatpush2.bf16.msra.mxu0 %v2109
    %2558 = vmatprep.subr.bf16.mxu0 0
    %2559 = vmatpush2.bf16.msra.mxu0 %v2108
    %2560 = vmatprep.subr.bf16.mxu0 0
    %2561 = vmatpush2.bf16.msra.mxu0 %v2107
    %2562 = vmatprep.subr.bf16.mxu0 0
    %2563 = vmatpush2.bf16.msra.mxu0 %v2106
    %2564 = vmatprep.mubr.bf16.mxu0 %v1652
    %2565 = vmatmul.mubr.bf16.gmra.mxu0 %v1602
    %v2566 = vpop.f32.mrf.mxu0
    %v2567 = vadd.f32 %v2406, %v2566
    %v2568 = vpop.f32.mrf.mxu0
    %v2569 = vpop.f32.mrf.mxu0
    %v2570 = vadd.f32 %v2409, %v2569
    %v2571 = vpop.f32.mrf.mxu0
    %2572 = vmatprep.mubr.bf16.mxu0 %v1653
    %2573 = vmatmul.mubr.bf16.gmra.mxu0 %v1603
    %v2574 = vpop.f32.mrf.mxu0
    %v2575 = vadd.f32 %v2414, %v2574
    %v2576 = vpop.f32.mrf.mxu0
    %v2577 = vpop.f32.mrf.mxu0
    %v2578 = vadd.f32 %v2417, %v2577
    %v2579 = vpop.f32.mrf.mxu0
    %2580 = vmatprep.mubr.bf16.mxu0 %v1654
    %2581 = vmatmul.mubr.bf16.gmra.mxu0 %v1604
    %v2582 = vpop.f32.mrf.mxu0
    %v2583 = vadd.f32 %v2422, %v2582
    %v2584 = vpop.f32.mrf.mxu0
    %v2585 = vpop.f32.mrf.mxu0
    %v2586 = vadd.f32 %v2425, %v2585
    %v2587 = vpop.f32.mrf.mxu0
    %2588 = vmatprep.mubr.bf16.mxu0 %v1655
    %2589 = vmatmul.mubr.bf16.gmra.mxu0 %v1605
    %v2590 = vpop.f32.mrf.mxu0
    %v2591 = vadd.f32 %v2430, %v2590
    %v2592 = vpop.f32.mrf.mxu0
    %v2593 = vpop.f32.mrf.mxu0
    %v2594 = vadd.f32 %v2433, %v2593
    %v2595 = vpop.f32.mrf.mxu0
    %2596 = vmatprep.mubr.bf16.mxu0 %v1656
    %2597 = vmatmul.mubr.bf16.gmra.mxu0 %v1606
    %v2598 = vpop.f32.mrf.mxu0
    %v2599 = vadd.f32 %v2438, %v2598
    %v2600 = vpop.f32.mrf.mxu0
    %v2601 = vpop.f32.mrf.mxu0
    %v2602 = vadd.f32 %v2441, %v2601
    %v2603 = vpop.f32.mrf.mxu0
    %2604 = vmatprep.mubr.bf16.mxu0 %v1657
    %2605 = vmatmul.mubr.bf16.gmra.mxu0 %v1607
    %v2606 = vpop.f32.mrf.mxu0
    %v2607 = vadd.f32 %v2446, %v2606
    %v2608 = vpop.f32.mrf.mxu0
    %v2609 = vpop.f32.mrf.mxu0
    %v2610 = vadd.f32 %v2449, %v2609
    %v2611 = vpop.f32.mrf.mxu0
    %2612 = vmatprep.mubr.bf16.mxu0 %v1658
    %2613 = vmatmul.mubr.bf16.gmra.mxu0 %v1608
    %v2614 = vpop.f32.mrf.mxu0
    %v2615 = vadd.f32 %v2454, %v2614
    %v2616 = vpop.f32.mrf.mxu0
    %v2617 = vpop.f32.mrf.mxu0
    %v2618 = vadd.f32 %v2457, %v2617
    %v2619 = vpop.f32.mrf.mxu0
    %2620 = vmatprep.mubr.bf16.mxu0 %v1659
    %2621 = vmatmul.mubr.bf16.gmra.mxu0 %v1609
    %v2622 = vpop.f32.mrf.mxu0
    %v2623 = vadd.f32 %v2462, %v2622
    %v2624 = vpop.f32.mrf.mxu0
    %v2625 = vpop.f32.mrf.mxu0
    %v2626 = vadd.f32 %v2465, %v2625
    %v2627 = vpop.f32.mrf.mxu0
    %2628 = vmatprep.mubr.bf16.mxu0 %v1660
    %2629 = vmatmul.mubr.bf16.gmra.mxu0 %v1610
    %v2630 = vpop.f32.mrf.mxu0
    %v2631 = vadd.f32 %v2470, %v2630
    %v2632 = vpop.f32.mrf.mxu0
    %v2633 = vpop.f32.mrf.mxu0
    %v2634 = vadd.f32 %v2473, %v2633
    %v2635 = vpop.f32.mrf.mxu0
    %2636 = vmatprep.mubr.bf16.mxu0 %v1661
    %2637 = vmatmul.mubr.bf16.gmra.mxu0 %v1611
    %v2638 = vpop.f32.mrf.mxu0
    %v2639 = vadd.f32 %v2478, %v2638
    %v2640 = vpop.f32.mrf.mxu0
    %v2641 = vpop.f32.mrf.mxu0
    %v2642 = vadd.f32 %v2481, %v2641
    %v2643 = vpop.f32.mrf.mxu0
    %2644 = vmatprep.mubr.bf16.mxu0 %v1662
    %2645 = vmatmul.mubr.bf16.gmra.mxu0 %v1612
    %v2646 = vpop.f32.mrf.mxu0
    %v2647 = vadd.f32 %v2486, %v2646
    %v2648 = vpop.f32.mrf.mxu0
    %v2649 = vpop.f32.mrf.mxu0
    %v2650 = vadd.f32 %v2489, %v2649
    %v2651 = vpop.f32.mrf.mxu0
    %2652 = vmatprep.mubr.bf16.mxu0 %v1663
    %2653 = vmatmul.mubr.bf16.gmra.mxu0 %v1613
    %v2654 = vpop.f32.mrf.mxu0
    %v2655 = vadd.f32 %v2494, %v2654
    %v2656 = vpop.f32.mrf.mxu0
    %v2657 = vpop.f32.mrf.mxu0
    %v2658 = vadd.f32 %v2497, %v2657
    %v2659 = vpop.f32.mrf.mxu0
    %2660 = vmatprep.mubr.bf16.mxu0 %v1664
    %2661 = vmatmul.mubr.bf16.gmra.mxu0 %v1614
    %v2662 = vpop.f32.mrf.mxu0
    %v2663 = vadd.f32 %v2502, %v2662
    %v2664 = vpop.f32.mrf.mxu0
    %v2665 = vpop.f32.mrf.mxu0
    %v2666 = vadd.f32 %v2505, %v2665
    %v2667 = vpop.f32.mrf.mxu0
    %2668 = vmatprep.mubr.bf16.mxu0 %v1665
    %2669 = vmatmul.mubr.bf16.gmra.mxu0 %v1615
    %v2670 = vpop.f32.mrf.mxu0
    %v2671 = vadd.f32 %v2510, %v2670
    %v2672 = vpop.f32.mrf.mxu0
    %v2673 = vpop.f32.mrf.mxu0
    %v2674 = vadd.f32 %v2513, %v2673
    %v2675 = vpop.f32.mrf.mxu0
    %2676 = vmatprep.mubr.bf16.mxu0 %v1666
    %2677 = vmatmul.mubr.bf16.gmra.mxu0 %v1616
    %v2678 = vpop.f32.mrf.mxu0
    %v2679 = vadd.f32 %v2518, %v2678
    %v2680 = vpop.f32.mrf.mxu0
    %v2681 = vpop.f32.mrf.mxu0
    %v2682 = vadd.f32 %v2521, %v2681
    %v2683 = vpop.f32.mrf.mxu0
    %2684 = vmatprep.mubr.bf16.mxu0 %v1667
    %2685 = vmatmul.mubr.bf16.gmra.mxu0 %v1617
    %v2686 = vpop.f32.mrf.mxu0
    %v2687 = vadd.f32 %v2526, %v2686
    %v2688 = vpop.f32.mrf.mxu0
    %v2689 = vpop.f32.mrf.mxu0
    %v2690 = vadd.f32 %v2529, %v2689
    %v2691 = vpop.f32.mrf.mxu0
    %2692 = vdwg.mxu0
    %2693 = vmatprep.subr.bf16.mxu0 0
    %2694 = vmatpush1.bf16.msra.mxu0 %v2121
    %2695 = vmatprep.subr.bf16.mxu0 0
    %2696 = vmatpush1.bf16.msra.mxu0 %v2120
    %2697 = vmatprep.subr.bf16.mxu0 0
    %2698 = vmatpush1.bf16.msra.mxu0 %v2119
    %2699 = vmatprep.subr.bf16.mxu0 0
    %2700 = vmatpush1.bf16.msra.mxu0 %v2118
    %2701 = vmatprep.subr.bf16.mxu0 0
    %2702 = vmatpush1.bf16.msra.mxu0 %v2117
    %2703 = vmatprep.subr.bf16.mxu0 0
    %2704 = vmatpush1.bf16.msra.mxu0 %v2116
    %2705 = vmatprep.subr.bf16.mxu0 0
    %2706 = vmatpush1.bf16.msra.mxu0 %v2115
    %2707 = vmatprep.subr.bf16.mxu0 0
    %2708 = vmatpush1.bf16.msra.mxu0 %v2114
    %2709 = vmatprep.subr.bf16.mxu0 0
    %2710 = vmatpush2.bf16.msra.mxu0 %v2129
    %2711 = vmatprep.subr.bf16.mxu0 0
    %2712 = vmatpush2.bf16.msra.mxu0 %v2128
    %2713 = vmatprep.subr.bf16.mxu0 0
    %2714 = vmatpush2.bf16.msra.mxu0 %v2127
    %2715 = vmatprep.subr.bf16.mxu0 0
    %2716 = vmatpush2.bf16.msra.mxu0 %v2126
    %2717 = vmatprep.subr.bf16.mxu0 0
    %2718 = vmatpush2.bf16.msra.mxu0 %v2125
    %2719 = vmatprep.subr.bf16.mxu0 0
    %2720 = vmatpush2.bf16.msra.mxu0 %v2124
    %2721 = vmatprep.subr.bf16.mxu0 0
    %2722 = vmatpush2.bf16.msra.mxu0 %v2123
    %2723 = vmatprep.subr.bf16.mxu0 0
    %2724 = vmatpush2.bf16.msra.mxu0 %v2122
    %2725 = vmatprep.mubr.bf16.mxu0 %v1458
    %2726 = vmatmul.mubr.bf16.gmra.mxu0 %v1702
    %v2727 = vpop.f32.mrf.mxu0
    %v2728 = vadd.f32 %v2567, %v2727
    %v2729 = vpop.f32.mrf.mxu0
    %v2730 = vpop.f32.mrf.mxu0
    %v2731 = vadd.f32 %v2570, %v2730
    %v2732 = vpop.f32.mrf.mxu0
    %2733 = vmatprep.mubr.bf16.mxu0 %v1459
    %2734 = vmatmul.mubr.bf16.gmra.mxu0 %v1703
    %v2735 = vpop.f32.mrf.mxu0
    %v2736 = vadd.f32 %v2575, %v2735
    %v2737 = vpop.f32.mrf.mxu0
    %v2738 = vpop.f32.mrf.mxu0
    %v2739 = vadd.f32 %v2578, %v2738
    %v2740 = vpop.f32.mrf.mxu0
    %2741 = vmatprep.mubr.bf16.mxu0 %v1460
    %2742 = vmatmul.mubr.bf16.gmra.mxu0 %v1704
    %v2743 = vpop.f32.mrf.mxu0
    %v2744 = vadd.f32 %v2583, %v2743
    %v2745 = vpop.f32.mrf.mxu0
    %v2746 = vpop.f32.mrf.mxu0
    %v2747 = vadd.f32 %v2586, %v2746
    %v2748 = vpop.f32.mrf.mxu0
    %2749 = vmatprep.mubr.bf16.mxu0 %v1461
    %2750 = vmatmul.mubr.bf16.gmra.mxu0 %v1705
    %v2751 = vpop.f32.mrf.mxu0
    %v2752 = vadd.f32 %v2591, %v2751
    %v2753 = vpop.f32.mrf.mxu0
    %v2754 = vpop.f32.mrf.mxu0
    %v2755 = vadd.f32 %v2594, %v2754
    %v2756 = vpop.f32.mrf.mxu0
    %2757 = vmatprep.mubr.bf16.mxu0 %v1462
    %2758 = vmatmul.mubr.bf16.gmra.mxu0 %v1706
    %v2759 = vpop.f32.mrf.mxu0
    %v2760 = vadd.f32 %v2599, %v2759
    %v2761 = vpop.f32.mrf.mxu0
    %v2762 = vpop.f32.mrf.mxu0
    %v2763 = vadd.f32 %v2602, %v2762
    %v2764 = vpop.f32.mrf.mxu0
    %2765 = vmatprep.mubr.bf16.mxu0 %v1463
    %2766 = vmatmul.mubr.bf16.gmra.mxu0 %v1707
    %v2767 = vpop.f32.mrf.mxu0
    %v2768 = vadd.f32 %v2607, %v2767
    %v2769 = vpop.f32.mrf.mxu0
    %v2770 = vpop.f32.mrf.mxu0
    %v2771 = vadd.f32 %v2610, %v2770
    %v2772 = vpop.f32.mrf.mxu0
    %2773 = vmatprep.mubr.bf16.mxu0 %v1464
    %2774 = vmatmul.mubr.bf16.gmra.mxu0 %v1708
    %v2775 = vpop.f32.mrf.mxu0
    %v2776 = vadd.f32 %v2615, %v2775
    %v2777 = vpop.f32.mrf.mxu0
    %v2778 = vpop.f32.mrf.mxu0
    %v2779 = vadd.f32 %v2618, %v2778
    %v2780 = vpop.f32.mrf.mxu0
    %2781 = vmatprep.mubr.bf16.mxu0 %v1465
    %2782 = vmatmul.mubr.bf16.gmra.mxu0 %v1709
    %v2783 = vpop.f32.mrf.mxu0
    %v2784 = vadd.f32 %v2623, %v2783
    %v2785 = vpop.f32.mrf.mxu0
    %v2786 = vpop.f32.mrf.mxu0
    %v2787 = vadd.f32 %v2626, %v2786
    %v2788 = vpop.f32.mrf.mxu0
    %2789 = vmatprep.mubr.bf16.mxu0 %v1466
    %2790 = vmatmul.mubr.bf16.gmra.mxu0 %v1710
    %v2791 = vpop.f32.mrf.mxu0
    %v2792 = vadd.f32 %v2631, %v2791
    %v2793 = vpop.f32.mrf.mxu0
    %v2794 = vpop.f32.mrf.mxu0
    %v2795 = vadd.f32 %v2634, %v2794
    %v2796 = vpop.f32.mrf.mxu0
    %2797 = vmatprep.mubr.bf16.mxu0 %v1467
    %2798 = vmatmul.mubr.bf16.gmra.mxu0 %v1711
    %v2799 = vpop.f32.mrf.mxu0
    %v2800 = vadd.f32 %v2639, %v2799
    %v2801 = vpop.f32.mrf.mxu0
    %v2802 = vpop.f32.mrf.mxu0
    %v2803 = vadd.f32 %v2642, %v2802
    %v2804 = vpop.f32.mrf.mxu0
    %2805 = vmatprep.mubr.bf16.mxu0 %v1468
    %2806 = vmatmul.mubr.bf16.gmra.mxu0 %v1712
    %v2807 = vpop.f32.mrf.mxu0
    %v2808 = vadd.f32 %v2647, %v2807
    %v2809 = vpop.f32.mrf.mxu0
    %v2810 = vpop.f32.mrf.mxu0
    %v2811 = vadd.f32 %v2650, %v2810
    %v2812 = vpop.f32.mrf.mxu0
    %2813 = vmatprep.mubr.bf16.mxu0 %v1469
    %2814 = vmatmul.mubr.bf16.gmra.mxu0 %v1713
    %v2815 = vpop.f32.mrf.mxu0
    %v2816 = vadd.f32 %v2655, %v2815
    %v2817 = vpop.f32.mrf.mxu0
    %v2818 = vpop.f32.mrf.mxu0
    %v2819 = vadd.f32 %v2658, %v2818
    %v2820 = vpop.f32.mrf.mxu0
    %2821 = vmatprep.mubr.bf16.mxu0 %v1470
    %2822 = vmatmul.mubr.bf16.gmra.mxu0 %v1714
    %v2823 = vpop.f32.mrf.mxu0
    %v2824 = vadd.f32 %v2663, %v2823
    %v2825 = vpop.f32.mrf.mxu0
    %v2826 = vpop.f32.mrf.mxu0
    %v2827 = vadd.f32 %v2666, %v2826
    %v2828 = vpop.f32.mrf.mxu0
    %2829 = vmatprep.mubr.bf16.mxu0 %v1471
    %2830 = vmatmul.mubr.bf16.gmra.mxu0 %v1715
    %v2831 = vpop.f32.mrf.mxu0
    %v2832 = vadd.f32 %v2671, %v2831
    %v2833 = vpop.f32.mrf.mxu0
    %v2834 = vpop.f32.mrf.mxu0
    %v2835 = vadd.f32 %v2674, %v2834
    %v2836 = vpop.f32.mrf.mxu0
    %2837 = vmatprep.mubr.bf16.mxu0 %v1722
    %2838 = vmatmul.mubr.bf16.gmra.mxu0 %v1716
    %v2839 = vpop.f32.mrf.mxu0
    %v2840 = vadd.f32 %v2679, %v2839
    %v2841 = vpop.f32.mrf.mxu0
    %v2842 = vpop.f32.mrf.mxu0
    %v2843 = vadd.f32 %v2682, %v2842
    %v2844 = vpop.f32.mrf.mxu0
    %2845 = vmatprep.mubr.bf16.mxu0 %v1723
    %2846 = vmatmul.mubr.bf16.gmra.mxu0 %v1717
    %v2847 = vpop.f32.mrf.mxu0
    %v2848 = vadd.f32 %v2687, %v2847
    %v2849 = vpop.f32.mrf.mxu0
    %v2850 = vpop.f32.mrf.mxu0
    %v2851 = vadd.f32 %v2690, %v2850
    %v2852 = vpop.f32.mrf.mxu0
    %2853 = vdwg.mxu0
    %2854 = vmatprep.subr.bf16.mxu0 0
    %2855 = vmatpush1.bf16.msra.mxu0 %v2137
    %2856 = vmatprep.subr.bf16.mxu0 0
    %2857 = vmatpush1.bf16.msra.mxu0 %v2136
    %2858 = vmatprep.subr.bf16.mxu0 0
    %2859 = vmatpush1.bf16.msra.mxu0 %v2135
    %2860 = vmatprep.subr.bf16.mxu0 0
    %2861 = vmatpush1.bf16.msra.mxu0 %v2134
    %2862 = vmatprep.subr.bf16.mxu0 0
    %2863 = vmatpush1.bf16.msra.mxu0 %v2133
    %2864 = vmatprep.subr.bf16.mxu0 0
    %2865 = vmatpush1.bf16.msra.mxu0 %v2132
    %2866 = vmatprep.subr.bf16.mxu0 0
    %2867 = vmatpush1.bf16.msra.mxu0 %v2131
    %2868 = vmatprep.subr.bf16.mxu0 0
    %2869 = vmatpush1.bf16.msra.mxu0 %v2130
    %2870 = vmatprep.subr.bf16.mxu0 0
    %2871 = vmatpush2.bf16.msra.mxu0 0
    %2872 = vmatprep.subr.bf16.mxu0 0
    %2873 = vmatpush2.bf16.msra.mxu0 0
    %2874 = vmatprep.subr.bf16.mxu0 0
    %2875 = vmatpush2.bf16.msra.mxu0 0
    %2876 = vmatprep.subr.bf16.mxu0 0
    %2877 = vmatpush2.bf16.msra.mxu0 0
    %2878 = vmatprep.subr.bf16.mxu0 0
    %2879 = vmatpush2.bf16.msra.mxu0 0
    %2880 = vmatprep.subr.bf16.mxu0 0
    %2881 = vmatpush2.bf16.msra.mxu0 0
    %2882 = vmatprep.subr.bf16.mxu0 0
    %2883 = vmatpush2.bf16.msra.mxu0 0
    %2884 = vmatprep.subr.bf16.mxu0 0
    %2885 = vmatpush2.bf16.msra.mxu0 0
    %2886 = vmatprep.mubr.bf16.mxu0 0
    %2887 = vmatmul.mubr.bf16.gmra.mxu0 %v1758
    %v2888 = vpop.f32.mrf.mxu0
    %v2889 = vadd.f32 %v2728, %v2888
    %v2890 = vpop.f32.mrf.mxu0
    %v2891 = vpop.f32.mrf.mxu0
    %v2892 = vadd.f32 %v2731, %v2891
    %v2893 = vpop.f32.mrf.mxu0
    %2894 = vmatprep.mubr.bf16.mxu0 0
    %2895 = vmatmul.mubr.bf16.gmra.mxu0 %v1759
    %v2896 = vpop.f32.mrf.mxu0
    %v2897 = vadd.f32 %v2736, %v2896
    %v2898 = vpop.f32.mrf.mxu0
    %v2899 = vpop.f32.mrf.mxu0
    %v2900 = vadd.f32 %v2739, %v2899
    %v2901 = vpop.f32.mrf.mxu0
    %2902 = vmatprep.mubr.bf16.mxu0 0
    %2903 = vmatmul.mubr.bf16.gmra.mxu0 %v1760
    %v2904 = vpop.f32.mrf.mxu0
    %v2905 = vadd.f32 %v2744, %v2904
    %v2906 = vpop.f32.mrf.mxu0
    %v2907 = vpop.f32.mrf.mxu0
    %v2908 = vadd.f32 %v2747, %v2907
    %v2909 = vpop.f32.mrf.mxu0
    %2910 = vmatprep.mubr.bf16.mxu0 0
    %2911 = vmatmul.mubr.bf16.gmra.mxu0 %v1761
    %v2912 = vpop.f32.mrf.mxu0
    %v2913 = vadd.f32 %v2752, %v2912
    %v2914 = vpop.f32.mrf.mxu0
    %v2915 = vpop.f32.mrf.mxu0
    %v2916 = vadd.f32 %v2755, %v2915
    %v2917 = vpop.f32.mrf.mxu0
    %2918 = vmatprep.mubr.bf16.mxu0 0
    %2919 = vmatmul.mubr.bf16.gmra.mxu0 %v1762
    %v2920 = vpop.f32.mrf.mxu0
    %v2921 = vadd.f32 %v2760, %v2920
    %v2922 = vpop.f32.mrf.mxu0
    %v2923 = vpop.f32.mrf.mxu0
    %v2924 = vadd.f32 %v2763, %v2923
    %v2925 = vpop.f32.mrf.mxu0
    %2926 = vmatprep.mubr.bf16.mxu0 0
    %2927 = vmatmul.mubr.bf16.gmra.mxu0 %v1763
    %v2928 = vpop.f32.mrf.mxu0
    %v2929 = vadd.f32 %v2768, %v2928
    %v2930 = vpop.f32.mrf.mxu0
    %v2931 = vpop.f32.mrf.mxu0
    %v2932 = vadd.f32 %v2771, %v2931
    %v2933 = vpop.f32.mrf.mxu0
    %2934 = vmatprep.mubr.bf16.mxu0 0
    %2935 = vmatmul.mubr.bf16.gmra.mxu0 %v1764
    %v2936 = vpop.f32.mrf.mxu0
    %v2937 = vadd.f32 %v2776, %v2936
    %v2938 = vpop.f32.mrf.mxu0
    %v2939 = vpop.f32.mrf.mxu0
    %v2940 = vadd.f32 %v2779, %v2939
    %v2941 = vpop.f32.mrf.mxu0
    %2942 = vmatprep.mubr.bf16.mxu0 0
    %2943 = vmatmul.mubr.bf16.gmra.mxu0 %v1765
    %v2944 = vpop.f32.mrf.mxu0
    %v2945 = vadd.f32 %v2784, %v2944
    %v2946 = vpop.f32.mrf.mxu0
    %v2947 = vpop.f32.mrf.mxu0
    %v2948 = vadd.f32 %v2787, %v2947
    %v2949 = vpop.f32.mrf.mxu0
    %2950 = vmatprep.mubr.bf16.mxu0 0
    %2951 = vmatmul.mubr.bf16.gmra.mxu0 %v1766
    %v2952 = vpop.f32.mrf.mxu0
    %v2953 = vadd.f32 %v2792, %v2952
    %v2954 = vpop.f32.mrf.mxu0
    %v2955 = vpop.f32.mrf.mxu0
    %v2956 = vadd.f32 %v2795, %v2955
    %v2957 = vpop.f32.mrf.mxu0
    %2958 = vmatprep.mubr.bf16.mxu0 0
    %2959 = vmatmul.mubr.bf16.gmra.mxu0 %v1767
    %v2960 = vpop.f32.mrf.mxu0
    %v2961 = vadd.f32 %v2800, %v2960
    %v2962 = vpop.f32.mrf.mxu0
    %v2963 = vpop.f32.mrf.mxu0
    %v2964 = vadd.f32 %v2803, %v2963
    %v2965 = vpop.f32.mrf.mxu0
    %2966 = vmatprep.mubr.bf16.mxu0 0
    %2967 = vmatmul.mubr.bf16.gmra.mxu0 %v1768
    %v2968 = vpop.f32.mrf.mxu0
    %v2969 = vadd.f32 %v2808, %v2968
    %v2970 = vpop.f32.mrf.mxu0
    %v2971 = vpop.f32.mrf.mxu0
    %v2972 = vadd.f32 %v2811, %v2971
    %v2973 = vpop.f32.mrf.mxu0
    %2974 = vmatprep.mubr.bf16.mxu0 0
    %2975 = vmatmul.mubr.bf16.gmra.mxu0 %v1769
    %v2976 = vpop.f32.mrf.mxu0
    %v2977 = vadd.f32 %v2816, %v2976
    %v2978 = vpop.f32.mrf.mxu0
    %v2979 = vpop.f32.mrf.mxu0
    %v2980 = vadd.f32 %v2819, %v2979
    %v2981 = vpop.f32.mrf.mxu0
    %2982 = vmatprep.mubr.bf16.mxu0 0
    %2983 = vmatmul.mubr.bf16.gmra.mxu0 %v1770
    %v2984 = vpop.f32.mrf.mxu0
    %v2985 = vadd.f32 %v2824, %v2984
    %v2986 = vpop.f32.mrf.mxu0
    %v2987 = vpop.f32.mrf.mxu0
    %v2988 = vadd.f32 %v2827, %v2987
    %v2989 = vpop.f32.mrf.mxu0
    %2990 = vmatprep.mubr.bf16.mxu0 0
    %2991 = vmatmul.mubr.bf16.gmra.mxu0 %v1771
    %v2992 = vpop.f32.mrf.mxu0
    %v2993 = vadd.f32 %v2832, %v2992
    %v2994 = vpop.f32.mrf.mxu0
    %v2995 = vpop.f32.mrf.mxu0
    %v2996 = vadd.f32 %v2835, %v2995
    %v2997 = vpop.f32.mrf.mxu0
    %2998 = vmatprep.mubr.bf16.mxu0 0
    %2999 = vmatmul.mubr.bf16.gmra.mxu0 %v1772
    %v3000 = vpop.f32.mrf.mxu0
    %v3001 = vadd.f32 %v2840, %v3000
    %v3002 = vpop.f32.mrf.mxu0
    %v3003 = vpop.f32.mrf.mxu0
    %v3004 = vadd.f32 %v2843, %v3003
    %v3005 = vpop.f32.mrf.mxu0
    %3006 = vmatprep.mubr.bf16.mxu0 0
    %3007 = vmatmul.mubr.bf16.gmra.mxu0 %v1773
    %v3008 = vpop.f32.mrf.mxu0
    %v3009 = vadd.f32 %v2848, %v3008
    %v3010 = vpop.f32.mrf.mxu0
    %v3011 = vpop.f32.mrf.mxu0
    %v3012 = vadd.f32 %v2851, %v3011
    %v3013 = vpop.f32.mrf.mxu0
    %3014 = vdwg.mxu0
    %v3015 = vld [vmem:[%s1] sm:$0x1]
    %v3016 = vxor.u32 %v3015, 2147483648
    %v3017 = vmul.f32 %v3016, 1.442695
    %v3018 = vpow.pop %v3017
    %v3019 = vadd.f32 %v3018, 1.0
    %v3020 = vrcp.pop %v3019
    %v3021 = vmul.f32 1.0, %v3020
    %v3022 = vmul.f32 %v3015, %v3021
    %v3023 = vld [vmem:[#allocation9] sm:$0xff]
    %v3024 = vld [vmem:[#allocation9 + $0x8] sm:$0xff]
    %v3025 = vld [vmem:[#allocation9 + $0x10] sm:$0xff]
    %v3026 = vld [vmem:[#allocation9 + $0x18] sm:$0xff]
    %v3027 = vld [vmem:[#allocation9 + $0x20] sm:$0xff]
    %v3028 = vld [vmem:[#allocation9 + $0x28] sm:$0xff]
    %v3029 = vld [vmem:[#allocation9 + $0x30] sm:$0xff]
    %v3030 = vld [vmem:[#allocation9 + $0x38] sm:$0xff]
    %v3031 = vld [vmem:[#allocation9 + $0x40] sm:$0xff]
    %v3032 = vld [vmem:[#allocation9 + $0x48] sm:$0xff]
    %v3033 = vld [vmem:[#allocation9 + $0x50] sm:$0xff]
    %v3034 = vld [vmem:[#allocation9 + $0x58] sm:$0xff]
    %v3035 = vld [vmem:[#allocation9 + $0x60] sm:$0xff]
    %v3036 = vld [vmem:[#allocation9 + $0x68] sm:$0xff]
    %v3037 = vld [vmem:[#allocation9 + $0x70] sm:$0xff]
    %v3038 = vld [vmem:[#allocation9 + $0x78] sm:$0xff]
    %v3039 = vld [vmem:[%s5] sm:$0x3]
    %v3041 = vlaneseq
    %v3042 = vshrl.u32 %v3041, 7
    %v3043 = vsub.s32 0, %v3042
    %v3044 = vrot.slane %v3039, %v3043
    %v3045 = vlaneseq
    %v3046 = vshrl.u32 %v3045, 7
    %v3047 = vsub.s32 1, %v3046
    %v3048 = vrot.slane %v3039, %v3047
    %vm3051 = vcmask 523264
    %v3053 = vsel %vm3051, %v3022, 0
    %3055 = vmatprep.subr.mxu0 0.0
    %3056 = vmatpush1.msra.mxu0 0.0
    %3057 = vmatprep.subr.mxu0 0.0
    %3058 = vmatpush1.msra.mxu0 0.0
    %3059 = vmatprep.subr.mxu0 0.0
    %3060 = vmatpush1.msra.mxu0 0.0
    %3061 = vmatprep.subr.mxu0 0.0
    %3062 = vmatpush1.msra.mxu0 0.0
    %3063 = vmatprep.subr.mxu0 0.0
    %3064 = vmatpush1.msra.mxu0 0.0
    %3065 = vmatprep.subr.mxu0 0.0
    %3066 = vmatpush1.msra.mxu0 0.0
    %3067 = vmatprep.subr.mxu0 0.0
    %3068 = vmatpush1.msra.mxu0 0.0
    %3069 = vmatprep.subr.mxu0 0.0
    %3070 = vmatpush1.msra.mxu0 0.0
    %3071 = vmatprep.subr.mxu0 %v3038
    %3072 = vmatpush1.msra.mxu0 %v3037
    %3073 = vmatprep.subr.mxu0 %v3036
    %3074 = vmatpush1.msra.mxu0 %v3035
    %3075 = vmatprep.subr.mxu0 %v3034
    %3076 = vmatpush1.msra.mxu0 %v3033
    %3077 = vmatprep.subr.mxu0 %v3032
    %3078 = vmatpush1.msra.mxu0 %v3031
    %3079 = vmatprep.subr.mxu0 %v3030
    %3080 = vmatpush1.msra.mxu0 %v3029
    %3081 = vmatprep.subr.mxu0 %v3028
    %3082 = vmatpush1.msra.mxu0 %v3027
    %3083 = vmatprep.subr.mxu0 %v3026
    %3084 = vmatpush1.msra.mxu0 %v3025
    %3085 = vmatprep.subr.mxu0 %v3024
    %3086 = vmatpush1.msra.mxu0 %v3023
    %3087 = vmatprep.subr.mxu0 0.0
    %3088 = vmatpush2.msra.mxu0 0.0
    %3089 = vmatprep.subr.mxu0 0.0
    %3090 = vmatpush2.msra.mxu0 0.0
    %3091 = vmatprep.subr.mxu0 0.0
    %3092 = vmatpush2.msra.mxu0 0.0
    %3093 = vmatprep.subr.mxu0 0.0
    %3094 = vmatpush2.msra.mxu0 0.0
    %3095 = vmatprep.subr.mxu0 0.0
    %3096 = vmatpush2.msra.mxu0 0.0
    %3097 = vmatprep.subr.mxu0 0.0
    %3098 = vmatpush2.msra.mxu0 0.0
    %3099 = vmatprep.subr.mxu0 0.0
    %3100 = vmatpush2.msra.mxu0 0.0
    %3101 = vmatprep.subr.mxu0 0.0
    %3102 = vmatpush2.msra.mxu0 0.0
    %3103 = vmatprep.subr.mxu0 0.0
    %3104 = vmatpush2.msra.mxu0 0.0
    %3105 = vmatprep.subr.mxu0 0.0
    %3106 = vmatpush2.msra.mxu0 0.0
    %3107 = vmatprep.subr.mxu0 0.0
    %3108 = vmatpush2.msra.mxu0 0.0
    %3109 = vmatprep.subr.mxu0 0.0
    %3110 = vmatpush2.msra.mxu0 0.0
    %3111 = vmatprep.subr.mxu0 0.0
    %3112 = vmatpush2.msra.mxu0 0.0
    %3113 = vmatprep.subr.mxu0 0.0
    %3114 = vmatpush2.msra.mxu0 0.0
    %3115 = vmatprep.subr.mxu0 0.0
    %3116 = vmatpush2.msra.mxu0 0.0
    %3117 = vmatprep.subr.mxu0 0.0
    %3118 = vmatpush2.msra.mxu0 0.0
    %3119 = vmatprep.mubr.f32.mxu0 0.0
    %3120 = vmatmul.mubr.f32.gmra.mxu0 %v3053
    %v3121 = vpop.f32.mrf.mxu0
    %v3122 = vadd.f32 %v3044, %v3121
    %v3123 = vpop.f32.mrf.mxu0
    %v3124 = vadd.f32 %v3048, %v3123
    %3125 = vdwg.mxu0
    %v3126 = vld [vmem:[#allocation6] sm:$0x1]
    %v3127 = vld [vmem:[#allocation11] sm:$0xff]
    %v3128 = vld [vmem:[#allocation11 + $0x8] sm:$0xff]
    %v3129 = vld [vmem:[#allocation11 + $0x10] sm:$0x3]
    %v3130 = vld [vmem:[%s6] sm:$0x1]
    %vm3131 = vcmask 146432
    %v3133 = vsel %vm3131, %v3126, 0
    %vm3135 = vcmask 1041408
    %v3137 = vsel %vm3135, %v3129, 0
    %3139 = vmatprep.subr.mxu0 0.0
    %3140 = vmatpush1.msra.mxu0 0.0
    %3141 = vmatprep.subr.mxu0 0.0
    %3142 = vmatpush1.msra.mxu0 0.0
    %3143 = vmatprep.subr.mxu0 0.0
    %3144 = vmatpush1.msra.mxu0 0.0
    %3145 = vmatprep.subr.mxu0 0.0
    %3146 = vmatpush1.msra.mxu0 0.0
    %3147 = vmatprep.subr.mxu0 0.0
    %3148 = vmatpush1.msra.mxu0 0.0
    %3149 = vmatprep.subr.mxu0 0.0
    %3150 = vmatpush1.msra.mxu0 0.0
    %3151 = vmatprep.subr.mxu0 0.0
    %3152 = vmatpush1.msra.mxu0 0.0
    %3153 = vmatprep.subr.mxu0 0.0
    %3154 = vmatpush1.msra.mxu0 0.0
    %3155 = vmatprep.subr.mxu0 0.0
    %3156 = vmatpush1.msra.mxu0 0.0
    %3157 = vmatprep.subr.mxu0 0.0
    %3158 = vmatpush1.msra.mxu0 0.0
    %3159 = vmatprep.subr.mxu0 0.0
    %3160 = vmatpush1.msra.mxu0 0.0
    %3161 = vmatprep.subr.mxu0 0.0
    %3162 = vmatpush1.msra.mxu0 0.0
    %3163 = vmatprep.subr.mxu0 0.0
    %3164 = vmatpush1.msra.mxu0 0.0
    %3165 = vmatprep.subr.mxu0 0.0
    %3166 = vmatpush1.msra.mxu0 %v3137
    %3167 = vmatprep.subr.mxu0 0.0
    %3168 = vmatpush1.msra.mxu0 %v3128
    %3169 = vmatprep.subr.mxu0 0.0
    %3170 = vmatpush1.msra.mxu0 %v3127
    %3171 = vmatprep.subr.mxu0 0.0
    %3172 = vmatpush2.msra.mxu0 0.0
    %3173 = vmatprep.subr.mxu0 0.0
    %3174 = vmatpush2.msra.mxu0 0.0
    %3175 = vmatprep.subr.mxu0 0.0
    %3176 = vmatpush2.msra.mxu0 0.0
    %3177 = vmatprep.subr.mxu0 0.0
    %3178 = vmatpush2.msra.mxu0 0.0
    %3179 = vmatprep.subr.mxu0 0.0
    %3180 = vmatpush2.msra.mxu0 0.0
    %3181 = vmatprep.subr.mxu0 0.0
    %3182 = vmatpush2.msra.mxu0 0.0
    %3183 = vmatprep.subr.mxu0 0.0
    %3184 = vmatpush2.msra.mxu0 0.0
    %3185 = vmatprep.subr.mxu0 0.0
    %3186 = vmatpush2.msra.mxu0 0.0
    %3187 = vmatprep.subr.mxu0 0.0
    %3188 = vmatpush2.msra.mxu0 0.0
    %3189 = vmatprep.subr.mxu0 0.0
    %3190 = vmatpush2.msra.mxu0 0.0
    %3191 = vmatprep.subr.mxu0 0.0
    %3192 = vmatpush2.msra.mxu0 0.0
    %3193 = vmatprep.subr.mxu0 0.0
    %3194 = vmatpush2.msra.mxu0 0.0
    %3195 = vmatprep.subr.mxu0 0.0
    %3196 = vmatpush2.msra.mxu0 0.0
    %3197 = vmatprep.subr.mxu0 0.0
    %3198 = vmatpush2.msra.mxu0 0.0
    %3199 = vmatprep.subr.mxu0 0.0
    %3200 = vmatpush2.msra.mxu0 0.0
    %3201 = vmatprep.subr.mxu0 0.0
    %3202 = vmatpush2.msra.mxu0 0.0
    %3203 = vmatprep.mubr.f32.mxu0 0.0
    %3204 = vmatmul.mubr.f32.gmra.mxu0 %v3133
    %v3205 = vpop.f32.mrf.mxu0
    %v3206 = vadd.f32 %v3130, %v3205
    %v3207 = vpop.f32.mrf.mxu0
    %3208 = vdwg.mxu0
    %v3209 = vxor.u32 %v3206, 2147483648
    %v3210 = vmul.f32 %v3209, 1.442695
    %v3211 = vpow.pop %v3210
    %v3212 = vadd.f32 %v3211, 1.0
    %v3213 = vrcp.pop %v3212
    %v3214 = vmul.f32 1.0, %v3213
    %v3215 = vmul.f32 %v3206, %v3214
    %v3216 = vld [vmem:[#allocation12] sm:$0xff]
    %v3217 = vld [vmem:[#allocation12 + $0x8] sm:$0xff]
    %v3218 = vld [vmem:[#allocation12 + $0x10] sm:$0xff]
    %v3219 = vld [vmem:[#allocation12 + $0x18] sm:$0xff]
    %vm3220 = vcmask 261120
    %v3222 = vsel %vm3220, %v3215, 0
    %3224 = vmatprep.subr.mxu0 0.0
    %3225 = vmatpush1.msra.mxu0 0.0
    %3226 = vmatprep.subr.mxu0 0.0
    %3227 = vmatpush1.msra.mxu0 0.0
    %3228 = vmatprep.subr.mxu0 0.0
    %3229 = vmatpush1.msra.mxu0 0.0
    %3230 = vmatprep.subr.mxu0 0.0
    %3231 = vmatpush1.msra.mxu0 0.0
    %3232 = vmatprep.subr.mxu0 0.0
    %3233 = vmatpush1.msra.mxu0 0.0
    %3234 = vmatprep.subr.mxu0 0.0
    %3235 = vmatpush1.msra.mxu0 0.0
    %3236 = vmatprep.subr.mxu0 0.0
    %3237 = vmatpush1.msra.mxu0 0.0
    %3238 = vmatprep.subr.mxu0 0.0
    %3239 = vmatpush1.msra.mxu0 0.0
    %3240 = vmatprep.subr.mxu0 0.0
    %3241 = vmatpush1.msra.mxu0 0.0
    %3242 = vmatprep.subr.mxu0 0.0
    %3243 = vmatpush1.msra.mxu0 0.0
    %3244 = vmatprep.subr.mxu0 0.0
    %3245 = vmatpush1.msra.mxu0 0.0
    %3246 = vmatprep.subr.mxu0 0.0
    %3247 = vmatpush1.msra.mxu0 0.0
    %3248 = vmatprep.subr.mxu0 0.0
    %3249 = vmatpush1.msra.mxu0 %v3219
    %3250 = vmatprep.subr.mxu0 0.0
    %3251 = vmatpush1.msra.mxu0 %v3218
    %3252 = vmatprep.subr.mxu0 0.0
    %3253 = vmatpush1.msra.mxu0 %v3217
    %3254 = vmatprep.subr.mxu0 0.0
    %3255 = vmatpush1.msra.mxu0 %v3216
    %3256 = vmatprep.subr.mxu0 0.0
    %3257 = vmatpush2.msra.mxu0 0.0
    %3258 = vmatprep.subr.mxu0 0.0
    %3259 = vmatpush2.msra.mxu0 0.0
    %3260 = vmatprep.subr.mxu0 0.0
    %3261 = vmatpush2.msra.mxu0 0.0
    %3262 = vmatprep.subr.mxu0 0.0
    %3263 = vmatpush2.msra.mxu0 0.0
    %3264 = vmatprep.subr.mxu0 0.0
    %3265 = vmatpush2.msra.mxu0 0.0
    %3266 = vmatprep.subr.mxu0 0.0
    %3267 = vmatpush2.msra.mxu0 0.0
    %3268 = vmatprep.subr.mxu0 0.0
    %3269 = vmatpush2.msra.mxu0 0.0
    %3270 = vmatprep.subr.mxu0 0.0
    %3271 = vmatpush2.msra.mxu0 0.0
    %3272 = vmatprep.subr.mxu0 0.0
    %3273 = vmatpush2.msra.mxu0 0.0
    %3274 = vmatprep.subr.mxu0 0.0
    %3275 = vmatpush2.msra.mxu0 0.0
    %3276 = vmatprep.subr.mxu0 0.0
    %3277 = vmatpush2.msra.mxu0 0.0
    %3278 = vmatprep.subr.mxu0 0.0
    %3279 = vmatpush2.msra.mxu0 0.0
    %3280 = vmatprep.subr.mxu0 0.0
    %3281 = vmatpush2.msra.mxu0 0.0
    %3282 = vmatprep.subr.mxu0 0.0
    %3283 = vmatpush2.msra.mxu0 0.0
    %3284 = vmatprep.subr.mxu0 0.0
    %3285 = vmatpush2.msra.mxu0 0.0
    %3286 = vmatprep.subr.mxu0 0.0
    %3287 = vmatpush2.msra.mxu0 0.0
    %3288 = vmatprep.mubr.f32.mxu0 0.0
    %3289 = vmatmul.mubr.f32.gmra.mxu0 %v3222
    %v3290 = vpop.f32.mrf.mxu0
    %v3291 = vadd.f32 %v670, %v3290
    %v3292 = vpop.f32.mrf.mxu0
    %3293 = vdwg.mxu0
    %v3294 = vld [vmem:[%s3] sm:$0x1]
    %v3295 = vadd.f32 %v2889, %v2892
    %v3296 = vadd.f32 %v3295, %v2897
    %v3297 = vadd.f32 %v3296, %v2900
    %v3298 = vadd.f32 %v3297, %v2905
    %v3299 = vadd.f32 %v3298, %v2908
    %v3300 = vadd.f32 %v3299, %v2913
    %v3301 = vadd.f32 %v3300, %v2916
    %v3302 = vadd.f32 %v3301, %v2921
    %v3303 = vadd.f32 %v3302, %v2924
    %v3304 = vadd.f32 %v3303, %v2929
    %v3305 = vadd.f32 %v3304, %v2932
    %v3306 = vadd.f32 %v3305, %v2937
    %v3307 = vadd.f32 %v3306, %v2940
    %v3308 = vadd.f32 %v3307, %v2945
    %v3309 = vadd.f32 %v3308, %v2948
    %v3310 = vadd.f32 %v3309, %v2953
    %v3311 = vadd.f32 %v3310, %v2956
    %v3312 = vadd.f32 %v3311, %v2961
    %v3313 = vadd.f32 %v3312, %v2964
    %v3314 = vadd.f32 %v3313, %v2969
    %v3315 = vadd.f32 %v3314, %v2972
    %v3316 = vadd.f32 %v3315, %v2977
    %v3317 = vadd.f32 %v3316, %v2980
    %v3318 = vadd.f32 %v3317, %v2985
    %v3319 = vadd.f32 %v3318, %v2988
    %v3320 = vadd.f32 %v3319, %v2993
    %v3321 = vadd.f32 %v3320, %v2996
    %v3322 = vadd.f32 %v3321, %v3001
    %v3323 = vadd.f32 %v3322, %v3004
    %v3324 = vadd.f32 %v3323, %v3009
    %v3325 = vadd.f32 %v3324, %v3012
    %v3326 = vrot.slane %v3325, 4
    %v3327 = vadd.f32 %v3325, %v3326
    %v3328 = vrot.slane %v3327, 2
    %v3329 = vadd.f32 %v3327, %v3328
    %v3330 = vrot.slane %v3329, 1
    %v3331 = vadd.f32 %v3329, %v3330
    %v3332 = vmul.f32 %v2889, %v2889
    %v3333 = vmul.f32 %v2892, %v2892
    %v3334 = vmul.f32 %v2897, %v2897
    %v3335 = vmul.f32 %v2900, %v2900
    %v3336 = vmul.f32 %v2905, %v2905
    %v3337 = vmul.f32 %v2908, %v2908
    %v3338 = vmul.f32 %v2913, %v2913
    %v3339 = vmul.f32 %v2916, %v2916
    %v3340 = vmul.f32 %v2921, %v2921
    %v3341 = vmul.f32 %v2924, %v2924
    %v3342 = vmul.f32 %v2929, %v2929
    %v3343 = vmul.f32 %v2932, %v2932
    %v3344 = vmul.f32 %v2937, %v2937
    %v3345 = vmul.f32 %v2940, %v2940
    %v3346 = vmul.f32 %v2945, %v2945
    %v3347 = vmul.f32 %v2948, %v2948
    %v3348 = vmul.f32 %v2953, %v2953
    %v3349 = vmul.f32 %v2956, %v2956
    %v3350 = vmul.f32 %v2961, %v2961
    %v3351 = vmul.f32 %v2964, %v2964
    %v3352 = vmul.f32 %v2969, %v2969
    %v3353 = vmul.f32 %v2972, %v2972
    %v3354 = vmul.f32 %v2977, %v2977
    %v3355 = vmul.f32 %v2980, %v2980
    %v3356 = vmul.f32 %v2985, %v2985
    %v3357 = vmul.f32 %v2988, %v2988
    %v3358 = vmul.f32 %v2993, %v2993
    %v3359 = vmul.f32 %v2996, %v2996
    %v3360 = vmul.f32 %v3001, %v3001
    %v3361 = vmul.f32 %v3004, %v3004
    %v3362 = vmul.f32 %v3009, %v3009
    %v3363 = vmul.f32 %v3012, %v3012
    %v3364 = vadd.f32 %v3332, %v3333
    %v3365 = vadd.f32 %v3364, %v3334
    %v3366 = vadd.f32 %v3365, %v3335
    %v3367 = vadd.f32 %v3366, %v3336
    %v3368 = vadd.f32 %v3367, %v3337
    %v3369 = vadd.f32 %v3368, %v3338
    %v3370 = vadd.f32 %v3369, %v3339
    %v3371 = vadd.f32 %v3370, %v3340
    %v3372 = vadd.f32 %v3371, %v3341
    %v3373 = vadd.f32 %v3372, %v3342
    %v3374 = vadd.f32 %v3373, %v3343
    %v3375 = vadd.f32 %v3374, %v3344
    %v3376 = vadd.f32 %v3375, %v3345
    %v3377 = vadd.f32 %v3376, %v3346
    %v3378 = vadd.f32 %v3377, %v3347
    %v3379 = vadd.f32 %v3378, %v3348
    %v3380 = vadd.f32 %v3379, %v3349
    %v3381 = vadd.f32 %v3380, %v3350
    %v3382 = vadd.f32 %v3381, %v3351
    %v3383 = vadd.f32 %v3382, %v3352
    %v3384 = vadd.f32 %v3383, %v3353
    %v3385 = vadd.f32 %v3384, %v3354
    %v3386 = vadd.f32 %v3385, %v3355
    %v3387 = vadd.f32 %v3386, %v3356
    %v3388 = vadd.f32 %v3387, %v3357
    %v3389 = vadd.f32 %v3388, %v3358
    %v3390 = vadd.f32 %v3389, %v3359
    %v3391 = vadd.f32 %v3390, %v3360
    %v3392 = vadd.f32 %v3391, %v3361
    %v3393 = vadd.f32 %v3392, %v3362
    %v3394 = vadd.f32 %v3393, %v3363
    %v3395 = vrot.slane %v3394, 4
    %v3396 = vadd.f32 %v3394, %v3395
    %v3397 = vrot.slane %v3396, 2
    %v3398 = vadd.f32 %v3396, %v3397
    %v3399 = vrot.slane %v3398, 1
    %v3400 = vadd.f32 %v3398, %v3399
    %3401 = vrot.lane.b32.xlu0 %v3331, 127
    %v3402 = vpop.permute.xlu0 %3401
    %3403 = vrot.lane.b32.xlu0 %v3331, 1
    %v3404 = vpop.permute.xlu0 %3403
    %v3405 = vsel %vm658, %v3402, %v3404
    %v3406 = vadd.f32 %v3331, %v3405
    %v3407 = vmul.f32 %v3406, %v786
    %3408 = vrot.lane.b32.xlu0 %v3400, 127
    %v3409 = vpop.permute.xlu0 %3408
    %3410 = vrot.lane.b32.xlu0 %v3400, 1
    %v3411 = vpop.permute.xlu0 %3410
    %v3412 = vsel %vm658, %v3409, %v3411
    %v3413 = vadd.f32 %v3400, %v3412
    %v3414 = vmul.f32 %v3413, %v786
    %v3415 = vmul.f32 %v3407, %v3407
    %v3416 = vsub.f32 %v3414, %v3415
    %v3417 = vmax.f32 %v3416, 0.0
    %v3418 = vadd.f32 %v3417, 1e-05
    %v3419 = vrsqrt.pop %v3418
    %v3420 = vlaneseq
    %v3421 = vshrl.u32 %v3420, 7
    %v3422 = vsub.s32 0, %v3421
    %v3423 = vrot.slane %v3407, %v3422
    %v3424 = vsub.f32 %v2889, %v3423
    %v3425 = vsub.f32 %v2892, %v3423
    %v3426 = vsub.f32 %v2897, %v3423
    %v3427 = vsub.f32 %v2900, %v3423
    %v3428 = vsub.f32 %v2905, %v3423
    %v3429 = vsub.f32 %v2908, %v3423
    %v3430 = vsub.f32 %v2913, %v3423
    %v3431 = vsub.f32 %v2916, %v3423
    %v3432 = vsub.f32 %v2921, %v3423
    %v3433 = vsub.f32 %v2924, %v3423
    %v3434 = vsub.f32 %v2929, %v3423
    %v3435 = vsub.f32 %v2932, %v3423
    %v3436 = vsub.f32 %v2937, %v3423
    %v3437 = vsub.f32 %v2940, %v3423
    %v3438 = vsub.f32 %v2945, %v3423
    %v3439 = vsub.f32 %v2948, %v3423
    %v3440 = vsub.f32 %v2953, %v3423
    %v3441 = vsub.f32 %v2956, %v3423
    %v3442 = vsub.f32 %v2961, %v3423
    %v3443 = vsub.f32 %v2964, %v3423
    %v3444 = vsub.f32 %v2969, %v3423
    %v3445 = vsub.f32 %v2972, %v3423
    %v3446 = vsub.f32 %v2977, %v3423
    %v3447 = vsub.f32 %v2980, %v3423
    %v3448 = vsub.f32 %v2985, %v3423
    %v3449 = vsub.f32 %v2988, %v3423
    %v3450 = vsub.f32 %v2993, %v3423
    %v3451 = vsub.f32 %v2996, %v3423
    %v3452 = vsub.f32 %v3001, %v3423
    %v3453 = vsub.f32 %v3004, %v3423
    %v3454 = vsub.f32 %v3009, %v3423
    %v3455 = vsub.f32 %v3012, %v3423
    %v3456 = vlaneseq
    %v3457 = vshrl.u32 %v3456, 7
    %v3458 = vsub.s32 0, %v3457
    %v3459 = vrot.slane %v3419, %v3458
    %v3460 = vmul.f32 %v3424, %v3459
    %v3461 = vmul.f32 %v3425, %v3459
    %v3462 = vmul.f32 %v3426, %v3459
    %v3463 = vmul.f32 %v3427, %v3459
    %v3464 = vmul.f32 %v3428, %v3459
    %v3465 = vmul.f32 %v3429, %v3459
    %v3466 = vmul.f32 %v3430, %v3459
    %v3467 = vmul.f32 %v3431, %v3459
    %v3468 = vmul.f32 %v3432, %v3459
    %v3469 = vmul.f32 %v3433, %v3459
    %v3470 = vmul.f32 %v3434, %v3459
    %v3471 = vmul.f32 %v3435, %v3459
    %v3472 = vmul.f32 %v3436, %v3459
    %v3473 = vmul.f32 %v3437, %v3459
    %v3474 = vmul.f32 %v3438, %v3459
    %v3475 = vmul.f32 %v3439, %v3459
    %v3476 = vmul.f32 %v3440, %v3459
    %v3477 = vmul.f32 %v3441, %v3459
    %v3478 = vmul.f32 %v3442, %v3459
    %v3479 = vmul.f32 %v3443, %v3459
    %v3480 = vmul.f32 %v3444, %v3459
    %v3481 = vmul.f32 %v3445, %v3459
    %v3482 = vmul.f32 %v3446, %v3459
    %v3483 = vmul.f32 %v3447, %v3459
    %v3484 = vmul.f32 %v3448, %v3459
    %v3485 = vmul.f32 %v3449, %v3459
    %v3486 = vmul.f32 %v3450, %v3459
    %v3487 = vmul.f32 %v3451, %v3459
    %v3488 = vmul.f32 %v3452, %v3459
    %v3489 = vmul.f32 %v3453, %v3459
    %v3490 = vmul.f32 %v3454, %v3459
    %v3491 = vmul.f32 %v3455, %v3459
    %v3492 = vlaneseq
    %v3493 = vshrl.u32 %v3492, 7
    %v3494 = vsub.s32 0, %v3493
    %v3495 = vrot.slane %v671, %v3494
    %v3496 = vmul.f32 %v3460, %v3495
    %v3497 = vmul.f32 %v3461, %v3495
    %v3498 = vmul.f32 %v3462, %v3495
    %v3499 = vmul.f32 %v3463, %v3495
    %v3500 = vmul.f32 %v3464, %v3495
    %v3501 = vmul.f32 %v3465, %v3495
    %v3502 = vmul.f32 %v3466, %v3495
    %v3503 = vmul.f32 %v3467, %v3495
    %v3504 = vmul.f32 %v3468, %v3495
    %v3505 = vmul.f32 %v3469, %v3495
    %v3506 = vmul.f32 %v3470, %v3495
    %v3507 = vmul.f32 %v3471, %v3495
    %v3508 = vmul.f32 %v3472, %v3495
    %v3509 = vmul.f32 %v3473, %v3495
    %v3510 = vmul.f32 %v3474, %v3495
    %v3511 = vmul.f32 %v3475, %v3495
    %v3512 = vmul.f32 %v3476, %v3495
    %v3513 = vmul.f32 %v3477, %v3495
    %v3514 = vmul.f32 %v3478, %v3495
    %v3515 = vmul.f32 %v3479, %v3495
    %v3516 = vmul.f32 %v3480, %v3495
    %v3517 = vmul.f32 %v3481, %v3495
    %v3518 = vmul.f32 %v3482, %v3495
    %v3519 = vmul.f32 %v3483, %v3495
    %v3520 = vmul.f32 %v3484, %v3495
    %v3521 = vmul.f32 %v3485, %v3495
    %v3522 = vmul.f32 %v3486, %v3495
    %v3523 = vmul.f32 %v3487, %v3495
    %v3524 = vmul.f32 %v3488, %v3495
    %v3525 = vmul.f32 %v3489, %v3495
    %v3526 = vmul.f32 %v3490, %v3495
    %v3527 = vmul.f32 %v3491, %v3495
    %v3528 = vlaneseq
    %v3529 = vshrl.u32 %v3528, 7
    %v3530 = vsub.s32 0, %v3529
    %v3531 = vrot.slane %v672, %v3530
    %v3532 = vadd.f32 %v3496, %v3531
    %v3533 = vadd.f32 %v3497, %v3531
    %v3534 = vadd.f32 %v3498, %v3531
    %v3535 = vadd.f32 %v3499, %v3531
    %v3536 = vadd.f32 %v3500, %v3531
    %v3537 = vadd.f32 %v3501, %v3531
    %v3538 = vadd.f32 %v3502, %v3531
    %v3539 = vadd.f32 %v3503, %v3531
    %v3540 = vadd.f32 %v3504, %v3531
    %v3541 = vadd.f32 %v3505, %v3531
    %v3542 = vadd.f32 %v3506, %v3531
    %v3543 = vadd.f32 %v3507, %v3531
    %v3544 = vadd.f32 %v3508, %v3531
    %v3545 = vadd.f32 %v3509, %v3531
    %v3546 = vadd.f32 %v3510, %v3531
    %v3547 = vadd.f32 %v3511, %v3531
    %v3548 = vadd.f32 %v3512, %v3531
    %v3549 = vadd.f32 %v3513, %v3531
    %v3550 = vadd.f32 %v3514, %v3531
    %v3551 = vadd.f32 %v3515, %v3531
    %v3552 = vadd.f32 %v3516, %v3531
    %v3553 = vadd.f32 %v3517, %v3531
    %v3554 = vadd.f32 %v3518, %v3531
    %v3555 = vadd.f32 %v3519, %v3531
    %v3556 = vadd.f32 %v3520, %v3531
    %v3557 = vadd.f32 %v3521, %v3531
    %v3558 = vadd.f32 %v3522, %v3531
    %v3559 = vadd.f32 %v3523, %v3531
    %v3560 = vadd.f32 %v3524, %v3531
    %v3561 = vadd.f32 %v3525, %v3531
    %v3562 = vadd.f32 %v3526, %v3531
    %v3563 = vadd.f32 %v3527, %v3531
    %v3564 = vadd.f32 %v3122, 1.0
    %v3565 = vlaneseq
    %v3566 = vshrl.u32 %v3565, 7
    %v3567 = vsub.s32 0, %v3566
    %v3568 = vrot.slane %v3564, %v3567
    %v3569 = vmul.f32 %v3532, %v3568
    %v3570 = vmul.f32 %v3533, %v3568
    %v3571 = vmul.f32 %v3534, %v3568
    %v3572 = vmul.f32 %v3535, %v3568
    %v3573 = vmul.f32 %v3536, %v3568
    %v3574 = vmul.f32 %v3537, %v3568
    %v3575 = vmul.f32 %v3538, %v3568
    %v3576 = vmul.f32 %v3539, %v3568
    %v3577 = vmul.f32 %v3540, %v3568
    %v3578 = vmul.f32 %v3541, %v3568
    %v3579 = vmul.f32 %v3542, %v3568
    %v3580 = vmul.f32 %v3543, %v3568
    %v3581 = vmul.f32 %v3544, %v3568
    %v3582 = vmul.f32 %v3545, %v3568
    %v3583 = vmul.f32 %v3546, %v3568
    %v3584 = vmul.f32 %v3547, %v3568
    %v3585 = vmul.f32 %v3548, %v3568
    %v3586 = vmul.f32 %v3549, %v3568
    %v3587 = vmul.f32 %v3550, %v3568
    %v3588 = vmul.f32 %v3551, %v3568
    %v3589 = vmul.f32 %v3552, %v3568
    %v3590 = vmul.f32 %v3553, %v3568
    %v3591 = vmul.f32 %v3554, %v3568
    %v3592 = vmul.f32 %v3555, %v3568
    %v3593 = vmul.f32 %v3556, %v3568
    %v3594 = vmul.f32 %v3557, %v3568
    %v3595 = vmul.f32 %v3558, %v3568
    %v3596 = vmul.f32 %v3559, %v3568
    %v3597 = vmul.f32 %v3560, %v3568
    %v3598 = vmul.f32 %v3561, %v3568
    %v3599 = vmul.f32 %v3562, %v3568
    %v3600 = vmul.f32 %v3563, %v3568
    %v3601 = vlaneseq
    %v3602 = vshrl.u32 %v3601, 7
    %v3603 = vsub.s32 0, %v3602
    %v3604 = vrot.slane %v3124, %v3603
    %v3605 = vadd.f32 %v3569, %v3604
    %v3606 = vadd.f32 %v3570, %v3604
    %v3607 = vadd.f32 %v3571, %v3604
    %v3608 = vadd.f32 %v3572, %v3604
    %v3609 = vadd.f32 %v3573, %v3604
    %v3610 = vadd.f32 %v3574, %v3604
    %v3611 = vadd.f32 %v3575, %v3604
    %v3612 = vadd.f32 %v3576, %v3604
    %v3613 = vadd.f32 %v3577, %v3604
    %v3614 = vadd.f32 %v3578, %v3604
    %v3615 = vadd.f32 %v3579, %v3604
    %v3616 = vadd.f32 %v3580, %v3604
    %v3617 = vadd.f32 %v3581, %v3604
    %v3618 = vadd.f32 %v3582, %v3604
    %v3619 = vadd.f32 %v3583, %v3604
    %v3620 = vadd.f32 %v3584, %v3604
    %v3621 = vadd.f32 %v3585, %v3604
    %v3622 = vadd.f32 %v3586, %v3604
    %v3623 = vadd.f32 %v3587, %v3604
    %v3624 = vadd.f32 %v3588, %v3604
    %v3625 = vadd.f32 %v3589, %v3604
    %v3626 = vadd.f32 %v3590, %v3604
    %v3627 = vadd.f32 %v3591, %v3604
    %v3628 = vadd.f32 %v3592, %v3604
    %v3629 = vadd.f32 %v3593, %v3604
    %v3630 = vadd.f32 %v3594, %v3604
    %v3631 = vadd.f32 %v3595, %v3604
    %v3632 = vadd.f32 %v3596, %v3604
    %v3633 = vadd.f32 %v3597, %v3604
    %v3634 = vadd.f32 %v3598, %v3604
    %v3635 = vadd.f32 %v3599, %v3604
    %v3636 = vadd.f32 %v3600, %v3604
    %v3637 = vadd.f32 %v3294, 1.0
    %v3639 = vlaneseq
    %v3640 = vshrl.u32 %v3639, 7
    %v3641 = vsub.s32 0, %v3640
    %v3642 = vrot.slane %v3637, %v3641
    %v3644 = vmul.f32 %v3605, %v3642
    %v3645 = vmul.f32 %v3606, %v3642
    %v3646 = vmul.f32 %v3607, %v3642
    %v3647 = vmul.f32 %v3608, %v3642
    %v3648 = vmul.f32 %v3609, %v3642
    %v3649 = vmul.f32 %v3610, %v3642
    %v3650 = vmul.f32 %v3611, %v3642
    %v3651 = vmul.f32 %v3612, %v3642
    %v3652 = vmul.f32 %v3613, %v3642
    %v3653 = vmul.f32 %v3614, %v3642
    %v3654 = vmul.f32 %v3615, %v3642
    %v3655 = vmul.f32 %v3616, %v3642
    %v3656 = vmul.f32 %v3617, %v3642
    %v3657 = vmul.f32 %v3618, %v3642
    %v3658 = vmul.f32 %v3619, %v3642
    %v3659 = vmul.f32 %v3620, %v3642
    %v3660 = vmul.f32 %v3621, %v3642
    %v3661 = vmul.f32 %v3622, %v3642
    %v3662 = vmul.f32 %v3623, %v3642
    %v3663 = vmul.f32 %v3624, %v3642
    %v3664 = vmul.f32 %v3625, %v3642
    %v3665 = vmul.f32 %v3626, %v3642
    %v3666 = vmul.f32 %v3627, %v3642
    %v3667 = vmul.f32 %v3628, %v3642
    %v3668 = vmul.f32 %v3629, %v3642
    %v3669 = vmul.f32 %v3630, %v3642
    %v3670 = vmul.f32 %v3631, %v3642
    %v3671 = vmul.f32 %v3632, %v3642
    %v3672 = vmul.f32 %v3633, %v3642
    %v3673 = vmul.f32 %v3634, %v3642
    %v3674 = vmul.f32 %v3635, %v3642
    %v3675 = vmul.f32 %v3636, %v3642
    %v3676 = vadd.f32 %v3291, 1.0
    %v3677 = vlaneseq
    %v3678 = vshrl.u32 %v3677, 7
    %v3679 = vsub.s32 0, %v3678
    %v3680 = vrot.slane %v3676, %v3679
    %v3681 = vmul.f32 %v3644, %v3680
    %v3682 = vmul.f32 %v3645, %v3680
    %v3683 = vmul.f32 %v3646, %v3680
    %v3684 = vmul.f32 %v3647, %v3680
    %v3685 = vmul.f32 %v3648, %v3680
    %v3686 = vmul.f32 %v3649, %v3680
    %v3687 = vmul.f32 %v3650, %v3680
    %v3688 = vmul.f32 %v3651, %v3680
    %v3689 = vmul.f32 %v3652, %v3680
    %v3690 = vmul.f32 %v3653, %v3680
    %v3691 = vmul.f32 %v3654, %v3680
    %v3692 = vmul.f32 %v3655, %v3680
    %v3693 = vmul.f32 %v3656, %v3680
    %v3694 = vmul.f32 %v3657, %v3680
    %v3695 = vmul.f32 %v3658, %v3680
    %v3696 = vmul.f32 %v3659, %v3680
    %v3697 = vmul.f32 %v3660, %v3680
    %v3698 = vmul.f32 %v3661, %v3680
    %v3699 = vmul.f32 %v3662, %v3680
    %v3700 = vmul.f32 %v3663, %v3680
    %v3701 = vmul.f32 %v3664, %v3680
    %v3702 = vmul.f32 %v3665, %v3680
    %v3703 = vmul.f32 %v3666, %v3680
    %v3704 = vmul.f32 %v3667, %v3680
    %v3705 = vmul.f32 %v3668, %v3680
    %v3706 = vmul.f32 %v3669, %v3680
    %v3707 = vmul.f32 %v3670, %v3680
    %v3708 = vmul.f32 %v3671, %v3680
    %v3709 = vmul.f32 %v3672, %v3680
    %v3710 = vmul.f32 %v3673, %v3680
    %v3711 = vmul.f32 %v3674, %v3680
    %v3712 = vmul.f32 %v3675, %v3680
    %v3713 = vxor.u32 %v3681, 2147483648
    %v3714 = vxor.u32 %v3682, 2147483648
    %v3715 = vxor.u32 %v3683, 2147483648
    %v3716 = vxor.u32 %v3684, 2147483648
    %v3717 = vxor.u32 %v3685, 2147483648
    %v3718 = vxor.u32 %v3686, 2147483648
    %v3719 = vxor.u32 %v3687, 2147483648
    %v3720 = vxor.u32 %v3688, 2147483648
    %v3721 = vxor.u32 %v3689, 2147483648
    %v3722 = vxor.u32 %v3690, 2147483648
    %v3723 = vxor.u32 %v3691, 2147483648
    %v3724 = vxor.u32 %v3692, 2147483648
    %v3725 = vxor.u32 %v3693, 2147483648
    %v3726 = vxor.u32 %v3694, 2147483648
    %v3727 = vxor.u32 %v3695, 2147483648
    %v3728 = vxor.u32 %v3696, 2147483648
    %v3729 = vxor.u32 %v3697, 2147483648
    %v3730 = vxor.u32 %v3698, 2147483648
    %v3731 = vxor.u32 %v3699, 2147483648
    %v3732 = vxor.u32 %v3700, 2147483648
    %v3733 = vxor.u32 %v3701, 2147483648
    %v3734 = vxor.u32 %v3702, 2147483648
    %v3735 = vxor.u32 %v3703, 2147483648
    %v3736 = vxor.u32 %v3704, 2147483648
    %v3737 = vxor.u32 %v3705, 2147483648
    %v3738 = vxor.u32 %v3706, 2147483648
    %v3739 = vxor.u32 %v3707, 2147483648
    %v3740 = vxor.u32 %v3708, 2147483648
    %v3741 = vxor.u32 %v3709, 2147483648
    %v3742 = vxor.u32 %v3710, 2147483648
    %v3743 = vxor.u32 %v3711, 2147483648
    %v3744 = vxor.u32 %v3712, 2147483648
    %v3745 = vmul.f32 %v3713, 1.442695
    %v3746 = vpow.pop %v3745
    %v3747 = vmul.f32 %v3714, 1.442695
    %v3748 = vpow.pop %v3747
    %v3749 = vmul.f32 %v3715, 1.442695
    %v3750 = vpow.pop %v3749
    %v3751 = vmul.f32 %v3716, 1.442695
    %v3752 = vpow.pop %v3751
    %v3753 = vmul.f32 %v3717, 1.442695
    %v3754 = vpow.pop %v3753
    %v3755 = vmul.f32 %v3718, 1.442695
    %v3756 = vpow.pop %v3755
    %v3757 = vmul.f32 %v3719, 1.442695
    %v3758 = vpow.pop %v3757
    %v3759 = vmul.f32 %v3720, 1.442695
    %v3760 = vpow.pop %v3759
    %v3761 = vmul.f32 %v3721, 1.442695
    %v3762 = vpow.pop %v3761
    %v3763 = vmul.f32 %v3722, 1.442695
    %v3764 = vpow.pop %v3763
    %v3765 = vmul.f32 %v3723, 1.442695
    %v3766 = vpow.pop %v3765
    %v3767 = vmul.f32 %v3724, 1.442695
    %v3768 = vpow.pop %v3767
    %v3769 = vmul.f32 %v3725, 1.442695
    %v3770 = vpow.pop %v3769
    %v3771 = vmul.f32 %v3726, 1.442695
    %v3772 = vpow.pop %v3771
    %v3773 = vmul.f32 %v3727, 1.442695
    %v3774 = vpow.pop %v3773
    %v3775 = vmul.f32 %v3728, 1.442695
    %v3776 = vpow.pop %v3775
    %v3777 = vmul.f32 %v3729, 1.442695
    %v3778 = vpow.pop %v3777
    %v3779 = vmul.f32 %v3730, 1.442695
    %v3780 = vpow.pop %v3779
    %v3781 = vmul.f32 %v3731, 1.442695
    %v3782 = vpow.pop %v3781
    %v3783 = vmul.f32 %v3732, 1.442695
    %v3784 = vpow.pop %v3783
    %v3785 = vmul.f32 %v3733, 1.442695
    %v3786 = vpow.pop %v3785
    %v3787 = vmul.f32 %v3734, 1.442695
    %v3788 = vpow.pop %v3787
    %v3789 = vmul.f32 %v3735, 1.442695
    %v3790 = vpow.pop %v3789
    %v3791 = vmul.f32 %v3736, 1.442695
    %v3792 = vpow.pop %v3791
    %v3793 = vmul.f32 %v3737, 1.442695
    %v3794 = vpow.pop %v3793
    %v3795 = vmul.f32 %v3738, 1.442695
    %v3796 = vpow.pop %v3795
    %v3797 = vmul.f32 %v3739, 1.442695
    %v3798 = vpow.pop %v3797
    %v3799 = vmul.f32 %v3740, 1.442695
    %v3800 = vpow.pop %v3799
    %v3801 = vmul.f32 %v3741, 1.442695
    %v3802 = vpow.pop %v3801
    %v3803 = vmul.f32 %v3742, 1.442695
    %v3804 = vpow.pop %v3803
    %v3805 = vmul.f32 %v3743, 1.442695
    %v3806 = vpow.pop %v3805
    %v3807 = vmul.f32 %v3744, 1.442695
    %v3808 = vpow.pop %v3807
    %v3809 = vadd.f32 %v3746, 1.0
    %v3810 = vadd.f32 %v3748, 1.0
    %v3811 = vadd.f32 %v3750, 1.0
    %v3812 = vadd.f32 %v3752, 1.0
    %v3813 = vadd.f32 %v3754, 1.0
    %v3814 = vadd.f32 %v3756, 1.0
    %v3815 = vadd.f32 %v3758, 1.0
    %v3816 = vadd.f32 %v3760, 1.0
    %v3817 = vadd.f32 %v3762, 1.0
    %v3818 = vadd.f32 %v3764, 1.0
    %v3819 = vadd.f32 %v3766, 1.0
    %v3820 = vadd.f32 %v3768, 1.0
    %v3821 = vadd.f32 %v3770, 1.0
    %v3822 = vadd.f32 %v3772, 1.0
    %v3823 = vadd.f32 %v3774, 1.0
    %v3824 = vadd.f32 %v3776, 1.0
    %v3825 = vadd.f32 %v3778, 1.0
    %v3826 = vadd.f32 %v3780, 1.0
    %v3827 = vadd.f32 %v3782, 1.0
    %v3828 = vadd.f32 %v3784, 1.0
    %v3829 = vadd.f32 %v3786, 1.0
    %v3830 = vadd.f32 %v3788, 1.0
    %v3831 = vadd.f32 %v3790, 1.0
    %v3832 = vadd.f32 %v3792, 1.0
    %v3833 = vadd.f32 %v3794, 1.0
    %v3834 = vadd.f32 %v3796, 1.0
    %v3835 = vadd.f32 %v3798, 1.0
    %v3836 = vadd.f32 %v3800, 1.0
    %v3837 = vadd.f32 %v3802, 1.0
    %v3838 = vadd.f32 %v3804, 1.0
    %v3839 = vadd.f32 %v3806, 1.0
    %v3840 = vadd.f32 %v3808, 1.0
    %v3841 = vrcp.pop %v3809
    %v3842 = vmul.f32 1.0, %v3841
    %v3843 = vrcp.pop %v3810
    %v3844 = vmul.f32 1.0, %v3843
    %v3845 = vrcp.pop %v3811
    %v3846 = vmul.f32 1.0, %v3845
    %v3847 = vrcp.pop %v3812
    %v3848 = vmul.f32 1.0, %v3847
    %v3849 = vrcp.pop %v3813
    %v3850 = vmul.f32 1.0, %v3849
    %v3851 = vrcp.pop %v3814
    %v3852 = vmul.f32 1.0, %v3851
    %v3853 = vrcp.pop %v3815
    %v3854 = vmul.f32 1.0, %v3853
    %v3855 = vrcp.pop %v3816
    %v3856 = vmul.f32 1.0, %v3855
    %v3857 = vrcp.pop %v3817
    %v3858 = vmul.f32 1.0, %v3857
    %v3859 = vrcp.pop %v3818
    %v3860 = vmul.f32 1.0, %v3859
    %v3861 = vrcp.pop %v3819
    %v3862 = vmul.f32 1.0, %v3861
    %v3863 = vrcp.pop %v3820
    %v3864 = vmul.f32 1.0, %v3863
    %v3865 = vrcp.pop %v3821
    %v3866 = vmul.f32 1.0, %v3865
    %v3867 = vrcp.pop %v3822
    %v3868 = vmul.f32 1.0, %v3867
    %v3869 = vrcp.pop %v3823
    %v3870 = vmul.f32 1.0, %v3869
    %v3871 = vrcp.pop %v3824
    %v3872 = vmul.f32 1.0, %v3871
    %v3873 = vrcp.pop %v3825
    %v3874 = vmul.f32 1.0, %v3873
    %v3875 = vrcp.pop %v3826
    %v3876 = vmul.f32 1.0, %v3875
    %v3877 = vrcp.pop %v3827
    %v3878 = vmul.f32 1.0, %v3877
    %v3879 = vrcp.pop %v3828
    %v3880 = vmul.f32 1.0, %v3879
    %v3881 = vrcp.pop %v3829
    %v3882 = vmul.f32 1.0, %v3881
    %v3883 = vrcp.pop %v3830
    %v3884 = vmul.f32 1.0, %v3883
    %v3885 = vrcp.pop %v3831
    %v3886 = vmul.f32 1.0, %v3885
    %v3887 = vrcp.pop %v3832
    %v3888 = vmul.f32 1.0, %v3887
    %v3889 = vrcp.pop %v3833
    %v3890 = vmul.f32 1.0, %v3889
    %v3891 = vrcp.pop %v3834
    %v3892 = vmul.f32 1.0, %v3891
    %v3893 = vrcp.pop %v3835
    %v3894 = vmul.f32 1.0, %v3893
    %v3895 = vrcp.pop %v3836
    %v3896 = vmul.f32 1.0, %v3895
    %v3897 = vrcp.pop %v3837
    %v3898 = vmul.f32 1.0, %v3897
    %v3899 = vrcp.pop %v3838
    %v3900 = vmul.f32 1.0, %v3899
    %v3901 = vrcp.pop %v3839
    %v3902 = vmul.f32 1.0, %v3901
    %v3903 = vrcp.pop %v3840
    %v3904 = vmul.f32 1.0, %v3903
    %v3905 = vmul.f32 %v3681, %v3842
    %v3906 = vmul.f32 %v3682, %v3844
    %v3907 = vmul.f32 %v3683, %v3846
    %v3908 = vmul.f32 %v3684, %v3848
    %v3909 = vmul.f32 %v3685, %v3850
    %v3910 = vmul.f32 %v3686, %v3852
    %v3911 = vmul.f32 %v3687, %v3854
    %v3912 = vmul.f32 %v3688, %v3856
    %v3913 = vmul.f32 %v3689, %v3858
    %v3914 = vmul.f32 %v3690, %v3860
    %v3915 = vmul.f32 %v3691, %v3862
    %v3916 = vmul.f32 %v3692, %v3864
    %v3917 = vmul.f32 %v3693, %v3866
    %v3918 = vmul.f32 %v3694, %v3868
    %v3919 = vmul.f32 %v3695, %v3870
    %v3920 = vmul.f32 %v3696, %v3872
    %v3921 = vmul.f32 %v3697, %v3874
    %v3922 = vmul.f32 %v3698, %v3876
    %v3923 = vmul.f32 %v3699, %v3878
    %v3924 = vmul.f32 %v3700, %v3880
    %v3925 = vmul.f32 %v3701, %v3882
    %v3926 = vmul.f32 %v3702, %v3884
    %v3927 = vmul.f32 %v3703, %v3886
    %v3928 = vmul.f32 %v3704, %v3888
    %v3929 = vmul.f32 %v3705, %v3890
    %v3930 = vmul.f32 %v3706, %v3892
    %v3931 = vmul.f32 %v3707, %v3894
    %v3932 = vmul.f32 %v3708, %v3896
    %v3933 = vmul.f32 %v3709, %v3898
    %v3934 = vmul.f32 %v3710, %v3900
    %v3935 = vmul.f32 %v3711, %v3902
    %v3936 = vmul.f32 %v3712, %v3904
    %s3937 = scalar_lea.vmem [#allocation14], 576
    %v3938 = vld [vmem:[%s3937] sm:$0xf]
    %v3939 = vld [vmem:[%s3937 + $0x4] sm:$0xf]
    %v3940 = vld [vmem:[%s3937 + $0x8] sm:$0xf]
    %v3941 = vld [vmem:[%s3937 + $0xc] sm:$0xf]
    %v3942 = vld [vmem:[%s3937 + $0x10] sm:$0xf]
    %v3943 = vld [vmem:[%s3937 + $0x14] sm:$0xf]
    %v3944 = vld [vmem:[%s3937 + $0x18] sm:$0xf]
    %v3945 = vld [vmem:[%s3937 + $0x1c] sm:$0xf]
    %v3946 = vld [vmem:[%s3937 + $0x20] sm:$0xf]
    %v3947 = vld [vmem:[%s3937 + $0x24] sm:$0xf]
    %v3948 = vld [vmem:[%s3937 + $0x28] sm:$0xf]
    %v3949 = vld [vmem:[%s3937 + $0x2c] sm:$0xf]
    %v3950 = vld [vmem:[%s3937 + $0x30] sm:$0xf]
    %v3951 = vld [vmem:[%s3937 + $0x34] sm:$0xf]
    %v3952 = vld [vmem:[%s3937 + $0x38] sm:$0xf]
    %v3953 = vld [vmem:[%s3937 + $0x3c] sm:$0xf]
    %v3954 = vld [vmem:[%s3937 + $0x40] sm:$0xf]
    %v3955 = vld [vmem:[%s3937 + $0x44] sm:$0xf]
    %v3956 = vld [vmem:[%s3937 + $0x48] sm:$0xf]
    %v3957 = vld [vmem:[%s3937 + $0x4c] sm:$0xf]
    %v3958 = vld [vmem:[%s3937 + $0x50] sm:$0xf]
    %v3959 = vld [vmem:[%s3937 + $0x54] sm:$0xf]
    %v3960 = vld [vmem:[%s3937 + $0x58] sm:$0xf]
    %v3961 = vld [vmem:[%s3937 + $0x5c] sm:$0xf]
    %v3962 = vld [vmem:[%s3937 + $0x60] sm:$0xf]
    %v3963 = vld [vmem:[%s3937 + $0x64] sm:$0xf]
    %v3964 = vld [vmem:[%s3937 + $0x68] sm:$0xf]
    %v3965 = vld [vmem:[%s3937 + $0x6c] sm:$0xf]
    %v3966 = vld [vmem:[%s3937 + $0x70] sm:$0xf]
    %v3967 = vld [vmem:[%s3937 + $0x74] sm:$0xf]
    %v3968 = vld [vmem:[%s3937 + $0x78] sm:$0xf]
    %v3969 = vld [vmem:[%s3937 + $0x7c] sm:$0xf]
    %v3970 = vld [vmem:[%s3937 + $0x80] sm:$0xf]
    %v3971 = vld [vmem:[%s3937 + $0x84] sm:$0xf]
    %v3972 = vld [vmem:[%s3937 + $0x88] sm:$0xf]
    %v3973 = vld [vmem:[%s3937 + $0x8c] sm:$0xf]
    %v3974 = vld [vmem:[%s3937 + $0x90] sm:$0xf]
    %v3975 = vld [vmem:[%s3937 + $0x94] sm:$0xf]
    %v3976 = vld [vmem:[%s3937 + $0x98] sm:$0xf]
    %v3977 = vld [vmem:[%s3937 + $0x9c] sm:$0xf]
    %v3978 = vld [vmem:[%s3937 + $0xa0] sm:$0xf]
    %v3979 = vld [vmem:[%s3937 + $0xa4] sm:$0xf]
    %v3980 = vld [vmem:[%s3937 + $0xa8] sm:$0xf]
    %v3981 = vld [vmem:[%s3937 + $0xac] sm:$0xf]
    %v3982 = vld [vmem:[%s3937 + $0xb0] sm:$0xf]
    %v3983 = vld [vmem:[%s3937 + $0xb4] sm:$0xf]
    %v3984 = vld [vmem:[%s3937 + $0xb8] sm:$0xf]
    %v3985 = vld [vmem:[%s3937 + $0xbc] sm:$0xf]
    %v3986 = vld [vmem:[%s3937 + $0xc0] sm:$0xf]
    %v3987 = vld [vmem:[%s3937 + $0xc4] sm:$0xf]
    %v3988 = vld [vmem:[%s3937 + $0xc8] sm:$0xf]
    %v3989 = vld [vmem:[%s3937 + $0xcc] sm:$0xf]
    %v3990 = vld [vmem:[%s3937 + $0xd0] sm:$0xf]
    %v3991 = vld [vmem:[%s3937 + $0xd4] sm:$0xf]
    %v3992 = vld [vmem:[%s3937 + $0xd8] sm:$0xf]
    %v3993 = vld [vmem:[%s3937 + $0xdc] sm:$0xf]
    %v3994 = vld [vmem:[%s3937 + $0xe0] sm:$0xf]
    %v3995 = vld [vmem:[%s3937 + $0xe4] sm:$0xf]
    %v3996 = vld [vmem:[%s3937 + $0xe8] sm:$0xf]
    %v3997 = vld [vmem:[%s3937 + $0xec] sm:$0xf]
    %v3998 = vld [vmem:[%s3937 + $0xf0] sm:$0xf]
    %v3999 = vld [vmem:[%s3937 + $0xf4] sm:$0xf]
    %v4000 = vld [vmem:[%s3937 + $0xf8] sm:$0xf]
    %v4001 = vld [vmem:[%s3937 + $0xfc] sm:$0xf]
    %v4002 = vld [vmem:[%s3937 + $0x100] sm:$0xf]
    %v4003 = vld [vmem:[%s3937 + $0x104] sm:$0xf]
    %v4004 = vld [vmem:[%s3937 + $0x108] sm:$0xf]
    %v4005 = vld [vmem:[%s3937 + $0x10c] sm:$0xf]
    %v4006 = vld [vmem:[%s3937 + $0x110] sm:$0xf]
    %v4007 = vld [vmem:[%s3937 + $0x114] sm:$0xf]
    %v4008 = vld [vmem:[%s3937 + $0x118] sm:$0xf]
    %v4009 = vld [vmem:[%s3937 + $0x11c] sm:$0xf]
    %v4010 = vld [vmem:[%s3937 + $0x120] sm:$0xf]
    %v4011 = vld [vmem:[%s3937 + $0x124] sm:$0xf]
    %v4012 = vld [vmem:[%s3937 + $0x128] sm:$0xf]
    %v4013 = vld [vmem:[%s3937 + $0x12c] sm:$0xf]
    %v4014 = vld [vmem:[%s3937 + $0x130] sm:$0xf]
    %v4015 = vld [vmem:[%s3937 + $0x134] sm:$0xf]
    %v4016 = vld [vmem:[%s3937 + $0x138] sm:$0xf]
    %v4017 = vld [vmem:[%s3937 + $0x13c] sm:$0xf]
    %v4018 = vld [vmem:[%s3937 + $0x140] sm:$0xf]
    %v4019 = vld [vmem:[%s3937 + $0x144] sm:$0xf]
    %v4020 = vld [vmem:[%s3937 + $0x148] sm:$0xf]
    %v4021 = vld [vmem:[%s3937 + $0x14c] sm:$0xf]
    %v4022 = vld [vmem:[%s3937 + $0x150] sm:$0xf]
    %v4023 = vld [vmem:[%s3937 + $0x154] sm:$0xf]
    %v4024 = vld [vmem:[%s3937 + $0x158] sm:$0xf]
    %v4025 = vld [vmem:[%s3937 + $0x15c] sm:$0xf]
    %v4026 = vld [vmem:[%s3937 + $0x160] sm:$0xf]
    %v4027 = vld [vmem:[%s3937 + $0x164] sm:$0xf]
    %v4028 = vld [vmem:[%s3937 + $0x168] sm:$0xf]
    %v4029 = vld [vmem:[%s3937 + $0x16c] sm:$0xf]
    %v4030 = vld [vmem:[%s3937 + $0x170] sm:$0xf]
    %v4031 = vld [vmem:[%s3937 + $0x174] sm:$0xf]
    %v4032 = vld [vmem:[%s3937 + $0x178] sm:$0xf]
    %v4033 = vld [vmem:[%s3937 + $0x17c] sm:$0xf]
    %v4034 = vld [vmem:[%s3937 + $0x180] sm:$0xf]
    %v4035 = vld [vmem:[%s3937 + $0x184] sm:$0xf]
    %v4036 = vld [vmem:[%s3937 + $0x188] sm:$0xf]
    %v4037 = vld [vmem:[%s3937 + $0x18c] sm:$0xf]
    %v4038 = vld [vmem:[%s3937 + $0x190] sm:$0xf]
    %v4039 = vld [vmem:[%s3937 + $0x194] sm:$0xf]
    %v4040 = vld [vmem:[%s3937 + $0x198] sm:$0xf]
    %v4041 = vld [vmem:[%s3937 + $0x19c] sm:$0xf]
    %v4042 = vld [vmem:[%s3937 + $0x1a0] sm:$0xf]
    %v4043 = vld [vmem:[%s3937 + $0x1a4] sm:$0xf]
    %v4044 = vld [vmem:[%s3937 + $0x1a8] sm:$0xf]
    %v4045 = vld [vmem:[%s3937 + $0x1ac] sm:$0xf]
    %v4046 = vld [vmem:[%s3937 + $0x1b0] sm:$0xf]
    %v4047 = vld [vmem:[%s3937 + $0x1b4] sm:$0xf]
    %v4048 = vld [vmem:[%s3937 + $0x1b8] sm:$0xf]
    %v4049 = vld [vmem:[%s3937 + $0x1bc] sm:$0xf]
    %v4050 = vld [vmem:[%s3937 + $0x1c0] sm:$0xf]
    %v4051 = vld [vmem:[%s3937 + $0x1c4] sm:$0xf]
    %v4052 = vld [vmem:[%s3937 + $0x1c8] sm:$0xf]
    %v4053 = vld [vmem:[%s3937 + $0x1cc] sm:$0xf]
    %v4054 = vld [vmem:[%s3937 + $0x1d0] sm:$0xf]
    %v4055 = vld [vmem:[%s3937 + $0x1d4] sm:$0xf]
    %v4056 = vld [vmem:[%s3937 + $0x1d8] sm:$0xf]
    %v4057 = vld [vmem:[%s3937 + $0x1dc] sm:$0xf]
    %v4058 = vld [vmem:[%s3937 + $0x1e0] sm:$0xf]
    %v4059 = vld [vmem:[%s3937 + $0x1e4] sm:$0xf]
    %v4060 = vld [vmem:[%s3937 + $0x1e8] sm:$0xf]
    %v4061 = vld [vmem:[%s3937 + $0x1ec] sm:$0xf]
    %v4062 = vld [vmem:[%s3937 + $0x1f0] sm:$0xf]
    %v4063 = vld [vmem:[%s3937 + $0x1f4] sm:$0xf]
    %v4064 = vld [vmem:[%s3937 + $0x1f8] sm:$0xf]
    %v4065 = vld [vmem:[%s3937 + $0x1fc] sm:$0xf]
    %v4066 = vld [vmem:[%s3937 + $0x200] sm:$0xf]
    %v4067 = vld [vmem:[%s3937 + $0x204] sm:$0xf]
    %v4068 = vld [vmem:[%s3937 + $0x208] sm:$0xf]
    %v4069 = vld [vmem:[%s3937 + $0x20c] sm:$0xf]
    %v4070 = vld [vmem:[%s3937 + $0x210] sm:$0xf]
    %v4071 = vld [vmem:[%s3937 + $0x214] sm:$0xf]
    %v4072 = vld [vmem:[%s3937 + $0x218] sm:$0xf]
    %v4073 = vld [vmem:[%s3937 + $0x21c] sm:$0xf]
    %v4074 = vld [vmem:[%s3937 + $0x220] sm:$0xf]
    %v4075 = vld [vmem:[%s3937 + $0x224] sm:$0xf]
    %v4076 = vld [vmem:[%s3937 + $0x228] sm:$0xf]
    %v4077 = vld [vmem:[%s3937 + $0x22c] sm:$0xf]
    %v4078 = vld [vmem:[%s3937 + $0x230] sm:$0xf]
    %v4079 = vld [vmem:[%s3937 + $0x234] sm:$0xf]
    %v4080 = vld [vmem:[%s3937 + $0x238] sm:$0xf]
    %v4081 = vld [vmem:[%s3937 + $0x23c] sm:$0xf]
    %4082 = vst [vmem:[#allocation2 + $0x20] sm:$0xff] %v3905
    %4083 = vst [vmem:[#allocation2 + $0x28] sm:$0xff] %v3906
    %4084 = vst [vmem:[#allocation2 + $0x30] sm:$0xff] %v3907
    %4085 = vst [vmem:[#allocation2 + $0x38] sm:$0xff] %v3908
    %4086 = vst [vmem:[#allocation2 + $0x40] sm:$0xff] %v3909
    %4087 = vst [vmem:[#allocation2 + $0x48] sm:$0xff] %v3910
    %4088 = vst [vmem:[#allocation2 + $0x50] sm:$0xff] %v3911
    %4089 = vst [vmem:[#allocation2 + $0x58] sm:$0xff] %v3912
    %4090 = vst [vmem:[#allocation2 + $0x60] sm:$0xff] %v3913
    %4091 = vst [vmem:[#allocation2 + $0x68] sm:$0xff] %v3914
    %4092 = vst [vmem:[#allocation2 + $0x70] sm:$0xff] %v3915
    %4093 = vst [vmem:[#allocation2 + $0x78] sm:$0xff] %v3916
    %4094 = vst [vmem:[#allocation2 + $0x80] sm:$0xff] %v3917
    %4095 = vst [vmem:[#allocation2 + $0x88] sm:$0xff] %v3918
    %4096 = vst [vmem:[#allocation2 + $0x90] sm:$0xff] %v3919
    %4097 = vst [vmem:[#allocation2 + $0x98] sm:$0xff] %v3920
    %4098 = vst [vmem:[#allocation2 + $0xa0] sm:$0xff] %v3921
    %4099 = vst [vmem:[#allocation2 + $0xa8] sm:$0xff] %v3922
    %4100 = vst [vmem:[#allocation2 + $0xb0] sm:$0xff] %v3923
    %4101 = vst [vmem:[#allocation2 + $0xb8] sm:$0xff] %v3924
    %4102 = vst [vmem:[#allocation2 + $0xc0] sm:$0xff] %v3925
    %4103 = vst [vmem:[#allocation2 + $0xc8] sm:$0xff] %v3926
    %4104 = vst [vmem:[#allocation2 + $0xd0] sm:$0xff] %v3927
    %4105 = vst [vmem:[#allocation2 + $0xd8] sm:$0xff] %v3928
    %4106 = vst [vmem:[#allocation2 + $0xe0] sm:$0xff] %v3929
    %4107 = vst [vmem:[#allocation2 + $0xe8] sm:$0xff] %v3930
    %4108 = vst [vmem:[#allocation2 + $0xf0] sm:$0xff] %v3931
    %4109 = vst [vmem:[#allocation2 + $0xf8] sm:$0xff] %v3932
    %4110 = vst [vmem:[#allocation2 + $0x100] sm:$0xff] %v3933
    %4111 = vst [vmem:[#allocation2 + $0x108] sm:$0xff] %v3934
    %4112 = vst [vmem:[#allocation2 + $0x110] sm:$0xff] %v3935
    %4113 = vst [vmem:[#allocation2 + $0x118] sm:$0xff] %v3936
    %v4114 = vld [vmem:[#allocation2 + $0xf] sm:$0xff]
    %v4115 = vld [vmem:[#allocation2 + $0x17] sm:$0xff]
    %v4116 = vld [vmem:[#allocation2 + $0x1f] sm:$0xff]
    %v4117 = vld [vmem:[#allocation2 + $0x27] sm:$0xff]
    %v4118 = vld [vmem:[#allocation2 + $0x2f] sm:$0xff]
    %v4119 = vld [vmem:[#allocation2 + $0x37] sm:$0xff]
    %v4120 = vld [vmem:[#allocation2 + $0x3f] sm:$0xff]
    %v4121 = vld [vmem:[#allocation2 + $0x47] sm:$0xff]
    %v4122 = vld [vmem:[#allocation2 + $0x4f] sm:$0xff]
    %v4123 = vld [vmem:[#allocation2 + $0x57] sm:$0xff]
    %v4124 = vld [vmem:[#allocation2 + $0x5f] sm:$0xff]
    %v4125 = vld [vmem:[#allocation2 + $0x67] sm:$0xff]
    %v4126 = vld [vmem:[#allocation2 + $0x6f] sm:$0xff]
    %v4127 = vld [vmem:[#allocation2 + $0x77] sm:$0xff]
    %v4128 = vld [vmem:[#allocation2 + $0x7f] sm:$0xff]
    %v4129 = vld [vmem:[#allocation2 + $0x87] sm:$0xff]
    %v4130 = vld [vmem:[#allocation2 + $0x8f] sm:$0xff]
    %v4131 = vld [vmem:[#allocation2 + $0x97] sm:$0xff]
    %v4132 = vld [vmem:[#allocation2 + $0x9f] sm:$0xff]
    %v4133 = vld [vmem:[#allocation2 + $0xa7] sm:$0xff]
    %v4134 = vld [vmem:[#allocation2 + $0xaf] sm:$0xff]
    %v4135 = vld [vmem:[#allocation2 + $0xb7] sm:$0xff]
    %v4136 = vld [vmem:[#allocation2 + $0xbf] sm:$0xff]
    %v4137 = vld [vmem:[#allocation2 + $0xc7] sm:$0xff]
    %v4138 = vld [vmem:[#allocation2 + $0xcf] sm:$0xff]
    %v4139 = vld [vmem:[#allocation2 + $0xd7] sm:$0xff]
    %v4140 = vld [vmem:[#allocation2 + $0xdf] sm:$0xff]
    %v4141 = vld [vmem:[#allocation2 + $0xe7] sm:$0xff]
    %v4142 = vld [vmem:[#allocation2 + $0xef] sm:$0xff]
    %v4143 = vld [vmem:[#allocation2 + $0xf7] sm:$0xff]
    %v4144 = vld [vmem:[#allocation2 + $0xff] sm:$0xff]
    %v4145 = vld [vmem:[#allocation2 + $0x107] sm:$0xff]
    %v4146 = vsel %vm580, %v4114, 0.0
    %v4147 = vsel %vm581, %v4115, 0.0
    %v4148 = vsel %vm582, %v4116, 0.0
    %v4149 = vsel %vm583, %v4117, 0.0
    %v4150 = vsel %vm584, %v4118, 0.0
    %v4151 = vsel %vm585, %v4119, 0.0
    %v4152 = vsel %vm586, %v4120, 0.0
    %v4153 = vsel %vm587, %v4121, 0.0
    %v4154 = vsel %vm588, %v4122, 0.0
    %v4155 = vsel %vm589, %v4123, 0.0
    %v4156 = vsel %vm590, %v4124, 0.0
    %v4157 = vsel %vm591, %v4125, 0.0
    %v4158 = vsel %vm592, %v4126, 0.0
    %v4159 = vsel %vm593, %v4127, 0.0
    %v4160 = vsel %vm594, %v4128, 0.0
    %v4161 = vsel %vm595, %v4129, 0.0
    %v4162 = vsel %vm596, %v4130, 0.0
    %v4163 = vsel %vm597, %v4131, 0.0
    %v4164 = vsel %vm598, %v4132, 0.0
    %v4165 = vsel %vm599, %v4133, 0.0
    %v4166 = vsel %vm600, %v4134, 0.0
    %v4167 = vsel %vm601, %v4135, 0.0
    %v4168 = vsel %vm602, %v4136, 0.0
    %v4169 = vsel %vm603, %v4137, 0.0
    %v4170 = vsel %vm604, %v4138, 0.0
    %v4171 = vsel %vm605, %v4139, 0.0
    %v4172 = vsel %vm606, %v4140, 0.0
    %v4173 = vsel %vm607, %v4141, 0.0
    %v4174 = vsel %vm608, %v4142, 0.0
    %v4175 = vsel %vm609, %v4143, 0.0
    %v4176 = vsel %vm610, %v4144, 0.0
    %v4177 = vsel %vm611, %v4145, 0.0
    %v4178 = vpack.c.bf16 %v4147, %v4146
    %v4179 = vpack.c.bf16 %v4149, %v4148
    %v4180 = vpack.c.bf16 %v4151, %v4150
    %v4181 = vpack.c.bf16 %v4153, %v4152
    %v4182 = vpack.c.bf16 %v4155, %v4154
    %v4183 = vpack.c.bf16 %v4157, %v4156
    %v4184 = vpack.c.bf16 %v4159, %v4158
    %v4185 = vpack.c.bf16 %v4161, %v4160
    %v4186 = vpack.c.bf16 %v4163, %v4162
    %v4187 = vpack.c.bf16 %v4165, %v4164
    %v4188 = vpack.c.bf16 %v4167, %v4166
    %v4189 = vpack.c.bf16 %v4169, %v4168
    %v4190 = vpack.c.bf16 %v4171, %v4170
    %v4191 = vpack.c.bf16 %v4173, %v4172
    %v4192 = vpack.c.bf16 %v4175, %v4174
    %v4193 = vpack.c.bf16 %v4177, %v4176
    %v4194 = vld [vmem:[#allocation2 + $0x10] sm:$0xff]
    %v4195 = vld [vmem:[#allocation2 + $0x18] sm:$0xff]
    %v4196 = vld [vmem:[#allocation2 + $0x20] sm:$0xff]
    %v4197 = vld [vmem:[#allocation2 + $0x28] sm:$0xff]
    %v4198 = vld [vmem:[#allocation2 + $0x30] sm:$0xff]
    %v4199 = vld [vmem:[#allocation2 + $0x38] sm:$0xff]
    %v4200 = vld [vmem:[#allocation2 + $0x40] sm:$0xff]
    %v4201 = vld [vmem:[#allocation2 + $0x48] sm:$0xff]
    %v4202 = vld [vmem:[#allocation2 + $0x50] sm:$0xff]
    %v4203 = vld [vmem:[#allocation2 + $0x58] sm:$0xff]
    %v4204 = vld [vmem:[#allocation2 + $0x60] sm:$0xff]
    %v4205 = vld [vmem:[#allocation2 + $0x68] sm:$0xff]
    %v4206 = vld [vmem:[#allocation2 + $0x70] sm:$0xff]
    %v4207 = vld [vmem:[#allocation2 + $0x78] sm:$0xff]
    %v4208 = vld [vmem:[#allocation2 + $0x80] sm:$0xff]
    %v4209 = vld [vmem:[#allocation2 + $0x88] sm:$0xff]
    %v4210 = vld [vmem:[#allocation2 + $0x90] sm:$0xff]
    %v4211 = vld [vmem:[#allocation2 + $0x98] sm:$0xff]
    %v4212 = vld [vmem:[#allocation2 + $0xa0] sm:$0xff]
    %v4213 = vld [vmem:[#allocation2 + $0xa8] sm:$0xff]
    %v4214 = vld [vmem:[#allocation2 + $0xb0] sm:$0xff]
    %v4215 = vld [vmem:[#allocation2 + $0xb8] sm:$0xff]
    %v4216 = vld [vmem:[#allocation2 + $0xc0] sm:$0xff]
    %v4217 = vld [vmem:[#allocation2 + $0xc8] sm:$0xff]
    %v4218 = vld [vmem:[#allocation2 + $0xd0] sm:$0xff]
    %v4219 = vld [vmem:[#allocation2 + $0xd8] sm:$0xff]
    %v4220 = vld [vmem:[#allocation2 + $0xe0] sm:$0xff]
    %v4221 = vld [vmem:[#allocation2 + $0xe8] sm:$0xff]
    %v4222 = vld [vmem:[#allocation2 + $0xf0] sm:$0xff]
    %v4223 = vld [vmem:[#allocation2 + $0xf8] sm:$0xff]
    %v4224 = vld [vmem:[#allocation2 + $0x100] sm:$0xff]
    %v4225 = vld [vmem:[#allocation2 + $0x108] sm:$0xff]
    %v4226 = vpack.c.bf16 %v4195, %v4194
    %v4227 = vpack.c.bf16 %v4197, %v4196
    %v4228 = vpack.c.bf16 %v4199, %v4198
    %v4229 = vpack.c.bf16 %v4201, %v4200
    %v4230 = vpack.c.bf16 %v4203, %v4202
    %v4231 = vpack.c.bf16 %v4205, %v4204
    %v4232 = vpack.c.bf16 %v4207, %v4206
    %v4233 = vpack.c.bf16 %v4209, %v4208
    %v4234 = vpack.c.bf16 %v4211, %v4210
    %v4235 = vpack.c.bf16 %v4213, %v4212
    %v4236 = vpack.c.bf16 %v4215, %v4214
    %v4237 = vpack.c.bf16 %v4217, %v4216
    %v4238 = vpack.c.bf16 %v4219, %v4218
    %v4239 = vpack.c.bf16 %v4221, %v4220
    %v4240 = vpack.c.bf16 %v4223, %v4222
    %v4241 = vpack.c.bf16 %v4225, %v4224
    %v4242 = vld [vmem:[#allocation2 + $0x11] sm:$0xff]
    %v4243 = vld [vmem:[#allocation2 + $0x19] sm:$0xff]
    %v4244 = vld [vmem:[#allocation2 + $0x21] sm:$0xff]
    %v4245 = vld [vmem:[#allocation2 + $0x29] sm:$0xff]
    %v4246 = vld [vmem:[#allocation2 + $0x31] sm:$0xff]
    %v4247 = vld [vmem:[#allocation2 + $0x39] sm:$0xff]
    %v4248 = vld [vmem:[#allocation2 + $0x41] sm:$0xff]
    %v4249 = vld [vmem:[#allocation2 + $0x49] sm:$0xff]
    %v4250 = vld [vmem:[#allocation2 + $0x51] sm:$0xff]
    %v4251 = vld [vmem:[#allocation2 + $0x59] sm:$0xff]
    %v4252 = vld [vmem:[#allocation2 + $0x61] sm:$0xff]
    %v4253 = vld [vmem:[#allocation2 + $0x69] sm:$0xff]
    %v4254 = vld [vmem:[#allocation2 + $0x71] sm:$0xff]
    %v4255 = vld [vmem:[#allocation2 + $0x79] sm:$0xff]
    %v4256 = vld [vmem:[#allocation2 + $0x81] sm:$0xff]
    %v4257 = vld [vmem:[#allocation2 + $0x89] sm:$0xff]
    %v4258 = vld [vmem:[#allocation2 + $0x91] sm:$0xff]
    %v4259 = vld [vmem:[#allocation2 + $0x99] sm:$0xff]
    %v4260 = vld [vmem:[#allocation2 + $0xa1] sm:$0xff]
    %v4261 = vld [vmem:[#allocation2 + $0xa9] sm:$0xff]
    %v4262 = vld [vmem:[#allocation2 + $0xb1] sm:$0xff]
    %v4263 = vld [vmem:[#allocation2 + $0xb9] sm:$0xff]
    %v4264 = vld [vmem:[#allocation2 + $0xc1] sm:$0xff]
    %v4265 = vld [vmem:[#allocation2 + $0xc9] sm:$0xff]
    %v4266 = vld [vmem:[#allocation2 + $0xd1] sm:$0xff]
    %v4267 = vld [vmem:[#allocation2 + $0xd9] sm:$0xff]
    %v4268 = vld [vmem:[#allocation2 + $0xe1] sm:$0xff]
    %v4269 = vld [vmem:[#allocation2 + $0xe9] sm:$0xff]
    %v4270 = vld [vmem:[#allocation2 + $0xf1] sm:$0xff]
    %v4271 = vld [vmem:[#allocation2 + $0xf9] sm:$0xff]
    %v4272 = vld [vmem:[#allocation2 + $0x101] sm:$0xff]
    %v4273 = vld [vmem:[#allocation2 + $0x109] sm:$0xff]
    %v4274 = vsel %vm612, %v4242, 0.0
    %v4275 = vsel %vm613, %v4243, 0.0
    %v4276 = vsel %vm614, %v4244, 0.0
    %v4277 = vsel %vm615, %v4245, 0.0
    %v4278 = vsel %vm616, %v4246, 0.0
    %v4279 = vsel %vm617, %v4247, 0.0
    %v4280 = vsel %vm618, %v4248, 0.0
    %v4281 = vsel %vm619, %v4249, 0.0
    %v4282 = vsel %vm620, %v4250, 0.0
    %v4283 = vsel %vm621, %v4251, 0.0
    %v4284 = vsel %vm622, %v4252, 0.0
    %v4285 = vsel %vm623, %v4253, 0.0
    %v4286 = vsel %vm624, %v4254, 0.0
    %v4287 = vsel %vm625, %v4255, 0.0
    %v4288 = vsel %vm626, %v4256, 0.0
    %v4289 = vsel %vm627, %v4257, 0.0
    %v4290 = vsel %vm628, %v4258, 0.0
    %v4291 = vsel %vm629, %v4259, 0.0
    %v4292 = vsel %vm630, %v4260, 0.0
    %v4293 = vsel %vm631, %v4261, 0.0
    %v4294 = vsel %vm632, %v4262, 0.0
    %v4295 = vsel %vm633, %v4263, 0.0
    %v4296 = vsel %vm634, %v4264, 0.0
    %v4297 = vsel %vm635, %v4265, 0.0
    %v4298 = vsel %vm636, %v4266, 0.0
    %v4299 = vsel %vm637, %v4267, 0.0
    %v4300 = vsel %vm638, %v4268, 0.0
    %v4301 = vsel %vm639, %v4269, 0.0
    %v4302 = vsel %vm640, %v4270, 0.0
    %v4303 = vsel %vm641, %v4271, 0.0
    %v4304 = vsel %vm642, %v4272, 0.0
    %v4305 = vsel %vm643, %v4273, 0.0
    %v4306 = vpack.c.bf16 %v4275, %v4274
    %v4307 = vpack.c.bf16 %v4277, %v4276
    %v4308 = vpack.c.bf16 %v4279, %v4278
    %v4309 = vpack.c.bf16 %v4281, %v4280
    %v4310 = vpack.c.bf16 %v4283, %v4282
    %v4311 = vpack.c.bf16 %v4285, %v4284
    %v4312 = vpack.c.bf16 %v4287, %v4286
    %v4313 = vpack.c.bf16 %v4289, %v4288
    %v4314 = vpack.c.bf16 %v4291, %v4290
    %v4315 = vpack.c.bf16 %v4293, %v4292
    %v4316 = vpack.c.bf16 %v4295, %v4294
    %v4317 = vpack.c.bf16 %v4297, %v4296
    %v4318 = vpack.c.bf16 %v4299, %v4298
    %v4319 = vpack.c.bf16 %v4301, %v4300
    %v4320 = vpack.c.bf16 %v4303, %v4302
    %v4321 = vpack.c.bf16 %v4305, %v4304
    %v4322 = vld [vmem:[#allocation2 + $0x10f] sm:$0xff]
    %v4323 = vld [vmem:[#allocation2 + $0x117] sm:$0xff]
    %v4324 = vsel %vm580, %v4116, 0.0
    %v4325 = vsel %vm581, %v4117, 0.0
    %v4326 = vsel %vm582, %v4118, 0.0
    %v4327 = vsel %vm583, %v4119, 0.0
    %v4328 = vsel %vm584, %v4120, 0.0
    %v4329 = vsel %vm585, %v4121, 0.0
    %v4330 = vsel %vm586, %v4122, 0.0
    %v4331 = vsel %vm587, %v4123, 0.0
    %v4332 = vsel %vm588, %v4124, 0.0
    %v4333 = vsel %vm589, %v4125, 0.0
    %v4334 = vsel %vm590, %v4126, 0.0
    %v4335 = vsel %vm591, %v4127, 0.0
    %v4336 = vsel %vm592, %v4128, 0.0
    %v4337 = vsel %vm593, %v4129, 0.0
    %v4338 = vsel %vm594, %v4130, 0.0
    %v4339 = vsel %vm595, %v4131, 0.0
    %v4340 = vsel %vm596, %v4132, 0.0
    %v4341 = vsel %vm597, %v4133, 0.0
    %v4342 = vsel %vm598, %v4134, 0.0
    %v4343 = vsel %vm599, %v4135, 0.0
    %v4344 = vsel %vm600, %v4136, 0.0
    %v4345 = vsel %vm601, %v4137, 0.0
    %v4346 = vsel %vm602, %v4138, 0.0
    %v4347 = vsel %vm603, %v4139, 0.0
    %v4348 = vsel %vm604, %v4140, 0.0
    %v4349 = vsel %vm605, %v4141, 0.0
    %v4350 = vsel %vm606, %v4142, 0.0
    %v4351 = vsel %vm607, %v4143, 0.0
    %v4352 = vsel %vm608, %v4144, 0.0
    %v4353 = vsel %vm609, %v4145, 0.0
    %v4354 = vsel %vm610, %v4322, 0.0
    %v4355 = vsel %vm611, %v4323, 0.0
    %v4356 = vpack.c.bf16 %v4325, %v4324
    %v4357 = vpack.c.bf16 %v4327, %v4326
    %v4358 = vpack.c.bf16 %v4329, %v4328
    %v4359 = vpack.c.bf16 %v4331, %v4330
    %v4360 = vpack.c.bf16 %v4333, %v4332
    %v4361 = vpack.c.bf16 %v4335, %v4334
    %v4362 = vpack.c.bf16 %v4337, %v4336
    %v4363 = vpack.c.bf16 %v4339, %v4338
    %v4364 = vpack.c.bf16 %v4341, %v4340
    %v4365 = vpack.c.bf16 %v4343, %v4342
    %v4366 = vpack.c.bf16 %v4345, %v4344
    %v4367 = vpack.c.bf16 %v4347, %v4346
    %v4368 = vpack.c.bf16 %v4349, %v4348
    %v4369 = vpack.c.bf16 %v4351, %v4350
    %v4370 = vpack.c.bf16 %v4353, %v4352
    %v4371 = vpack.c.bf16 %v4355, %v4354
    %v4372 = vpack.c.bf16 %v3906, %v3905
    %v4373 = vpack.c.bf16 %v3908, %v3907
    %v4374 = vpack.c.bf16 %v3910, %v3909
    %v4375 = vpack.c.bf16 %v3912, %v3911
    %v4376 = vpack.c.bf16 %v3914, %v3913
    %v4377 = vpack.c.bf16 %v3916, %v3915
    %v4378 = vpack.c.bf16 %v3918, %v3917
    %v4379 = vpack.c.bf16 %v3920, %v3919
    %v4380 = vpack.c.bf16 %v3922, %v3921
    %v4381 = vpack.c.bf16 %v3924, %v3923
    %v4382 = vpack.c.bf16 %v3926, %v3925
    %v4383 = vpack.c.bf16 %v3928, %v3927
    %v4384 = vpack.c.bf16 %v3930, %v3929
    %v4385 = vpack.c.bf16 %v3932, %v3931
    %v4386 = vpack.c.bf16 %v3934, %v3933
    %v4387 = vpack.c.bf16 %v3936, %v3935
    %v4388 = vld [vmem:[#allocation2 + $0x111] sm:$0xff]
    %v4389 = vld [vmem:[#allocation2 + $0x119] sm:$0xff]
    %v4390 = vsel %vm612, %v4244, 0.0
    %v4391 = vsel %vm613, %v4245, 0.0
    %v4392 = vsel %vm614, %v4246, 0.0
    %v4393 = vsel %vm615, %v4247, 0.0
    %v4394 = vsel %vm616, %v4248, 0.0
    %v4395 = vsel %vm617, %v4249, 0.0
    %v4396 = vsel %vm618, %v4250, 0.0
    %v4397 = vsel %vm619, %v4251, 0.0
    %v4398 = vsel %vm620, %v4252, 0.0
    %v4399 = vsel %vm621, %v4253, 0.0
    %v4400 = vsel %vm622, %v4254, 0.0
    %v4401 = vsel %vm623, %v4255, 0.0
    %v4402 = vsel %vm624, %v4256, 0.0
    %v4403 = vsel %vm625, %v4257, 0.0
    %v4404 = vsel %vm626, %v4258, 0.0
    %v4405 = vsel %vm627, %v4259, 0.0
    %v4406 = vsel %vm628, %v4260, 0.0
    %v4407 = vsel %vm629, %v4261, 0.0
    %v4408 = vsel %vm630, %v4262, 0.0
    %v4409 = vsel %vm631, %v4263, 0.0
    %v4410 = vsel %vm632, %v4264, 0.0
    %v4411 = vsel %vm633, %v4265, 0.0
    %v4412 = vsel %vm634, %v4266, 0.0
    %v4413 = vsel %vm635, %v4267, 0.0
    %v4414 = vsel %vm636, %v4268, 0.0
    %v4415 = vsel %vm637, %v4269, 0.0
    %v4416 = vsel %vm638, %v4270, 0.0
    %v4417 = vsel %vm639, %v4271, 0.0
    %v4418 = vsel %vm640, %v4272, 0.0
    %v4419 = vsel %vm641, %v4273, 0.0
    %v4420 = vsel %vm642, %v4388, 0.0
    %v4421 = vsel %vm643, %v4389, 0.0
    %v4422 = vpack.c.bf16 %v4391, %v4390
    %v4423 = vpack.c.bf16 %v4393, %v4392
    %v4424 = vpack.c.bf16 %v4395, %v4394
    %v4425 = vpack.c.bf16 %v4397, %v4396
    %v4426 = vpack.c.bf16 %v4399, %v4398
    %v4427 = vpack.c.bf16 %v4401, %v4400
    %v4428 = vpack.c.bf16 %v4403, %v4402
    %v4429 = vpack.c.bf16 %v4405, %v4404
    %v4430 = vpack.c.bf16 %v4407, %v4406
    %v4431 = vpack.c.bf16 %v4409, %v4408
    %v4432 = vpack.c.bf16 %v4411, %v4410
    %v4433 = vpack.c.bf16 %v4413, %v4412
    %v4434 = vpack.c.bf16 %v4415, %v4414
    %v4435 = vpack.c.bf16 %v4417, %v4416
    %v4436 = vpack.c.bf16 %v4419, %v4418
    %v4437 = vpack.c.bf16 %v4421, %v4420
    %v4438 = vld [vmem:[#allocation2 + $0x11f] sm:$0xff]
    %v4439 = vld [vmem:[#allocation2 + $0x127] sm:$0xff]
    %v4440 = vsel %vm580, %v4118, 0.0
    %v4441 = vsel %vm581, %v4119, 0.0
    %v4442 = vsel %vm582, %v4120, 0.0
    %v4443 = vsel %vm583, %v4121, 0.0
    %v4444 = vsel %vm584, %v4122, 0.0
    %v4445 = vsel %vm585, %v4123, 0.0
    %v4446 = vsel %vm586, %v4124, 0.0
    %v4447 = vsel %vm587, %v4125, 0.0
    %v4448 = vsel %vm588, %v4126, 0.0
    %v4449 = vsel %vm589, %v4127, 0.0
    %v4450 = vsel %vm590, %v4128, 0.0
    %v4451 = vsel %vm591, %v4129, 0.0
    %v4452 = vsel %vm592, %v4130, 0.0
    %v4453 = vsel %vm593, %v4131, 0.0
    %v4454 = vsel %vm594, %v4132, 0.0
    %v4455 = vsel %vm595, %v4133, 0.0
    %v4456 = vsel %vm596, %v4134, 0.0
    %v4457 = vsel %vm597, %v4135, 0.0
    %v4458 = vsel %vm598, %v4136, 0.0
    %v4459 = vsel %vm599, %v4137, 0.0
    %v4460 = vsel %vm600, %v4138, 0.0
    %v4461 = vsel %vm601, %v4139, 0.0
    %v4462 = vsel %vm602, %v4140, 0.0
    %v4463 = vsel %vm603, %v4141, 0.0
    %v4464 = vsel %vm604, %v4142, 0.0
    %v4465 = vsel %vm605, %v4143, 0.0
    %v4466 = vsel %vm606, %v4144, 0.0
    %v4467 = vsel %vm607, %v4145, 0.0
    %v4468 = vsel %vm608, %v4322, 0.0
    %v4469 = vsel %vm609, %v4323, 0.0
    %v4470 = vsel %vm610, %v4438, 0.0
    %v4471 = vsel %vm611, %v4439, 0.0
    %v4472 = vpack.c.bf16 %v4441, %v4440
    %v4473 = vpack.c.bf16 %v4443, %v4442
    %v4474 = vpack.c.bf16 %v4445, %v4444
    %v4475 = vpack.c.bf16 %v4447, %v4446
    %v4476 = vpack.c.bf16 %v4449, %v4448
    %v4477 = vpack.c.bf16 %v4451, %v4450
    %v4478 = vpack.c.bf16 %v4453, %v4452
    %v4479 = vpack.c.bf16 %v4455, %v4454
    %v4480 = vpack.c.bf16 %v4457, %v4456
    %v4481 = vpack.c.bf16 %v4459, %v4458
    %v4482 = vpack.c.bf16 %v4461, %v4460
    %v4483 = vpack.c.bf16 %v4463, %v4462
    %v4484 = vpack.c.bf16 %v4465, %v4464
    %v4485 = vpack.c.bf16 %v4467, %v4466
    %v4486 = vpack.c.bf16 %v4469, %v4468
    %v4487 = vpack.c.bf16 %v4471, %v4470
    %v4488 = vld [vmem:[#allocation2 + $0x110] sm:$0xff]
    %v4489 = vld [vmem:[#allocation2 + $0x118] sm:$0xff]
    %v4490 = vld [vmem:[#allocation2 + $0x120] sm:$0xff]
    %v4491 = vld [vmem:[#allocation2 + $0x128] sm:$0xff]
    %v4492 = vpack.c.bf16 %v4489, %v4488
    %v4493 = vpack.c.bf16 %v4491, %v4490
    %v4494 = vld [vmem:[#allocation2 + $0x121] sm:$0xff]
    %v4495 = vld [vmem:[#allocation2 + $0x129] sm:$0xff]
    %v4496 = vsel %vm612, %v4246, 0.0
    %v4497 = vsel %vm613, %v4247, 0.0
    %v4498 = vsel %vm614, %v4248, 0.0
    %v4499 = vsel %vm615, %v4249, 0.0
    %v4500 = vsel %vm616, %v4250, 0.0
    %v4501 = vsel %vm617, %v4251, 0.0
    %v4502 = vsel %vm618, %v4252, 0.0
    %v4503 = vsel %vm619, %v4253, 0.0
    %v4504 = vsel %vm620, %v4254, 0.0
    %v4505 = vsel %vm621, %v4255, 0.0
    %v4506 = vsel %vm622, %v4256, 0.0
    %v4507 = vsel %vm623, %v4257, 0.0
    %v4508 = vsel %vm624, %v4258, 0.0
    %v4509 = vsel %vm625, %v4259, 0.0
    %v4510 = vsel %vm626, %v4260, 0.0
    %v4511 = vsel %vm627, %v4261, 0.0
    %v4512 = vsel %vm628, %v4262, 0.0
    %v4513 = vsel %vm629, %v4263, 0.0
    %v4514 = vsel %vm630, %v4264, 0.0
    %v4515 = vsel %vm631, %v4265, 0.0
    %v4516 = vsel %vm632, %v4266, 0.0
    %v4517 = vsel %vm633, %v4267, 0.0
    %v4518 = vsel %vm634, %v4268, 0.0
    %v4519 = vsel %vm635, %v4269, 0.0
    %v4520 = vsel %vm636, %v4270, 0.0
    %v4521 = vsel %vm637, %v4271, 0.0
    %v4522 = vsel %vm638, %v4272, 0.0
    %v4523 = vsel %vm639, %v4273, 0.0
    %v4524 = vsel %vm640, %v4388, 0.0
    %v4525 = vsel %vm641, %v4389, 0.0
    %v4526 = vsel %vm642, %v4494, 0.0
    %v4527 = vsel %vm643, %v4495, 0.0
    %v4528 = vpack.c.bf16 %v4497, %v4496
    %v4529 = vpack.c.bf16 %v4499, %v4498
    %v4530 = vpack.c.bf16 %v4501, %v4500
    %v4531 = vpack.c.bf16 %v4503, %v4502
    %v4532 = vpack.c.bf16 %v4505, %v4504
    %v4533 = vpack.c.bf16 %v4507, %v4506
    %v4534 = vpack.c.bf16 %v4509, %v4508
    %v4535 = vpack.c.bf16 %v4511, %v4510
    %v4536 = vpack.c.bf16 %v4513, %v4512
    %v4537 = vpack.c.bf16 %v4515, %v4514
    %v4538 = vpack.c.bf16 %v4517, %v4516
    %v4539 = vpack.c.bf16 %v4519, %v4518
    %v4540 = vpack.c.bf16 %v4521, %v4520
    %v4541 = vpack.c.bf16 %v4523, %v4522
    %v4542 = vpack.c.bf16 %v4525, %v4524
    %v4543 = vpack.c.bf16 %v4527, %v4526
    %v4544 = vlaneseq
    %v4545 = vshrl.u32 %v4544, 7
    %v4546 = vsub.s32 0, %v4545
    %v4547 = vrot.slane %v673, %v4546
    %v4692 = vunpack.c.l.b16 %v3938
    %v4693 = vunpack.c.l.b16 %v3939
    %v4694 = vunpack.c.l.b16 %v3940
    %v4695 = vunpack.c.l.b16 %v3941
    %v4696 = vunpack.c.l.b16 %v3942
    %v4697 = vunpack.c.l.b16 %v3943
    %v4698 = vunpack.c.l.b16 %v3944
    %v4699 = vunpack.c.l.b16 %v3945
    %v4700 = vunpack.c.l.b16 %v3946
    %v4701 = vunpack.c.l.b16 %v3947
    %v4702 = vunpack.c.l.b16 %v3948
    %v4703 = vunpack.c.l.b16 %v3949
    %v4704 = vunpack.c.l.b16 %v3950
    %v4705 = vunpack.c.l.b16 %v3951
    %v4706 = vunpack.c.l.b16 %v3952
    %v4707 = vunpack.c.l.b16 %v3953
    %v4708 = vunpack.c.l.b16 %v3954
    %v4709 = vunpack.c.l.b16 %v3955
    %v4710 = vunpack.c.l.b16 %v3956
    %v4711 = vunpack.c.l.b16 %v3957
    %v4712 = vunpack.c.l.b16 %v3958
    %v4713 = vunpack.c.l.b16 %v3959
    %v4714 = vunpack.c.l.b16 %v3960
    %v4715 = vunpack.c.l.b16 %v3961
    %v4716 = vunpack.c.l.b16 %v3962
    %v4717 = vunpack.c.l.b16 %v3963
    %v4718 = vunpack.c.l.b16 %v3964
    %v4719 = vunpack.c.l.b16 %v3965
    %v4720 = vunpack.c.l.b16 %v3966
    %v4721 = vunpack.c.l.b16 %v3967
    %v4722 = vunpack.c.l.b16 %v3968
    %v4723 = vunpack.c.l.b16 %v3969
    %v4724 = vunpack.c.l.b16 %v3970
    %v4725 = vunpack.c.l.b16 %v3971
    %v4726 = vunpack.c.l.b16 %v3972
    %v4727 = vunpack.c.l.b16 %v3973
    %v4728 = vunpack.c.l.b16 %v3974
    %v4729 = vunpack.c.l.b16 %v3975
    %v4730 = vunpack.c.l.b16 %v3976
    %v4731 = vunpack.c.l.b16 %v3977
    %v4732 = vunpack.c.l.b16 %v3978
    %v4733 = vunpack.c.l.b16 %v3979
    %v4734 = vunpack.c.l.b16 %v3980
    %v4735 = vunpack.c.l.b16 %v3981
    %v4736 = vunpack.c.l.b16 %v3982
    %v4737 = vunpack.c.l.b16 %v3983
    %v4738 = vunpack.c.l.b16 %v3984
    %v4739 = vunpack.c.l.b16 %v3985
    %v4740 = vunpack.c.l.b16 %v3986
    %v4741 = vunpack.c.l.b16 %v3987
    %v4742 = vunpack.c.l.b16 %v3988
    %v4743 = vunpack.c.l.b16 %v3989
    %v4744 = vunpack.c.l.b16 %v3990
    %v4745 = vunpack.c.l.b16 %v3991
    %v4746 = vunpack.c.l.b16 %v3992
    %v4747 = vunpack.c.l.b16 %v3993
    %v4748 = vunpack.c.l.b16 %v3994
    %v4749 = vunpack.c.l.b16 %v3995
    %v4750 = vunpack.c.l.b16 %v3996
    %v4751 = vunpack.c.l.b16 %v3997
    %v4752 = vunpack.c.l.b16 %v3998
    %v4753 = vunpack.c.l.b16 %v3999
    %v4754 = vunpack.c.l.b16 %v4000
    %v4755 = vunpack.c.l.b16 %v4001
    %v4756 = vunpack.c.l.b16 %v4002
    %v4757 = vunpack.c.l.b16 %v4003
    %v4758 = vunpack.c.l.b16 %v4004
    %v4759 = vunpack.c.l.b16 %v4005
    %v4760 = vunpack.c.l.b16 %v4006
    %v4761 = vunpack.c.l.b16 %v4007
    %v4762 = vunpack.c.l.b16 %v4008
    %v4763 = vunpack.c.l.b16 %v4009
    %v4764 = vunpack.c.l.b16 %v4010
    %v4765 = vunpack.c.l.b16 %v4011
    %v4766 = vunpack.c.l.b16 %v4012
    %v4767 = vunpack.c.l.b16 %v4013
    %v4768 = vunpack.c.l.b16 %v4014
    %v4769 = vunpack.c.l.b16 %v4015
    %v4770 = vunpack.c.l.b16 %v4016
    %v4771 = vunpack.c.l.b16 %v4017
    %v4772 = vunpack.c.l.b16 %v4018
    %v4773 = vunpack.c.l.b16 %v4019
    %v4774 = vunpack.c.l.b16 %v4020
    %v4775 = vunpack.c.l.b16 %v4021
    %v4776 = vunpack.c.l.b16 %v4022
    %v4777 = vunpack.c.l.b16 %v4023
    %v4778 = vunpack.c.l.b16 %v4024
    %v4779 = vunpack.c.l.b16 %v4025
    %v4780 = vunpack.c.l.b16 %v4026
    %v4781 = vunpack.c.l.b16 %v4027
    %v4782 = vunpack.c.l.b16 %v4028
    %v4783 = vunpack.c.l.b16 %v4029
    %v4784 = vunpack.c.l.b16 %v4030
    %v4785 = vunpack.c.l.b16 %v4031
    %v4786 = vunpack.c.l.b16 %v4032
    %v4787 = vunpack.c.l.b16 %v4033
    %v4788 = vunpack.c.l.b16 %v4034
    %v4789 = vunpack.c.l.b16 %v4035
    %v4790 = vunpack.c.l.b16 %v4036
    %v4791 = vunpack.c.l.b16 %v4037
    %v4792 = vunpack.c.l.b16 %v4038
    %v4793 = vunpack.c.l.b16 %v4039
    %v4794 = vunpack.c.l.b16 %v4040
    %v4795 = vunpack.c.l.b16 %v4041
    %v4796 = vunpack.c.l.b16 %v4042
    %v4797 = vunpack.c.l.b16 %v4043
    %v4798 = vunpack.c.l.b16 %v4044
    %v4799 = vunpack.c.l.b16 %v4045
    %v4800 = vunpack.c.l.b16 %v4046
    %v4801 = vunpack.c.l.b16 %v4047
    %v4802 = vunpack.c.l.b16 %v4048
    %v4803 = vunpack.c.l.b16 %v4049
    %v4804 = vunpack.c.l.b16 %v4050
    %v4805 = vunpack.c.l.b16 %v4051
    %v4806 = vunpack.c.l.b16 %v4052
    %v4807 = vunpack.c.l.b16 %v4053
    %v4808 = vunpack.c.l.b16 %v4054
    %v4809 = vunpack.c.l.b16 %v4055
    %v4810 = vunpack.c.l.b16 %v4056
    %v4811 = vunpack.c.l.b16 %v4057
    %v4812 = vunpack.c.l.b16 %v4058
    %v4813 = vunpack.c.l.b16 %v4059
    %v4814 = vunpack.c.l.b16 %v4060
    %v4815 = vunpack.c.l.b16 %v4061
    %v4816 = vunpack.c.l.b16 %v4062
    %v4817 = vunpack.c.l.b16 %v4063
    %v4818 = vunpack.c.l.b16 %v4064
    %v4819 = vunpack.c.l.b16 %v4065
    %v4820 = vunpack.c.l.b16 %v4066
    %v4821 = vunpack.c.l.b16 %v4067
    %v4822 = vunpack.c.l.b16 %v4068
    %v4823 = vunpack.c.l.b16 %v4069
    %v4824 = vunpack.c.l.b16 %v4070
    %v4825 = vunpack.c.l.b16 %v4071
    %v4826 = vunpack.c.l.b16 %v4072
    %v4827 = vunpack.c.l.b16 %v4073
    %v4828 = vunpack.c.l.b16 %v4074
    %v4829 = vunpack.c.l.b16 %v4075
    %v4830 = vunpack.c.l.b16 %v4076
    %v4831 = vunpack.c.l.b16 %v4077
    %v4832 = vunpack.c.l.b16 %v4078
    %v4833 = vunpack.c.l.b16 %v4079
    %v4834 = vunpack.c.l.b16 %v4080
    %v4835 = vunpack.c.l.b16 %v4081
    %v4836 = vpack.c.b16 %v4693, %v4692
    %v4837 = vpack.c.b16 %v4695, %v4694
    %v4838 = vpack.c.b16 %v4697, %v4696
    %v4839 = vpack.c.b16 %v4699, %v4698
    %v4840 = vpack.c.b16 %v4701, %v4700
    %v4841 = vpack.c.b16 %v4703, %v4702
    %v4842 = vpack.c.b16 %v4705, %v4704
    %v4843 = vpack.c.b16 %v4707, %v4706
    %v4844 = vpack.c.b16 %v4709, %v4708
    %v4845 = vpack.c.b16 %v4711, %v4710
    %v4846 = vpack.c.b16 %v4713, %v4712
    %v4847 = vpack.c.b16 %v4715, %v4714
    %v4848 = vpack.c.b16 %v4717, %v4716
    %v4849 = vpack.c.b16 %v4719, %v4718
    %v4850 = vpack.c.b16 %v4721, %v4720
    %v4851 = vpack.c.b16 %v4723, %v4722
    %v4852 = vpack.c.b16 %v4725, %v4724
    %v4853 = vpack.c.b16 %v4727, %v4726
    %v4854 = vpack.c.b16 %v4729, %v4728
    %v4855 = vpack.c.b16 %v4731, %v4730
    %v4856 = vpack.c.b16 %v4733, %v4732
    %v4857 = vpack.c.b16 %v4735, %v4734
    %v4858 = vpack.c.b16 %v4737, %v4736
    %v4859 = vpack.c.b16 %v4739, %v4738
    %v4860 = vpack.c.b16 %v4741, %v4740
    %v4861 = vpack.c.b16 %v4743, %v4742
    %v4862 = vpack.c.b16 %v4745, %v4744
    %v4863 = vpack.c.b16 %v4747, %v4746
    %v4864 = vpack.c.b16 %v4749, %v4748
    %v4865 = vpack.c.b16 %v4751, %v4750
    %v4866 = vpack.c.b16 %v4753, %v4752
    %v4867 = vpack.c.b16 %v4755, %v4754
    %v4868 = vpack.c.b16 %v4757, %v4756
    %v4869 = vpack.c.b16 %v4759, %v4758
    %v4870 = vpack.c.b16 %v4761, %v4760
    %v4871 = vpack.c.b16 %v4763, %v4762
    %v4872 = vpack.c.b16 %v4765, %v4764
    %v4873 = vpack.c.b16 %v4767, %v4766
    %v4874 = vpack.c.b16 %v4769, %v4768
    %v4875 = vpack.c.b16 %v4771, %v4770
    %v4876 = vpack.c.b16 %v4773, %v4772
    %v4877 = vpack.c.b16 %v4775, %v4774
    %v4878 = vpack.c.b16 %v4777, %v4776
    %v4879 = vpack.c.b16 %v4779, %v4778
    %v4880 = vpack.c.b16 %v4781, %v4780
    %v4881 = vpack.c.b16 %v4783, %v4782
    %v4882 = vpack.c.b16 %v4785, %v4784
    %v4883 = vpack.c.b16 %v4787, %v4786
    %v4884 = vpack.c.b16 %v4789, %v4788
    %v4885 = vpack.c.b16 %v4791, %v4790
    %v4886 = vpack.c.b16 %v4793, %v4792
    %v4887 = vpack.c.b16 %v4795, %v4794
    %v4888 = vpack.c.b16 %v4797, %v4796
    %v4889 = vpack.c.b16 %v4799, %v4798
    %v4890 = vpack.c.b16 %v4801, %v4800
    %v4891 = vpack.c.b16 %v4803, %v4802
    %v4892 = vpack.c.b16 %v4805, %v4804
    %v4893 = vpack.c.b16 %v4807, %v4806
    %v4894 = vpack.c.b16 %v4809, %v4808
    %v4895 = vpack.c.b16 %v4811, %v4810
    %v4896 = vpack.c.b16 %v4813, %v4812
    %v4897 = vpack.c.b16 %v4815, %v4814
    %v4898 = vpack.c.b16 %v4817, %v4816
    %v4899 = vpack.c.b16 %v4819, %v4818
    %v4900 = vpack.c.b16 %v4821, %v4820
    %v4901 = vpack.c.b16 %v4823, %v4822
    %v4902 = vpack.c.b16 %v4825, %v4824
    %v4903 = vpack.c.b16 %v4827, %v4826
    %v4904 = vpack.c.b16 %v4829, %v4828
    %v4905 = vpack.c.b16 %v4831, %v4830
    %v4906 = vpack.c.b16 %v4833, %v4832
    %v4907 = vpack.c.b16 %v4835, %v4834
    %4980 = vmatprep.subr.bf16.mxu0 0
    %4981 = vmatpush1.bf16.msra.mxu0 %v4843
    %4982 = vmatprep.subr.bf16.mxu0 0
    %4983 = vmatpush1.bf16.msra.mxu0 %v4842
    %4984 = vmatprep.subr.bf16.mxu0 0
    %4985 = vmatpush1.bf16.msra.mxu0 %v4841
    %4986 = vmatprep.subr.bf16.mxu0 0
    %4987 = vmatpush1.bf16.msra.mxu0 %v4840
    %4988 = vmatprep.subr.bf16.mxu0 0
    %4989 = vmatpush1.bf16.msra.mxu0 %v4839
    %4990 = vmatprep.subr.bf16.mxu0 0
    %4991 = vmatpush1.bf16.msra.mxu0 %v4838
    %4992 = vmatprep.subr.bf16.mxu0 0
    %4993 = vmatpush1.bf16.msra.mxu0 %v4837
    %4994 = vmatprep.subr.bf16.mxu0 0
    %4995 = vmatpush1.bf16.msra.mxu0 %v4836
    %4996 = vmatprep.subr.bf16.mxu0 0
    %4997 = vmatpush2.bf16.msra.mxu0 %v4851
    %4998 = vmatprep.subr.bf16.mxu0 0
    %4999 = vmatpush2.bf16.msra.mxu0 %v4850
    %5000 = vmatprep.subr.bf16.mxu0 0
    %5001 = vmatpush2.bf16.msra.mxu0 %v4849
    %5002 = vmatprep.subr.bf16.mxu0 0
    %5003 = vmatpush2.bf16.msra.mxu0 %v4848
    %5004 = vmatprep.subr.bf16.mxu0 0
    %5005 = vmatpush2.bf16.msra.mxu0 %v4847
    %5006 = vmatprep.subr.bf16.mxu0 0
    %5007 = vmatpush2.bf16.msra.mxu0 %v4846
    %5008 = vmatprep.subr.bf16.mxu0 0
    %5009 = vmatpush2.bf16.msra.mxu0 %v4845
    %5010 = vmatprep.subr.bf16.mxu0 0
    %5011 = vmatpush2.bf16.msra.mxu0 %v4844
    %5012 = vmatprep.mubr.bf16.mxu0 %v4226
    %5013 = vmatmul.mubr.bf16.gmra.mxu0 %v4178
    %v5014 = vpop.f32.mrf.mxu0
    %v5015 = vadd.f32 %v4547, %v5014
    %v5016 = vpop.f32.mrf.mxu0
    %v5017 = vpop.f32.mrf.mxu0
    %v5018 = vadd.f32 %v4547, %v5017
    %v5019 = vpop.f32.mrf.mxu0
    %5020 = vmatprep.mubr.bf16.mxu0 %v4227
    %5021 = vmatmul.mubr.bf16.gmra.mxu0 %v4179
    %v5022 = vpop.f32.mrf.mxu0
    %v5023 = vadd.f32 %v4547, %v5022
    %v5024 = vpop.f32.mrf.mxu0
    %v5025 = vpop.f32.mrf.mxu0
    %v5026 = vadd.f32 %v4547, %v5025
    %v5027 = vpop.f32.mrf.mxu0
    %5028 = vmatprep.mubr.bf16.mxu0 %v4228
    %5029 = vmatmul.mubr.bf16.gmra.mxu0 %v4180
    %v5030 = vpop.f32.mrf.mxu0
    %v5031 = vadd.f32 %v4547, %v5030
    %v5032 = vpop.f32.mrf.mxu0
    %v5033 = vpop.f32.mrf.mxu0
    %v5034 = vadd.f32 %v4547, %v5033
    %v5035 = vpop.f32.mrf.mxu0
    %5036 = vmatprep.mubr.bf16.mxu0 %v4229
    %5037 = vmatmul.mubr.bf16.gmra.mxu0 %v4181
    %v5038 = vpop.f32.mrf.mxu0
    %v5039 = vadd.f32 %v4547, %v5038
    %v5040 = vpop.f32.mrf.mxu0
    %v5041 = vpop.f32.mrf.mxu0
    %v5042 = vadd.f32 %v4547, %v5041
    %v5043 = vpop.f32.mrf.mxu0
    %5044 = vmatprep.mubr.bf16.mxu0 %v4230
    %5045 = vmatmul.mubr.bf16.gmra.mxu0 %v4182
    %v5046 = vpop.f32.mrf.mxu0
    %v5047 = vadd.f32 %v4547, %v5046
    %v5048 = vpop.f32.mrf.mxu0
    %v5049 = vpop.f32.mrf.mxu0
    %v5050 = vadd.f32 %v4547, %v5049
    %v5051 = vpop.f32.mrf.mxu0
    %5052 = vmatprep.mubr.bf16.mxu0 %v4231
    %5053 = vmatmul.mubr.bf16.gmra.mxu0 %v4183
    %v5054 = vpop.f32.mrf.mxu0
    %v5055 = vadd.f32 %v4547, %v5054
    %v5056 = vpop.f32.mrf.mxu0
    %v5057 = vpop.f32.mrf.mxu0
    %v5058 = vadd.f32 %v4547, %v5057
    %v5059 = vpop.f32.mrf.mxu0
    %5060 = vmatprep.mubr.bf16.mxu0 %v4232
    %5061 = vmatmul.mubr.bf16.gmra.mxu0 %v4184
    %v5062 = vpop.f32.mrf.mxu0
    %v5063 = vadd.f32 %v4547, %v5062
    %v5064 = vpop.f32.mrf.mxu0
    %v5065 = vpop.f32.mrf.mxu0
    %v5066 = vadd.f32 %v4547, %v5065
    %v5067 = vpop.f32.mrf.mxu0
    %5068 = vmatprep.mubr.bf16.mxu0 %v4233
    %5069 = vmatmul.mubr.bf16.gmra.mxu0 %v4185
    %v5070 = vpop.f32.mrf.mxu0
    %v5071 = vadd.f32 %v4547, %v5070
    %v5072 = vpop.f32.mrf.mxu0
    %v5073 = vpop.f32.mrf.mxu0
    %v5074 = vadd.f32 %v4547, %v5073
    %v5075 = vpop.f32.mrf.mxu0
    %5076 = vmatprep.mubr.bf16.mxu0 %v4234
    %5077 = vmatmul.mubr.bf16.gmra.mxu0 %v4186
    %v5078 = vpop.f32.mrf.mxu0
    %v5079 = vadd.f32 %v4547, %v5078
    %v5080 = vpop.f32.mrf.mxu0
    %v5081 = vpop.f32.mrf.mxu0
    %v5082 = vadd.f32 %v4547, %v5081
    %v5083 = vpop.f32.mrf.mxu0
    %5084 = vmatprep.mubr.bf16.mxu0 %v4235
    %5085 = vmatmul.mubr.bf16.gmra.mxu0 %v4187
    %v5086 = vpop.f32.mrf.mxu0
    %v5087 = vadd.f32 %v4547, %v5086
    %v5088 = vpop.f32.mrf.mxu0
    %v5089 = vpop.f32.mrf.mxu0
    %v5090 = vadd.f32 %v4547, %v5089
    %v5091 = vpop.f32.mrf.mxu0
    %5092 = vmatprep.mubr.bf16.mxu0 %v4236
    %5093 = vmatmul.mubr.bf16.gmra.mxu0 %v4188
    %v5094 = vpop.f32.mrf.mxu0
    %v5095 = vadd.f32 %v4547, %v5094
    %v5096 = vpop.f32.mrf.mxu0
    %v5097 = vpop.f32.mrf.mxu0
    %v5098 = vadd.f32 %v4547, %v5097
    %v5099 = vpop.f32.mrf.mxu0
    %5100 = vmatprep.mubr.bf16.mxu0 %v4237
    %5101 = vmatmul.mubr.bf16.gmra.mxu0 %v4189
    %v5102 = vpop.f32.mrf.mxu0
    %v5103 = vadd.f32 %v4547, %v5102
    %v5104 = vpop.f32.mrf.mxu0
    %v5105 = vpop.f32.mrf.mxu0
    %v5106 = vadd.f32 %v4547, %v5105
    %v5107 = vpop.f32.mrf.mxu0
    %5108 = vmatprep.mubr.bf16.mxu0 %v4238
    %5109 = vmatmul.mubr.bf16.gmra.mxu0 %v4190
    %v5110 = vpop.f32.mrf.mxu0
    %v5111 = vadd.f32 %v4547, %v5110
    %v5112 = vpop.f32.mrf.mxu0
    %v5113 = vpop.f32.mrf.mxu0
    %v5114 = vadd.f32 %v4547, %v5113
    %v5115 = vpop.f32.mrf.mxu0
    %5116 = vmatprep.mubr.bf16.mxu0 %v4239
    %5117 = vmatmul.mubr.bf16.gmra.mxu0 %v4191
    %v5118 = vpop.f32.mrf.mxu0
    %v5119 = vadd.f32 %v4547, %v5118
    %v5120 = vpop.f32.mrf.mxu0
    %v5121 = vpop.f32.mrf.mxu0
    %v5122 = vadd.f32 %v4547, %v5121
    %v5123 = vpop.f32.mrf.mxu0
    %5124 = vmatprep.mubr.bf16.mxu0 %v4240
    %5125 = vmatmul.mubr.bf16.gmra.mxu0 %v4192
    %v5126 = vpop.f32.mrf.mxu0
    %v5127 = vadd.f32 %v4547, %v5126
    %v5128 = vpop.f32.mrf.mxu0
    %v5129 = vpop.f32.mrf.mxu0
    %v5130 = vadd.f32 %v4547, %v5129
    %v5131 = vpop.f32.mrf.mxu0
    %5132 = vmatprep.mubr.bf16.mxu0 %v4241
    %5133 = vmatmul.mubr.bf16.gmra.mxu0 %v4193
    %v5134 = vpop.f32.mrf.mxu0
    %v5135 = vadd.f32 %v4547, %v5134
    %v5136 = vpop.f32.mrf.mxu0
    %v5137 = vpop.f32.mrf.mxu0
    %v5138 = vadd.f32 %v4547, %v5137
    %v5139 = vpop.f32.mrf.mxu0
    %5140 = vdwg.mxu0
    %5141 = vmatprep.subr.bf16.mxu0 0
    %5142 = vmatpush1.bf16.msra.mxu0 %v4859
    %5143 = vmatprep.subr.bf16.mxu0 0
    %5144 = vmatpush1.bf16.msra.mxu0 %v4858
    %5145 = vmatprep.subr.bf16.mxu0 0
    %5146 = vmatpush1.bf16.msra.mxu0 %v4857
    %5147 = vmatprep.subr.bf16.mxu0 0
    %5148 = vmatpush1.bf16.msra.mxu0 %v4856
    %5149 = vmatprep.subr.bf16.mxu0 0
    %5150 = vmatpush1.bf16.msra.mxu0 %v4855
    %5151 = vmatprep.subr.bf16.mxu0 0
    %5152 = vmatpush1.bf16.msra.mxu0 %v4854
    %5153 = vmatprep.subr.bf16.mxu0 0
    %5154 = vmatpush1.bf16.msra.mxu0 %v4853
    %5155 = vmatprep.subr.bf16.mxu0 0
    %5156 = vmatpush1.bf16.msra.mxu0 %v4852
    %5157 = vmatprep.subr.bf16.mxu0 0
    %5158 = vmatpush2.bf16.msra.mxu0 %v4867
    %5159 = vmatprep.subr.bf16.mxu0 0
    %5160 = vmatpush2.bf16.msra.mxu0 %v4866
    %5161 = vmatprep.subr.bf16.mxu0 0
    %5162 = vmatpush2.bf16.msra.mxu0 %v4865
    %5163 = vmatprep.subr.bf16.mxu0 0
    %5164 = vmatpush2.bf16.msra.mxu0 %v4864
    %5165 = vmatprep.subr.bf16.mxu0 0
    %5166 = vmatpush2.bf16.msra.mxu0 %v4863
    %5167 = vmatprep.subr.bf16.mxu0 0
    %5168 = vmatpush2.bf16.msra.mxu0 %v4862
    %5169 = vmatprep.subr.bf16.mxu0 0
    %5170 = vmatpush2.bf16.msra.mxu0 %v4861
    %5171 = vmatprep.subr.bf16.mxu0 0
    %5172 = vmatpush2.bf16.msra.mxu0 %v4860
    %5173 = vmatprep.mubr.bf16.mxu0 %v4356
    %5174 = vmatmul.mubr.bf16.gmra.mxu0 %v4306
    %v5175 = vpop.f32.mrf.mxu0
    %v5176 = vadd.f32 %v5015, %v5175
    %v5177 = vpop.f32.mrf.mxu0
    %v5178 = vpop.f32.mrf.mxu0
    %v5179 = vadd.f32 %v5018, %v5178
    %v5180 = vpop.f32.mrf.mxu0
    %5181 = vmatprep.mubr.bf16.mxu0 %v4357
    %5182 = vmatmul.mubr.bf16.gmra.mxu0 %v4307
    %v5183 = vpop.f32.mrf.mxu0
    %v5184 = vadd.f32 %v5023, %v5183
    %v5185 = vpop.f32.mrf.mxu0
    %v5186 = vpop.f32.mrf.mxu0
    %v5187 = vadd.f32 %v5026, %v5186
    %v5188 = vpop.f32.mrf.mxu0
    %5189 = vmatprep.mubr.bf16.mxu0 %v4358
    %5190 = vmatmul.mubr.bf16.gmra.mxu0 %v4308
    %v5191 = vpop.f32.mrf.mxu0
    %v5192 = vadd.f32 %v5031, %v5191
    %v5193 = vpop.f32.mrf.mxu0
    %v5194 = vpop.f32.mrf.mxu0
    %v5195 = vadd.f32 %v5034, %v5194
    %v5196 = vpop.f32.mrf.mxu0
    %5197 = vmatprep.mubr.bf16.mxu0 %v4359
    %5198 = vmatmul.mubr.bf16.gmra.mxu0 %v4309
    %v5199 = vpop.f32.mrf.mxu0
    %v5200 = vadd.f32 %v5039, %v5199
    %v5201 = vpop.f32.mrf.mxu0
    %v5202 = vpop.f32.mrf.mxu0
    %v5203 = vadd.f32 %v5042, %v5202
    %v5204 = vpop.f32.mrf.mxu0
    %5205 = vmatprep.mubr.bf16.mxu0 %v4360
    %5206 = vmatmul.mubr.bf16.gmra.mxu0 %v4310
    %v5207 = vpop.f32.mrf.mxu0
    %v5208 = vadd.f32 %v5047, %v5207
    %v5209 = vpop.f32.mrf.mxu0
    %v5210 = vpop.f32.mrf.mxu0
    %v5211 = vadd.f32 %v5050, %v5210
    %v5212 = vpop.f32.mrf.mxu0
    %5213 = vmatprep.mubr.bf16.mxu0 %v4361
    %5214 = vmatmul.mubr.bf16.gmra.mxu0 %v4311
    %v5215 = vpop.f32.mrf.mxu0
    %v5216 = vadd.f32 %v5055, %v5215
    %v5217 = vpop.f32.mrf.mxu0
    %v5218 = vpop.f32.mrf.mxu0
    %v5219 = vadd.f32 %v5058, %v5218
    %v5220 = vpop.f32.mrf.mxu0
    %5221 = vmatprep.mubr.bf16.mxu0 %v4362
    %5222 = vmatmul.mubr.bf16.gmra.mxu0 %v4312
    %v5223 = vpop.f32.mrf.mxu0
    %v5224 = vadd.f32 %v5063, %v5223
    %v5225 = vpop.f32.mrf.mxu0
    %v5226 = vpop.f32.mrf.mxu0
    %v5227 = vadd.f32 %v5066, %v5226
    %v5228 = vpop.f32.mrf.mxu0
    %5229 = vmatprep.mubr.bf16.mxu0 %v4363
    %5230 = vmatmul.mubr.bf16.gmra.mxu0 %v4313
    %v5231 = vpop.f32.mrf.mxu0
    %v5232 = vadd.f32 %v5071, %v5231
    %v5233 = vpop.f32.mrf.mxu0
    %v5234 = vpop.f32.mrf.mxu0
    %v5235 = vadd.f32 %v5074, %v5234
    %v5236 = vpop.f32.mrf.mxu0
    %5237 = vmatprep.mubr.bf16.mxu0 %v4364
    %5238 = vmatmul.mubr.bf16.gmra.mxu0 %v4314
    %v5239 = vpop.f32.mrf.mxu0
    %v5240 = vadd.f32 %v5079, %v5239
    %v5241 = vpop.f32.mrf.mxu0
    %v5242 = vpop.f32.mrf.mxu0
    %v5243 = vadd.f32 %v5082, %v5242
    %v5244 = vpop.f32.mrf.mxu0
    %5245 = vmatprep.mubr.bf16.mxu0 %v4365
    %5246 = vmatmul.mubr.bf16.gmra.mxu0 %v4315
    %v5247 = vpop.f32.mrf.mxu0
    %v5248 = vadd.f32 %v5087, %v5247
    %v5249 = vpop.f32.mrf.mxu0
    %v5250 = vpop.f32.mrf.mxu0
    %v5251 = vadd.f32 %v5090, %v5250
    %v5252 = vpop.f32.mrf.mxu0
    %5253 = vmatprep.mubr.bf16.mxu0 %v4366
    %5254 = vmatmul.mubr.bf16.gmra.mxu0 %v4316
    %v5255 = vpop.f32.mrf.mxu0
    %v5256 = vadd.f32 %v5095, %v5255
    %v5257 = vpop.f32.mrf.mxu0
    %v5258 = vpop.f32.mrf.mxu0
    %v5259 = vadd.f32 %v5098, %v5258
    %v5260 = vpop.f32.mrf.mxu0
    %5261 = vmatprep.mubr.bf16.mxu0 %v4367
    %5262 = vmatmul.mubr.bf16.gmra.mxu0 %v4317
    %v5263 = vpop.f32.mrf.mxu0
    %v5264 = vadd.f32 %v5103, %v5263
    %v5265 = vpop.f32.mrf.mxu0
    %v5266 = vpop.f32.mrf.mxu0
    %v5267 = vadd.f32 %v5106, %v5266
    %v5268 = vpop.f32.mrf.mxu0
    %5269 = vmatprep.mubr.bf16.mxu0 %v4368
    %5270 = vmatmul.mubr.bf16.gmra.mxu0 %v4318
    %v5271 = vpop.f32.mrf.mxu0
    %v5272 = vadd.f32 %v5111, %v5271
    %v5273 = vpop.f32.mrf.mxu0
    %v5274 = vpop.f32.mrf.mxu0
    %v5275 = vadd.f32 %v5114, %v5274
    %v5276 = vpop.f32.mrf.mxu0
    %5277 = vmatprep.mubr.bf16.mxu0 %v4369
    %5278 = vmatmul.mubr.bf16.gmra.mxu0 %v4319
    %v5279 = vpop.f32.mrf.mxu0
    %v5280 = vadd.f32 %v5119, %v5279
    %v5281 = vpop.f32.mrf.mxu0
    %v5282 = vpop.f32.mrf.mxu0
    %v5283 = vadd.f32 %v5122, %v5282
    %v5284 = vpop.f32.mrf.mxu0
    %5285 = vmatprep.mubr.bf16.mxu0 %v4370
    %5286 = vmatmul.mubr.bf16.gmra.mxu0 %v4320
    %v5287 = vpop.f32.mrf.mxu0
    %v5288 = vadd.f32 %v5127, %v5287
    %v5289 = vpop.f32.mrf.mxu0
    %v5290 = vpop.f32.mrf.mxu0
    %v5291 = vadd.f32 %v5130, %v5290
    %v5292 = vpop.f32.mrf.mxu0
    %5293 = vmatprep.mubr.bf16.mxu0 %v4371
    %5294 = vmatmul.mubr.bf16.gmra.mxu0 %v4321
    %v5295 = vpop.f32.mrf.mxu0
    %v5296 = vadd.f32 %v5135, %v5295
    %v5297 = vpop.f32.mrf.mxu0
    %v5298 = vpop.f32.mrf.mxu0
    %v5299 = vadd.f32 %v5138, %v5298
    %v5300 = vpop.f32.mrf.mxu0
    %5301 = vdwg.mxu0
    %5302 = vmatprep.subr.bf16.mxu0 0
    %5303 = vmatpush1.bf16.msra.mxu0 %v4875
    %5304 = vmatprep.subr.bf16.mxu0 0
    %5305 = vmatpush1.bf16.msra.mxu0 %v4874
    %5306 = vmatprep.subr.bf16.mxu0 0
    %5307 = vmatpush1.bf16.msra.mxu0 %v4873
    %5308 = vmatprep.subr.bf16.mxu0 0
    %5309 = vmatpush1.bf16.msra.mxu0 %v4872
    %5310 = vmatprep.subr.bf16.mxu0 0
    %5311 = vmatpush1.bf16.msra.mxu0 %v4871
    %5312 = vmatprep.subr.bf16.mxu0 0
    %5313 = vmatpush1.bf16.msra.mxu0 %v4870
    %5314 = vmatprep.subr.bf16.mxu0 0
    %5315 = vmatpush1.bf16.msra.mxu0 %v4869
    %5316 = vmatprep.subr.bf16.mxu0 0
    %5317 = vmatpush1.bf16.msra.mxu0 %v4868
    %5318 = vmatprep.subr.bf16.mxu0 0
    %5319 = vmatpush2.bf16.msra.mxu0 %v4883
    %5320 = vmatprep.subr.bf16.mxu0 0
    %5321 = vmatpush2.bf16.msra.mxu0 %v4882
    %5322 = vmatprep.subr.bf16.mxu0 0
    %5323 = vmatpush2.bf16.msra.mxu0 %v4881
    %5324 = vmatprep.subr.bf16.mxu0 0
    %5325 = vmatpush2.bf16.msra.mxu0 %v4880
    %5326 = vmatprep.subr.bf16.mxu0 0
    %5327 = vmatpush2.bf16.msra.mxu0 %v4879
    %5328 = vmatprep.subr.bf16.mxu0 0
    %5329 = vmatpush2.bf16.msra.mxu0 %v4878
    %5330 = vmatprep.subr.bf16.mxu0 0
    %5331 = vmatpush2.bf16.msra.mxu0 %v4877
    %5332 = vmatprep.subr.bf16.mxu0 0
    %5333 = vmatpush2.bf16.msra.mxu0 %v4876
    %5334 = vmatprep.mubr.bf16.mxu0 %v4422
    %5335 = vmatmul.mubr.bf16.gmra.mxu0 %v4372
    %v5336 = vpop.f32.mrf.mxu0
    %v5337 = vadd.f32 %v5176, %v5336
    %v5338 = vpop.f32.mrf.mxu0
    %v5339 = vpop.f32.mrf.mxu0
    %v5340 = vadd.f32 %v5179, %v5339
    %v5341 = vpop.f32.mrf.mxu0
    %5342 = vmatprep.mubr.bf16.mxu0 %v4423
    %5343 = vmatmul.mubr.bf16.gmra.mxu0 %v4373
    %v5344 = vpop.f32.mrf.mxu0
    %v5345 = vadd.f32 %v5184, %v5344
    %v5346 = vpop.f32.mrf.mxu0
    %v5347 = vpop.f32.mrf.mxu0
    %v5348 = vadd.f32 %v5187, %v5347
    %v5349 = vpop.f32.mrf.mxu0
    %5350 = vmatprep.mubr.bf16.mxu0 %v4424
    %5351 = vmatmul.mubr.bf16.gmra.mxu0 %v4374
    %v5352 = vpop.f32.mrf.mxu0
    %v5353 = vadd.f32 %v5192, %v5352
    %v5354 = vpop.f32.mrf.mxu0
    %v5355 = vpop.f32.mrf.mxu0
    %v5356 = vadd.f32 %v5195, %v5355
    %v5357 = vpop.f32.mrf.mxu0
    %5358 = vmatprep.mubr.bf16.mxu0 %v4425
    %5359 = vmatmul.mubr.bf16.gmra.mxu0 %v4375
    %v5360 = vpop.f32.mrf.mxu0
    %v5361 = vadd.f32 %v5200, %v5360
    %v5362 = vpop.f32.mrf.mxu0
    %v5363 = vpop.f32.mrf.mxu0
    %v5364 = vadd.f32 %v5203, %v5363
    %v5365 = vpop.f32.mrf.mxu0
    %5366 = vmatprep.mubr.bf16.mxu0 %v4426
    %5367 = vmatmul.mubr.bf16.gmra.mxu0 %v4376
    %v5368 = vpop.f32.mrf.mxu0
    %v5369 = vadd.f32 %v5208, %v5368
    %v5370 = vpop.f32.mrf.mxu0
    %v5371 = vpop.f32.mrf.mxu0
    %v5372 = vadd.f32 %v5211, %v5371
    %v5373 = vpop.f32.mrf.mxu0
    %5374 = vmatprep.mubr.bf16.mxu0 %v4427
    %5375 = vmatmul.mubr.bf16.gmra.mxu0 %v4377
    %v5376 = vpop.f32.mrf.mxu0
    %v5377 = vadd.f32 %v5216, %v5376
    %v5378 = vpop.f32.mrf.mxu0
    %v5379 = vpop.f32.mrf.mxu0
    %v5380 = vadd.f32 %v5219, %v5379
    %v5381 = vpop.f32.mrf.mxu0
    %5382 = vmatprep.mubr.bf16.mxu0 %v4428
    %5383 = vmatmul.mubr.bf16.gmra.mxu0 %v4378
    %v5384 = vpop.f32.mrf.mxu0
    %v5385 = vadd.f32 %v5224, %v5384
    %v5386 = vpop.f32.mrf.mxu0
    %v5387 = vpop.f32.mrf.mxu0
    %v5388 = vadd.f32 %v5227, %v5387
    %v5389 = vpop.f32.mrf.mxu0
    %5390 = vmatprep.mubr.bf16.mxu0 %v4429
    %5391 = vmatmul.mubr.bf16.gmra.mxu0 %v4379
    %v5392 = vpop.f32.mrf.mxu0
    %v5393 = vadd.f32 %v5232, %v5392
    %v5394 = vpop.f32.mrf.mxu0
    %v5395 = vpop.f32.mrf.mxu0
    %v5396 = vadd.f32 %v5235, %v5395
    %v5397 = vpop.f32.mrf.mxu0
    %5398 = vmatprep.mubr.bf16.mxu0 %v4430
    %5399 = vmatmul.mubr.bf16.gmra.mxu0 %v4380
    %v5400 = vpop.f32.mrf.mxu0
    %v5401 = vadd.f32 %v5240, %v5400
    %v5402 = vpop.f32.mrf.mxu0
    %v5403 = vpop.f32.mrf.mxu0
    %v5404 = vadd.f32 %v5243, %v5403
    %v5405 = vpop.f32.mrf.mxu0
    %5406 = vmatprep.mubr.bf16.mxu0 %v4431
    %5407 = vmatmul.mubr.bf16.gmra.mxu0 %v4381
    %v5408 = vpop.f32.mrf.mxu0
    %v5409 = vadd.f32 %v5248, %v5408
    %v5410 = vpop.f32.mrf.mxu0
    %v5411 = vpop.f32.mrf.mxu0
    %v5412 = vadd.f32 %v5251, %v5411
    %v5413 = vpop.f32.mrf.mxu0
    %5414 = vmatprep.mubr.bf16.mxu0 %v4432
    %5415 = vmatmul.mubr.bf16.gmra.mxu0 %v4382
    %v5416 = vpop.f32.mrf.mxu0
    %v5417 = vadd.f32 %v5256, %v5416
    %v5418 = vpop.f32.mrf.mxu0
    %v5419 = vpop.f32.mrf.mxu0
    %v5420 = vadd.f32 %v5259, %v5419
    %v5421 = vpop.f32.mrf.mxu0
    %5422 = vmatprep.mubr.bf16.mxu0 %v4433
    %5423 = vmatmul.mubr.bf16.gmra.mxu0 %v4383
    %v5424 = vpop.f32.mrf.mxu0
    %v5425 = vadd.f32 %v5264, %v5424
    %v5426 = vpop.f32.mrf.mxu0
    %v5427 = vpop.f32.mrf.mxu0
    %v5428 = vadd.f32 %v5267, %v5427
    %v5429 = vpop.f32.mrf.mxu0
    %5430 = vmatprep.mubr.bf16.mxu0 %v4434
    %5431 = vmatmul.mubr.bf16.gmra.mxu0 %v4384
    %v5432 = vpop.f32.mrf.mxu0
    %v5433 = vadd.f32 %v5272, %v5432
    %v5434 = vpop.f32.mrf.mxu0
    %v5435 = vpop.f32.mrf.mxu0
    %v5436 = vadd.f32 %v5275, %v5435
    %v5437 = vpop.f32.mrf.mxu0
    %5438 = vmatprep.mubr.bf16.mxu0 %v4435
    %5439 = vmatmul.mubr.bf16.gmra.mxu0 %v4385
    %v5440 = vpop.f32.mrf.mxu0
    %v5441 = vadd.f32 %v5280, %v5440
    %v5442 = vpop.f32.mrf.mxu0
    %v5443 = vpop.f32.mrf.mxu0
    %v5444 = vadd.f32 %v5283, %v5443
    %v5445 = vpop.f32.mrf.mxu0
    %5446 = vmatprep.mubr.bf16.mxu0 %v4436
    %5447 = vmatmul.mubr.bf16.gmra.mxu0 %v4386
    %v5448 = vpop.f32.mrf.mxu0
    %v5449 = vadd.f32 %v5288, %v5448
    %v5450 = vpop.f32.mrf.mxu0
    %v5451 = vpop.f32.mrf.mxu0
    %v5452 = vadd.f32 %v5291, %v5451
    %v5453 = vpop.f32.mrf.mxu0
    %5454 = vmatprep.mubr.bf16.mxu0 %v4437
    %5455 = vmatmul.mubr.bf16.gmra.mxu0 %v4387
    %v5456 = vpop.f32.mrf.mxu0
    %v5457 = vadd.f32 %v5296, %v5456
    %v5458 = vpop.f32.mrf.mxu0
    %v5459 = vpop.f32.mrf.mxu0
    %v5460 = vadd.f32 %v5299, %v5459
    %v5461 = vpop.f32.mrf.mxu0
    %5462 = vdwg.mxu0
    %5463 = vmatprep.subr.bf16.mxu0 0
    %5464 = vmatpush1.bf16.msra.mxu0 %v4891
    %5465 = vmatprep.subr.bf16.mxu0 0
    %5466 = vmatpush1.bf16.msra.mxu0 %v4890
    %5467 = vmatprep.subr.bf16.mxu0 0
    %5468 = vmatpush1.bf16.msra.mxu0 %v4889
    %5469 = vmatprep.subr.bf16.mxu0 0
    %5470 = vmatpush1.bf16.msra.mxu0 %v4888
    %5471 = vmatprep.subr.bf16.mxu0 0
    %5472 = vmatpush1.bf16.msra.mxu0 %v4887
    %5473 = vmatprep.subr.bf16.mxu0 0
    %5474 = vmatpush1.bf16.msra.mxu0 %v4886
    %5475 = vmatprep.subr.bf16.mxu0 0
    %5476 = vmatpush1.bf16.msra.mxu0 %v4885
    %5477 = vmatprep.subr.bf16.mxu0 0
    %5478 = vmatpush1.bf16.msra.mxu0 %v4884
    %5479 = vmatprep.subr.bf16.mxu0 0
    %5480 = vmatpush2.bf16.msra.mxu0 %v4899
    %5481 = vmatprep.subr.bf16.mxu0 0
    %5482 = vmatpush2.bf16.msra.mxu0 %v4898
    %5483 = vmatprep.subr.bf16.mxu0 0
    %5484 = vmatpush2.bf16.msra.mxu0 %v4897
    %5485 = vmatprep.subr.bf16.mxu0 0
    %5486 = vmatpush2.bf16.msra.mxu0 %v4896
    %5487 = vmatprep.subr.bf16.mxu0 0
    %5488 = vmatpush2.bf16.msra.mxu0 %v4895
    %5489 = vmatprep.subr.bf16.mxu0 0
    %5490 = vmatpush2.bf16.msra.mxu0 %v4894
    %5491 = vmatprep.subr.bf16.mxu0 0
    %5492 = vmatpush2.bf16.msra.mxu0 %v4893
    %5493 = vmatprep.subr.bf16.mxu0 0
    %5494 = vmatpush2.bf16.msra.mxu0 %v4892
    %5495 = vmatprep.mubr.bf16.mxu0 %v4228
    %5496 = vmatmul.mubr.bf16.gmra.mxu0 %v4472
    %v5497 = vpop.f32.mrf.mxu0
    %v5498 = vadd.f32 %v5337, %v5497
    %v5499 = vpop.f32.mrf.mxu0
    %v5500 = vpop.f32.mrf.mxu0
    %v5501 = vadd.f32 %v5340, %v5500
    %v5502 = vpop.f32.mrf.mxu0
    %5503 = vmatprep.mubr.bf16.mxu0 %v4229
    %5504 = vmatmul.mubr.bf16.gmra.mxu0 %v4473
    %v5505 = vpop.f32.mrf.mxu0
    %v5506 = vadd.f32 %v5345, %v5505
    %v5507 = vpop.f32.mrf.mxu0
    %v5508 = vpop.f32.mrf.mxu0
    %v5509 = vadd.f32 %v5348, %v5508
    %v5510 = vpop.f32.mrf.mxu0
    %5511 = vmatprep.mubr.bf16.mxu0 %v4230
    %5512 = vmatmul.mubr.bf16.gmra.mxu0 %v4474
    %v5513 = vpop.f32.mrf.mxu0
    %v5514 = vadd.f32 %v5353, %v5513
    %v5515 = vpop.f32.mrf.mxu0
    %v5516 = vpop.f32.mrf.mxu0
    %v5517 = vadd.f32 %v5356, %v5516
    %v5518 = vpop.f32.mrf.mxu0
    %5519 = vmatprep.mubr.bf16.mxu0 %v4231
    %5520 = vmatmul.mubr.bf16.gmra.mxu0 %v4475
    %v5521 = vpop.f32.mrf.mxu0
    %v5522 = vadd.f32 %v5361, %v5521
    %v5523 = vpop.f32.mrf.mxu0
    %v5524 = vpop.f32.mrf.mxu0
    %v5525 = vadd.f32 %v5364, %v5524
    %v5526 = vpop.f32.mrf.mxu0
    %5527 = vmatprep.mubr.bf16.mxu0 %v4232
    %5528 = vmatmul.mubr.bf16.gmra.mxu0 %v4476
    %v5529 = vpop.f32.mrf.mxu0
    %v5530 = vadd.f32 %v5369, %v5529
    %v5531 = vpop.f32.mrf.mxu0
    %v5532 = vpop.f32.mrf.mxu0
    %v5533 = vadd.f32 %v5372, %v5532
    %v5534 = vpop.f32.mrf.mxu0
    %5535 = vmatprep.mubr.bf16.mxu0 %v4233
    %5536 = vmatmul.mubr.bf16.gmra.mxu0 %v4477
    %v5537 = vpop.f32.mrf.mxu0
    %v5538 = vadd.f32 %v5377, %v5537
    %v5539 = vpop.f32.mrf.mxu0
    %v5540 = vpop.f32.mrf.mxu0
    %v5541 = vadd.f32 %v5380, %v5540
    %v5542 = vpop.f32.mrf.mxu0
    %5543 = vmatprep.mubr.bf16.mxu0 %v4234
    %5544 = vmatmul.mubr.bf16.gmra.mxu0 %v4478
    %v5545 = vpop.f32.mrf.mxu0
    %v5546 = vadd.f32 %v5385, %v5545
    %v5547 = vpop.f32.mrf.mxu0
    %v5548 = vpop.f32.mrf.mxu0
    %v5549 = vadd.f32 %v5388, %v5548
    %v5550 = vpop.f32.mrf.mxu0
    %5551 = vmatprep.mubr.bf16.mxu0 %v4235
    %5552 = vmatmul.mubr.bf16.gmra.mxu0 %v4479
    %v5553 = vpop.f32.mrf.mxu0
    %v5554 = vadd.f32 %v5393, %v5553
    %v5555 = vpop.f32.mrf.mxu0
    %v5556 = vpop.f32.mrf.mxu0
    %v5557 = vadd.f32 %v5396, %v5556
    %v5558 = vpop.f32.mrf.mxu0
    %5559 = vmatprep.mubr.bf16.mxu0 %v4236
    %5560 = vmatmul.mubr.bf16.gmra.mxu0 %v4480
    %v5561 = vpop.f32.mrf.mxu0
    %v5562 = vadd.f32 %v5401, %v5561
    %v5563 = vpop.f32.mrf.mxu0
    %v5564 = vpop.f32.mrf.mxu0
    %v5565 = vadd.f32 %v5404, %v5564
    %v5566 = vpop.f32.mrf.mxu0
    %5567 = vmatprep.mubr.bf16.mxu0 %v4237
    %5568 = vmatmul.mubr.bf16.gmra.mxu0 %v4481
    %v5569 = vpop.f32.mrf.mxu0
    %v5570 = vadd.f32 %v5409, %v5569
    %v5571 = vpop.f32.mrf.mxu0
    %v5572 = vpop.f32.mrf.mxu0
    %v5573 = vadd.f32 %v5412, %v5572
    %v5574 = vpop.f32.mrf.mxu0
    %5575 = vmatprep.mubr.bf16.mxu0 %v4238
    %5576 = vmatmul.mubr.bf16.gmra.mxu0 %v4482
    %v5577 = vpop.f32.mrf.mxu0
    %v5578 = vadd.f32 %v5417, %v5577
    %v5579 = vpop.f32.mrf.mxu0
    %v5580 = vpop.f32.mrf.mxu0
    %v5581 = vadd.f32 %v5420, %v5580
    %v5582 = vpop.f32.mrf.mxu0
    %5583 = vmatprep.mubr.bf16.mxu0 %v4239
    %5584 = vmatmul.mubr.bf16.gmra.mxu0 %v4483
    %v5585 = vpop.f32.mrf.mxu0
    %v5586 = vadd.f32 %v5425, %v5585
    %v5587 = vpop.f32.mrf.mxu0
    %v5588 = vpop.f32.mrf.mxu0
    %v5589 = vadd.f32 %v5428, %v5588
    %v5590 = vpop.f32.mrf.mxu0
    %5591 = vmatprep.mubr.bf16.mxu0 %v4240
    %5592 = vmatmul.mubr.bf16.gmra.mxu0 %v4484
    %v5593 = vpop.f32.mrf.mxu0
    %v5594 = vadd.f32 %v5433, %v5593
    %v5595 = vpop.f32.mrf.mxu0
    %v5596 = vpop.f32.mrf.mxu0
    %v5597 = vadd.f32 %v5436, %v5596
    %v5598 = vpop.f32.mrf.mxu0
    %5599 = vmatprep.mubr.bf16.mxu0 %v4241
    %5600 = vmatmul.mubr.bf16.gmra.mxu0 %v4485
    %v5601 = vpop.f32.mrf.mxu0
    %v5602 = vadd.f32 %v5441, %v5601
    %v5603 = vpop.f32.mrf.mxu0
    %v5604 = vpop.f32.mrf.mxu0
    %v5605 = vadd.f32 %v5444, %v5604
    %v5606 = vpop.f32.mrf.mxu0
    %5607 = vmatprep.mubr.bf16.mxu0 %v4492
    %5608 = vmatmul.mubr.bf16.gmra.mxu0 %v4486
    %v5609 = vpop.f32.mrf.mxu0
    %v5610 = vadd.f32 %v5449, %v5609
    %v5611 = vpop.f32.mrf.mxu0
    %v5612 = vpop.f32.mrf.mxu0
    %v5613 = vadd.f32 %v5452, %v5612
    %v5614 = vpop.f32.mrf.mxu0
    %5615 = vmatprep.mubr.bf16.mxu0 %v4493
    %5616 = vmatmul.mubr.bf16.gmra.mxu0 %v4487
    %v5617 = vpop.f32.mrf.mxu0
    %v5618 = vadd.f32 %v5457, %v5617
    %v5619 = vpop.f32.mrf.mxu0
    %v5620 = vpop.f32.mrf.mxu0
    %v5621 = vadd.f32 %v5460, %v5620
    %v5622 = vpop.f32.mrf.mxu0
    %5623 = vdwg.mxu0
    %5624 = vmatprep.subr.bf16.mxu0 0
    %5625 = vmatpush1.bf16.msra.mxu0 %v4907
    %5626 = vmatprep.subr.bf16.mxu0 0
    %5627 = vmatpush1.bf16.msra.mxu0 %v4906
    %5628 = vmatprep.subr.bf16.mxu0 0
    %5629 = vmatpush1.bf16.msra.mxu0 %v4905
    %5630 = vmatprep.subr.bf16.mxu0 0
    %5631 = vmatpush1.bf16.msra.mxu0 %v4904
    %5632 = vmatprep.subr.bf16.mxu0 0
    %5633 = vmatpush1.bf16.msra.mxu0 %v4903
    %5634 = vmatprep.subr.bf16.mxu0 0
    %5635 = vmatpush1.bf16.msra.mxu0 %v4902
    %5636 = vmatprep.subr.bf16.mxu0 0
    %5637 = vmatpush1.bf16.msra.mxu0 %v4901
    %5638 = vmatprep.subr.bf16.mxu0 0
    %5639 = vmatpush1.bf16.msra.mxu0 %v4900
    %5640 = vmatprep.subr.bf16.mxu0 0
    %5641 = vmatpush2.bf16.msra.mxu0 0
    %5642 = vmatprep.subr.bf16.mxu0 0
    %5643 = vmatpush2.bf16.msra.mxu0 0
    %5644 = vmatprep.subr.bf16.mxu0 0
    %5645 = vmatpush2.bf16.msra.mxu0 0
    %5646 = vmatprep.subr.bf16.mxu0 0
    %5647 = vmatpush2.bf16.msra.mxu0 0
    %5648 = vmatprep.subr.bf16.mxu0 0
    %5649 = vmatpush2.bf16.msra.mxu0 0
    %5650 = vmatprep.subr.bf16.mxu0 0
    %5651 = vmatpush2.bf16.msra.mxu0 0
    %5652 = vmatprep.subr.bf16.mxu0 0
    %5653 = vmatpush2.bf16.msra.mxu0 0
    %5654 = vmatprep.subr.bf16.mxu0 0
    %5655 = vmatpush2.bf16.msra.mxu0 0
    %5656 = vmatprep.mubr.bf16.mxu0 0
    %5657 = vmatmul.mubr.bf16.gmra.mxu0 %v4528
    %v5658 = vpop.f32.mrf.mxu0
    %v5659 = vadd.f32 %v5498, %v5658
    %v5660 = vpop.f32.mrf.mxu0
    %v5661 = vpop.f32.mrf.mxu0
    %v5662 = vadd.f32 %v5501, %v5661
    %v5663 = vpop.f32.mrf.mxu0
    %5664 = vmatprep.mubr.bf16.mxu0 0
    %5665 = vmatmul.mubr.bf16.gmra.mxu0 %v4529
    %v5666 = vpop.f32.mrf.mxu0
    %v5667 = vadd.f32 %v5506, %v5666
    %v5668 = vpop.f32.mrf.mxu0
    %v5669 = vpop.f32.mrf.mxu0
    %v5670 = vadd.f32 %v5509, %v5669
    %v5671 = vpop.f32.mrf.mxu0
    %5672 = vmatprep.mubr.bf16.mxu0 0
    %5673 = vmatmul.mubr.bf16.gmra.mxu0 %v4530
    %v5674 = vpop.f32.mrf.mxu0
    %v5675 = vadd.f32 %v5514, %v5674
    %v5676 = vpop.f32.mrf.mxu0
    %v5677 = vpop.f32.mrf.mxu0
    %v5678 = vadd.f32 %v5517, %v5677
    %v5679 = vpop.f32.mrf.mxu0
    %5680 = vmatprep.mubr.bf16.mxu0 0
    %5681 = vmatmul.mubr.bf16.gmra.mxu0 %v4531
    %v5682 = vpop.f32.mrf.mxu0
    %v5683 = vadd.f32 %v5522, %v5682
    %v5684 = vpop.f32.mrf.mxu0
    %v5685 = vpop.f32.mrf.mxu0
    %v5686 = vadd.f32 %v5525, %v5685
    %v5687 = vpop.f32.mrf.mxu0
    %5688 = vmatprep.mubr.bf16.mxu0 0
    %5689 = vmatmul.mubr.bf16.gmra.mxu0 %v4532
    %v5690 = vpop.f32.mrf.mxu0
    %v5691 = vadd.f32 %v5530, %v5690
    %v5692 = vpop.f32.mrf.mxu0
    %v5693 = vpop.f32.mrf.mxu0
    %v5694 = vadd.f32 %v5533, %v5693
    %v5695 = vpop.f32.mrf.mxu0
    %5696 = vmatprep.mubr.bf16.mxu0 0
    %5697 = vmatmul.mubr.bf16.gmra.mxu0 %v4533
    %v5698 = vpop.f32.mrf.mxu0
    %v5699 = vadd.f32 %v5538, %v5698
    %v5700 = vpop.f32.mrf.mxu0
    %v5701 = vpop.f32.mrf.mxu0
    %v5702 = vadd.f32 %v5541, %v5701
    %v5703 = vpop.f32.mrf.mxu0
    %5704 = vmatprep.mubr.bf16.mxu0 0
    %5705 = vmatmul.mubr.bf16.gmra.mxu0 %v4534
    %v5706 = vpop.f32.mrf.mxu0
    %v5707 = vadd.f32 %v5546, %v5706
    %v5708 = vpop.f32.mrf.mxu0
    %v5709 = vpop.f32.mrf.mxu0
    %v5710 = vadd.f32 %v5549, %v5709
    %v5711 = vpop.f32.mrf.mxu0
    %5712 = vmatprep.mubr.bf16.mxu0 0
    %5713 = vmatmul.mubr.bf16.gmra.mxu0 %v4535
    %v5714 = vpop.f32.mrf.mxu0
    %v5715 = vadd.f32 %v5554, %v5714
    %v5716 = vpop.f32.mrf.mxu0
    %v5717 = vpop.f32.mrf.mxu0
    %v5718 = vadd.f32 %v5557, %v5717
    %v5719 = vpop.f32.mrf.mxu0
    %5720 = vmatprep.mubr.bf16.mxu0 0
    %5721 = vmatmul.mubr.bf16.gmra.mxu0 %v4536
    %v5722 = vpop.f32.mrf.mxu0
    %v5723 = vadd.f32 %v5562, %v5722
    %v5724 = vpop.f32.mrf.mxu0
    %v5725 = vpop.f32.mrf.mxu0
    %v5726 = vadd.f32 %v5565, %v5725
    %v5727 = vpop.f32.mrf.mxu0
    %5728 = vmatprep.mubr.bf16.mxu0 0
    %5729 = vmatmul.mubr.bf16.gmra.mxu0 %v4537
    %v5730 = vpop.f32.mrf.mxu0
    %v5731 = vadd.f32 %v5570, %v5730
    %v5732 = vpop.f32.mrf.mxu0
    %v5733 = vpop.f32.mrf.mxu0
    %v5734 = vadd.f32 %v5573, %v5733
    %v5735 = vpop.f32.mrf.mxu0
    %5736 = vmatprep.mubr.bf16.mxu0 0
    %5737 = vmatmul.mubr.bf16.gmra.mxu0 %v4538
    %v5738 = vpop.f32.mrf.mxu0
    %v5739 = vadd.f32 %v5578, %v5738
    %v5740 = vpop.f32.mrf.mxu0
    %v5741 = vpop.f32.mrf.mxu0
    %v5742 = vadd.f32 %v5581, %v5741
    %v5743 = vpop.f32.mrf.mxu0
    %5744 = vmatprep.mubr.bf16.mxu0 0
    %5745 = vmatmul.mubr.bf16.gmra.mxu0 %v4539
    %v5746 = vpop.f32.mrf.mxu0
    %v5747 = vadd.f32 %v5586, %v5746
    %v5748 = vpop.f32.mrf.mxu0
    %v5749 = vpop.f32.mrf.mxu0
    %v5750 = vadd.f32 %v5589, %v5749
    %v5751 = vpop.f32.mrf.mxu0
    %5752 = vmatprep.mubr.bf16.mxu0 0
    %5753 = vmatmul.mubr.bf16.gmra.mxu0 %v4540
    %v5754 = vpop.f32.mrf.mxu0
    %v5755 = vadd.f32 %v5594, %v5754
    %v5756 = vpop.f32.mrf.mxu0
    %v5757 = vpop.f32.mrf.mxu0
    %v5758 = vadd.f32 %v5597, %v5757
    %v5759 = vpop.f32.mrf.mxu0
    %5760 = vmatprep.mubr.bf16.mxu0 0
    %5761 = vmatmul.mubr.bf16.gmra.mxu0 %v4541
    %v5762 = vpop.f32.mrf.mxu0
    %v5763 = vadd.f32 %v5602, %v5762
    %v5764 = vpop.f32.mrf.mxu0
    %v5765 = vpop.f32.mrf.mxu0
    %v5766 = vadd.f32 %v5605, %v5765
    %v5767 = vpop.f32.mrf.mxu0
    %5768 = vmatprep.mubr.bf16.mxu0 0
    %5769 = vmatmul.mubr.bf16.gmra.mxu0 %v4542
    %v5770 = vpop.f32.mrf.mxu0
    %v5771 = vadd.f32 %v5610, %v5770
    %v5772 = vpop.f32.mrf.mxu0
    %v5773 = vpop.f32.mrf.mxu0
    %v5774 = vadd.f32 %v5613, %v5773
    %v5775 = vpop.f32.mrf.mxu0
    %5776 = vmatprep.mubr.bf16.mxu0 0
    %5777 = vmatmul.mubr.bf16.gmra.mxu0 %v4543
    %v5778 = vpop.f32.mrf.mxu0
    %v5779 = vadd.f32 %v5618, %v5778
    %v5780 = vpop.f32.mrf.mxu0
    %v5781 = vpop.f32.mrf.mxu0
    %v5782 = vadd.f32 %v5621, %v5781
    %v5783 = vpop.f32.mrf.mxu0
    %5784 = vdwg.mxu0
    %v5785 = vadd.f32 %v131, %v5659
    %v5786 = vadd.f32 %v132, %v5662
    %v5787 = vadd.f32 %v133, %v5667
    %v5788 = vadd.f32 %v134, %v5670
    %v5789 = vadd.f32 %v135, %v5675
    %v5790 = vadd.f32 %v136, %v5678
    %v5791 = vadd.f32 %v137, %v5683
    %v5792 = vadd.f32 %v138, %v5686
    %v5793 = vadd.f32 %v139, %v5691
    %v5794 = vadd.f32 %v140, %v5694
    %v5795 = vadd.f32 %v141, %v5699
    %v5796 = vadd.f32 %v142, %v5702
    %v5797 = vadd.f32 %v143, %v5707
    %v5798 = vadd.f32 %v144, %v5710
    %v5799 = vadd.f32 %v145, %v5715
    %v5800 = vadd.f32 %v146, %v5718
    %v5801 = vadd.f32 %v147, %v5723
    %v5802 = vadd.f32 %v148, %v5726
    %v5803 = vadd.f32 %v149, %v5731
    %v5804 = vadd.f32 %v150, %v5734
    %v5805 = vadd.f32 %v151, %v5739
    %v5806 = vadd.f32 %v152, %v5742
    %v5807 = vadd.f32 %v153, %v5747
    %v5808 = vadd.f32 %v154, %v5750
    %v5809 = vadd.f32 %v155, %v5755
    %v5810 = vadd.f32 %v156, %v5758
    %v5811 = vadd.f32 %v157, %v5763
    %v5812 = vadd.f32 %v158, %v5766
    %v5813 = vadd.f32 %v159, %v5771
    %v5814 = vadd.f32 %v160, %v5774
    %v5815 = vadd.f32 %v161, %v5779
    %v5816 = vadd.f32 %v162, %v5782
    %5817 = vst [vmem:[#allocation15] sm:$0xff] %v5785
    %5818 = vst [vmem:[#allocation15 + $0x8] sm:$0xff] %v5786
    %5819 = vst [vmem:[#allocation15 + $0x10] sm:$0xff] %v5787
    %5820 = vst [vmem:[#allocation15 + $0x18] sm:$0xff] %v5788
    %5821 = vst [vmem:[#allocation15 + $0x20] sm:$0xff] %v5789
    %5822 = vst [vmem:[#allocation15 + $0x28] sm:$0xff] %v5790
    %5823 = vst [vmem:[#allocation15 + $0x30] sm:$0xff] %v5791
    %5824 = vst [vmem:[#allocation15 + $0x38] sm:$0xff] %v5792
    %5825 = vst [vmem:[#allocation15 + $0x40] sm:$0xff] %v5793
    %5826 = vst [vmem:[#allocation15 + $0x48] sm:$0xff] %v5794
    %5827 = vst [vmem:[#allocation15 + $0x50] sm:$0xff] %v5795
    %5828 = vst [vmem:[#allocation15 + $0x58] sm:$0xff] %v5796
    %5829 = vst [vmem:[#allocation15 + $0x60] sm:$0xff] %v5797
    %5830 = vst [vmem:[#allocation15 + $0x68] sm:$0xff] %v5798
    %5831 = vst [vmem:[#allocation15 + $0x70] sm:$0xff] %v5799
    %5832 = vst [vmem:[#allocation15 + $0x78] sm:$0xff] %v5800
    %5833 = vst [vmem:[#allocation15 + $0x80] sm:$0xff] %v5801
    %5834 = vst [vmem:[#allocation15 + $0x88] sm:$0xff] %v5802
    %5835 = vst [vmem:[#allocation15 + $0x90] sm:$0xff] %v5803
    %5836 = vst [vmem:[#allocation15 + $0x98] sm:$0xff] %v5804
    %5837 = vst [vmem:[#allocation15 + $0xa0] sm:$0xff] %v5805
    %5838 = vst [vmem:[#allocation15 + $0xa8] sm:$0xff] %v5806
    %5839 = vst [vmem:[#allocation15 + $0xb0] sm:$0xff] %v5807
    %5840 = vst [vmem:[#allocation15 + $0xb8] sm:$0xff] %v5808
    %5841 = vst [vmem:[#allocation15 + $0xc0] sm:$0xff] %v5809
    %5842 = vst [vmem:[#allocation15 + $0xc8] sm:$0xff] %v5810
    %5843 = vst [vmem:[#allocation15 + $0xd0] sm:$0xff] %v5811
    %5844 = vst [vmem:[#allocation15 + $0xd8] sm:$0xff] %v5812
    %5845 = vst [vmem:[#allocation15 + $0xe0] sm:$0xff] %v5813
    %5846 = vst [vmem:[#allocation15 + $0xe8] sm:$0xff] %v5814
    %5847 = vst [vmem:[#allocation15 + $0xf0] sm:$0xff] %v5815
    %5848 = vst [vmem:[#allocation15 + $0xf8] sm:$0xff] %v5816
    // Predicated region
    $region74: #{resblock_forward_packed.1} parent=1 // pred_check
      _
    $region75: #{resblock_forward_packed.1} parent=1 // pred_check_branch
      %5850 = sbr.rel (0) target = $region77
    $region76: #{resblock_forward_packed.1} parent=1 // pred_region
      %s5852 = ssub.s32 4096, 4096
      %5853 = vsyncadd [#allocation5], %s5852
      %s5854 = sshll.u32 [#allocation15], 4
      %s5855 = int_to_ptr.vmem [resolvable:$true] %s5854
      %5860 = dma.vmem_to_hbm [thread:$0]  %s5855, 4096, %s11, [#allocation5], 128, 128, 8
    $region77: #{resblock_forward_packed.1} parent=1 // pred_fallthru
      _
    // Predicated region
    $region78: #{resblock_forward_packed.1} parent=1 // pred_check
      _
    $region79: #{resblock_forward_packed.1} parent=1 // pred_check_branch
      %5862 = sbr.rel (0) target = $region81
    $region80: #{resblock_forward_packed.1} parent=1 // pred_region
      %5863 = dma.done [#allocation5], 4096
    $region81: #{resblock_forward_packed.1} parent=1 // pred_fallthru
      _
    %5864 = vsyncpa [#allocation4], 1
    %5865 = vsyncpa [#allocation7], 1
    %5866 = vsyncpa [#allocation10], 1
    %5867 = vsyncpa [#allocation13], 1
    %5868 = vsyncpa [#allocation5], 1

</llo_original>
